<compile_context>
chip_gen: v7x
topology: tpu7x:2x2x1
jax: 0.10.0
libtpu: 0.0.40
codegen_flags: <defaults>
</compile_context>

<pallas_src>
import jax
import jax.numpy as jnp
from jax.experimental import pallas as pl
from jax.experimental.pallas import tpu as pltpu


def _lstm_stack_kernel(xproj_ref, whh1_ref, wih2_ref, whh2_ref, b2_ref,
                       h2out_ref):
    """Single invocation: runs the full T-step 2-layer LSTM recurrence.

    xproj_ref : (T, B, 4H)  precomputed x_t @ W_ih1^T + (b_ih1 + b_hh1)
    whh1_ref  : (H, 4H)     layer-1 recurrent weight (transposed)
    wih2_ref  : (H, 4H)     layer-2 input weight (transposed)
    whh2_ref  : (H, 4H)     layer-2 recurrent weight (transposed)
    b2_ref    : (1, 4H)     layer-2 summed bias
    h2out_ref : (T, B, H)   per-step layer-2 hidden state (output)
    """
    T = xproj_ref.shape[0]
    B = xproj_ref.shape[1]
    H = whh1_ref.shape[0]

    # Loop-invariant operands loaded/broadcast once (hoisted out of the loop).
    whh1 = whh1_ref[...]                                   # (H, 4H)
    wih2 = wih2_ref[...]                                   # (H, 4H)
    whh2 = whh2_ref[...]                                   # (H, 4H)
    b2 = jnp.broadcast_to(b2_ref[...], (B, 4 * H))         # (B, 4H)

    def gates_to_state(gates, c_prev):
        # Full-width nonlinearities on the whole (B, 4H) tile, then slice.
        # sigmoid(x) == 0.5 * (tanh(0.5*x) + 1)  -> single EUP pass.
        s = 0.5 * (jnp.tanh(0.5 * gates) + 1.0)            # i, f, o gates
        tg = jnp.tanh(gates)                                # g gate
        i_g = s[:, 0:H]
        f_g = s[:, H:2 * H]
        g_g = tg[:, 2 * H:3 * H]
        o_g = s[:, 3 * H:4 * H]
        c_new = f_g * c_prev + i_g * g_g
        h_new = o_g * jnp.tanh(c_new)
        return h_new, c_new

    def step(t, carry):
        h1, c1, h2, c2 = carry

        # Layer 1: input projection precomputed outside; only the recurrent
        # matmul remains in the serial loop.
        gates1 = xproj_ref[t] + jnp.dot(h1, whh1,
                                        preferred_element_type=jnp.float32)
        h1, c1 = gates_to_state(gates1, c1)

        # Layer 2: two small dots (no lane concat on the critical path).
        gates2 = (jnp.dot(h1, wih2, preferred_element_type=jnp.float32)
                  + jnp.dot(h2, whh2, preferred_element_type=jnp.float32)
                  + b2)
        h2, c2 = gates_to_state(gates2, c2)

        # Each step owns its own (B, H) slab of the output; no scatter.
        h2out_ref[t] = h2
        return (h1, c1, h2, c2)

    zeros = jnp.zeros((B, H), jnp.float32)
    jax.lax.fori_loop(0, T, step, (zeros, zeros, zeros, zeros), unroll=True)


def init_params(key, input_size, hidden_size):
    """Deterministic PyTorch-style uniform(-1/sqrt(H), 1/sqrt(H)) init."""
    H = hidden_size
    k = 1.0 / jnp.sqrt(jnp.float32(H))
    keys = jax.random.split(key, 11)

    def u(k_, shape):
        return jax.random.uniform(k_, shape, jnp.float32, -k, k)

    return dict(
        input_size=input_size,
        hidden_size=hidden_size,
        # LSTMCell 1: W_ih (4H, in), W_hh (4H, H), b_ih (4H,), b_hh (4H,)
        wih1=u(keys[0], (4 * H, input_size)),
        whh1=u(keys[1], (4 * H, H)),
        bih1=u(keys[2], (4 * H,)),
        bhh1=u(keys[3], (4 * H,)),
        # LSTMCell 2
        wih2=u(keys[4], (4 * H, H)),
        whh2=u(keys[5], (4 * H, H)),
        bih2=u(keys[6], (4 * H,)),
        bhh2=u(keys[7], (4 * H,)),
        # Linear(H, 1)
        wlin=u(keys[8], (1, H)),
        blin=u(keys[9], (1,)),
    )


def temporal_learning_forward(inp, params):
    """inp: (batch, seq_len) float32.  Returns (batch, seq_len - input_size)."""
    B, S = inp.shape
    IN = params['input_size']
    H = params['hidden_size']
    T = S - IN

    # ---- glue: sliding windows + hoisted projections -------------------------
    idx = jnp.arange(T)[:, None] + jnp.arange(IN)[None, :]          # (T, IN)
    xwin = jnp.transpose(inp[:, idx], (1, 0, 2))                    # (T, B, IN)

    b1 = (params['bih1'] + params['bhh1']).reshape(1, 4 * H)
    # Hoisted time-invariant layer-1 input projection: one big matmul.
    xproj = (xwin.reshape(T * B, IN) @ params['wih1'].T + b1
             ).reshape(T, B, 4 * H)                                 # (T, B, 4H)

    whh1_t = params['whh1'].T                                       # (H, 4H)
    wih2_t = params['wih2'].T                                       # (H, 4H)
    whh2_t = params['whh2'].T                                       # (H, 4H)
    b2 = (params['bih2'] + params['bhh2']).reshape(1, 4 * H)

    h2_seq = pl.pallas_call(
        _lstm_stack_kernel,
        out_shape=jax.ShapeDtypeStruct((T, B, H), jnp.float32),
        in_specs=[
            pl.BlockSpec(memory_space=pltpu.MemorySpace.VMEM),   # xproj
            pl.BlockSpec(memory_space=pltpu.MemorySpace.VMEM),   # whh1_t
            pl.BlockSpec(memory_space=pltpu.MemorySpace.VMEM),   # wih2_t
            pl.BlockSpec(memory_space=pltpu.MemorySpace.VMEM),   # whh2_t
            pl.BlockSpec(memory_space=pltpu.MemorySpace.VMEM),   # b2
        ],
        out_specs=pl.BlockSpec(memory_space=pltpu.MemorySpace.VMEM),
    )(xproj, whh1_t, wih2_t, whh2_t, b2)

    # Hoisted final Linear(H, 1): one (T*B, H) @ (H, 1) matmul outside the loop.
    y = h2_seq.reshape(T * B, H) @ params['wlin'].T + params['blin']  # (T*B, 1)
    return y.reshape(T, B).T                                          # (B, T)


def reference_forward(inp, params):
    """Pure-JAX reference mirroring the PyTorch forward (future=0)."""
    B, S = inp.shape
    IN = params['input_size']
    H = params['hidden_size']
    T = S - IN
    wih1_t, whh1_t = params['wih1'].T, params['whh1'].T
    b1 = params['bih1'] + params['bhh1']
    wih2_t, whh2_t = params['wih2'].T, params['whh2'].T
    b2 = params['bih2'] + params['bhh2']

    def cell(x, h, c, wih_t, whh_t, b):
        g = x @ wih_t + h @ whh_t + b
        i = jax.nn.sigmoid(g[:, :H])
        f = jax.nn.sigmoid(g[:, H:2 * H])
        gg = jnp.tanh(g[:, 2 * H:3 * H])
        o = jax.nn.sigmoid(g[:, 3 * H:4 * H])
        c = f * c + i * gg
        h = o * jnp.tanh(c)
        return h, c

    h1 = c1 = h2 = c2 = jnp.zeros((B, H), jnp.float32)
    outs = []
    for t in range(T):
        x_t = inp[:, t:t + IN]
        h1, c1 = cell(x_t, h1, c1, wih1_t, whh1_t, b1)
        h2, c2 = cell(h1, h2, c2, wih2_t, whh2_t, b2)
        outs.append(h2 @ params['wlin'].T + params['blin'])   # (B, 1)
    return jnp.stack(outs, axis=1)[:, :, 0]                   # (B, T)


if __name__ == "__main__":
    key = jax.random.PRNGKey(0)
    k_in, k_par = jax.random.split(key)

    batch, seq_len, input_size, hidden_size = 8, 20, 4, 32
    x = jax.random.normal(k_in, (batch, seq_len), jnp.float32)
    params = init_params(k_par, input_size, hidden_size)

    out = temporal_learning_forward(x, params)
    out = jax.block_until_ready(out)

    ref = reference_forward(x, params)
    assert out.shape == (batch, seq_len - input_size), out.shape
    assert jnp.allclose(out, ref, atol=1e-4, rtol=1e-4), float(
        jnp.max(jnp.abs(out - ref)))

    print("KERNEL_OK")
</pallas_src>

<mosaic_0001>
module attributes {stable_mosaic.version = 11 : i64} {
  func.func @_lstm_stack_kernel(%arg0: memref<16x8x128xf32, #tpu.memory_space<vmem>>, %arg1: memref<32x128xf32, #tpu.memory_space<vmem>>, %arg2: memref<32x128xf32, #tpu.memory_space<vmem>>, %arg3: memref<32x128xf32, #tpu.memory_space<vmem>>, %arg4: memref<1x128xf32, #tpu.memory_space<vmem>>, %arg5: memref<16x8x32xf32, #tpu.memory_space<vmem>>) attributes {dimension_semantics = [], scalar_prefetch = 0 : i64, scratch_operands = 0 : i64, tpu.core_type = #tpu.core_type<tc>} {
    %c0 = arith.constant 0 : index
    %c0_0 = arith.constant 0 : index
    %0 = vector.load %arg1[%c0, %c0_0] : memref<32x128xf32, #tpu.memory_space<vmem>>, vector<32x128xf32>
    %c0_1 = arith.constant 0 : index
    %c0_2 = arith.constant 0 : index
    %1 = vector.load %arg2[%c0_1, %c0_2] : memref<32x128xf32, #tpu.memory_space<vmem>>, vector<32x128xf32>
    %c0_3 = arith.constant 0 : index
    %c0_4 = arith.constant 0 : index
    %2 = vector.load %arg3[%c0_3, %c0_4] : memref<32x128xf32, #tpu.memory_space<vmem>>, vector<32x128xf32>
    %c0_5 = arith.constant 0 : index
    %c0_6 = arith.constant 0 : index
    %3 = vector.load %arg4[%c0_5, %c0_6] : memref<1x128xf32, #tpu.memory_space<vmem>>, vector<1x128xf32>
    %4 = vector.shape_cast %3 : vector<1x128xf32> to vector<1x128xf32>
    %5 = vector.broadcast %4 : vector<1x128xf32> to vector<8x128xf32>
    %cst = arith.constant 0.000000e+00 : f32
    %6 = vector.broadcast %cst : f32 to vector<8x32xf32>
    %c0_i32 = arith.constant 0 : i32
    %7 = arith.index_cast %c0_i32 : i32 to index
    %c0_7 = arith.constant 0 : index
    %c0_8 = arith.constant 0 : index
    %8 = vector.load %arg0[%7, %c0_7, %c0_8] : memref<16x8x128xf32, #tpu.memory_space<vmem>>, vector<1x8x128xf32>
    %9 = vector.shape_cast %8 : vector<1x8x128xf32> to vector<8x128xf32>
    %cst_9 = arith.constant dense<0.000000e+00> : vector<8x128xf32>
    %10 = tpu.matmul %6, %0, %cst_9 {dimension_numbers = #tpu.dot_dimension_numbers<[1], [0], [0], [1], [0, 0, 1, 1], [], []>} : vector<8x32xf32>, vector<32x128xf32>, vector<8x128xf32> -> vector<8x128xf32>
    %11 = arith.addf %9, %10 : vector<8x128xf32>
    %cst_10 = arith.constant 5.000000e-01 : f32
    %12 = vector.broadcast %cst_10 : f32 to vector<8x128xf32>
    %13 = arith.mulf %12, %11 : vector<8x128xf32>
    %14 = math.tanh %13 : vector<8x128xf32>
    %cst_11 = arith.constant 1.000000e+00 : f32
    %15 = vector.broadcast %cst_11 : f32 to vector<8x128xf32>
    %16 = arith.addf %14, %15 : vector<8x128xf32>
    %cst_12 = arith.constant 5.000000e-01 : f32
    %17 = vector.broadcast %cst_12 : f32 to vector<8x128xf32>
    %18 = arith.mulf %17, %16 : vector<8x128xf32>
    %19 = math.tanh %11 : vector<8x128xf32>
    %20 = vector.extract_strided_slice %18 {offsets = [0, 0], sizes = [8, 32], strides = [1, 1]} : vector<8x128xf32> to vector<8x32xf32>
    %21 = vector.extract_strided_slice %18 {offsets = [0, 32], sizes = [8, 32], strides = [1, 1]} : vector<8x128xf32> to vector<8x32xf32>
    %22 = vector.extract_strided_slice %19 {offsets = [0, 64], sizes = [8, 32], strides = [1, 1]} : vector<8x128xf32> to vector<8x32xf32>
    %23 = vector.extract_strided_slice %18 {offsets = [0, 96], sizes = [8, 32], strides = [1, 1]} : vector<8x128xf32> to vector<8x32xf32>
    %24 = arith.mulf %21, %6 : vector<8x32xf32>
    %25 = arith.mulf %20, %22 : vector<8x32xf32>
    %26 = arith.addf %24, %25 : vector<8x32xf32>
    %27 = math.tanh %26 : vector<8x32xf32>
    %28 = arith.mulf %23, %27 : vector<8x32xf32>
    %cst_13 = arith.constant dense<0.000000e+00> : vector<8x128xf32>
    %29 = tpu.matmul %28, %1, %cst_13 {dimension_numbers = #tpu.dot_dimension_numbers<[1], [0], [0], [1], [0, 0, 1, 1], [], []>} : vector<8x32xf32>, vector<32x128xf32>, vector<8x128xf32> -> vector<8x128xf32>
    %cst_14 = arith.constant dense<0.000000e+00> : vector<8x128xf32>
    %30 = tpu.matmul %6, %2, %cst_14 {dimension_numbers = #tpu.dot_dimension_numbers<[1], [0], [0], [1], [0, 0, 1, 1], [], []>} : vector<8x32xf32>, vector<32x128xf32>, vector<8x128xf32> -> vector<8x128xf32>
    %31 = arith.addf %29, %30 : vector<8x128xf32>
    %32 = arith.addf %31, %5 : vector<8x128xf32>
    %cst_15 = arith.constant 5.000000e-01 : f32
    %33 = vector.broadcast %cst_15 : f32 to vector<8x128xf32>
    %34 = arith.mulf %33, %32 : vector<8x128xf32>
    %35 = math.tanh %34 : vector<8x128xf32>
    %cst_16 = arith.constant 1.000000e+00 : f32
    %36 = vector.broadcast %cst_16 : f32 to vector<8x128xf32>
    %37 = arith.addf %35, %36 : vector<8x128xf32>
    %cst_17 = arith.constant 5.000000e-01 : f32
    %38 = vector.broadcast %cst_17 : f32 to vector<8x128xf32>
    %39 = arith.mulf %38, %37 : vector<8x128xf32>
    %40 = math.tanh %32 : vector<8x128xf32>
    %41 = vector.extract_strided_slice %39 {offsets = [0, 0], sizes = [8, 32], strides = [1, 1]} : vector<8x128xf32> to vector<8x32xf32>
    %42 = vector.extract_strided_slice %39 {offsets = [0, 32], sizes = [8, 32], strides = [1, 1]} : vector<8x128xf32> to vector<8x32xf32>
    %43 = vector.extract_strided_slice %40 {offsets = [0, 64], sizes = [8, 32], strides = [1, 1]} : vector<8x128xf32> to vector<8x32xf32>
    %44 = vector.extract_strided_slice %39 {offsets = [0, 96], sizes = [8, 32], strides = [1, 1]} : vector<8x128xf32> to vector<8x32xf32>
    %45 = arith.mulf %42, %6 : vector<8x32xf32>
    %46 = arith.mulf %41, %43 : vector<8x32xf32>
    %47 = arith.addf %45, %46 : vector<8x32xf32>
    %48 = math.tanh %47 : vector<8x32xf32>
    %49 = arith.mulf %44, %48 : vector<8x32xf32>
    %50 = arith.index_cast %c0_i32 : i32 to index
    %c0_18 = arith.constant 0 : index
    %c0_19 = arith.constant 0 : index
    %51 = vector.load %arg5[%50, %c0_18, %c0_19] : memref<16x8x32xf32, #tpu.memory_space<vmem>>, vector<1x8x32xf32>
    %52 = vector.shape_cast %51 : vector<1x8x32xf32> to vector<8x32xf32>
    %53 = vector.shape_cast %49 : vector<8x32xf32> to vector<1x8x32xf32>
    tpu.vector_store %arg5[%50, %c0_18, %c0_19], %53 {strides = array<i32>} : memref<16x8x32xf32, #tpu.memory_space<vmem>>, vector<1x8x32xf32>,
    %c1_i32 = arith.constant 1 : i32
    %54 = arith.index_cast %c1_i32 : i32 to index
    %c0_20 = arith.constant 0 : index
    %c0_21 = arith.constant 0 : index
    %55 = vector.load %arg0[%54, %c0_20, %c0_21] : memref<16x8x128xf32, #tpu.memory_space<vmem>>, vector<1x8x128xf32>
    %56 = vector.shape_cast %55 : vector<1x8x128xf32> to vector<8x128xf32>
    %cst_22 = arith.constant dense<0.000000e+00> : vector<8x128xf32>
    %57 = tpu.matmul %28, %0, %cst_22 {dimension_numbers = #tpu.dot_dimension_numbers<[1], [0], [0], [1], [0, 0, 1, 1], [], []>} : vector<8x32xf32>, vector<32x128xf32>, vector<8x128xf32> -> vector<8x128xf32>
    %58 = arith.addf %56, %57 : vector<8x128xf32>
    %cst_23 = arith.constant 5.000000e-01 : f32
    %59 = vector.broadcast %cst_23 : f32 to vector<8x128xf32>
    %60 = arith.mulf %59, %58 : vector<8x128xf32>
    %61 = math.tanh %60 : vector<8x128xf32>
    %cst_24 = arith.constant 1.000000e+00 : f32
    %62 = vector.broadcast %cst_24 : f32 to vector<8x128xf32>
    %63 = arith.addf %61, %62 : vector<8x128xf32>
    %cst_25 = arith.constant 5.000000e-01 : f32
    %64 = vector.broadcast %cst_25 : f32 to vector<8x128xf32>
    %65 = arith.mulf %64, %63 : vector<8x128xf32>
    %66 = math.tanh %58 : vector<8x128xf32>
    %67 = vector.extract_strided_slice %65 {offsets = [0, 0], sizes = [8, 32], strides = [1, 1]} : vector<8x128xf32> to vector<8x32xf32>
    %68 = vector.extract_strided_slice %65 {offsets = [0, 32], sizes = [8, 32], strides = [1, 1]} : vector<8x128xf32> to vector<8x32xf32>
    %69 = vector.extract_strided_slice %66 {offsets = [0, 64], sizes = [8, 32], strides = [1, 1]} : vector<8x128xf32> to vector<8x32xf32>
    %70 = vector.extract_strided_slice %65 {offsets = [0, 96], sizes = [8, 32], strides = [1, 1]} : vector<8x128xf32> to vector<8x32xf32>
    %71 = arith.mulf %68, %26 : vector<8x32xf32>
    %72 = arith.mulf %67, %69 : vector<8x32xf32>
    %73 = arith.addf %71, %72 : vector<8x32xf32>
    %74 = math.tanh %73 : vector<8x32xf32>
    %75 = arith.mulf %70, %74 : vector<8x32xf32>
    %cst_26 = arith.constant dense<0.000000e+00> : vector<8x128xf32>
    %76 = tpu.matmul %75, %1, %cst_26 {dimension_numbers = #tpu.dot_dimension_numbers<[1], [0], [0], [1], [0, 0, 1, 1], [], []>} : vector<8x32xf32>, vector<32x128xf32>, vector<8x128xf32> -> vector<8x128xf32>
    %cst_27 = arith.constant dense<0.000000e+00> : vector<8x128xf32>
    %77 = tpu.matmul %49, %2, %cst_27 {dimension_numbers = #tpu.dot_dimension_numbers<[1], [0], [0], [1], [0, 0, 1, 1], [], []>} : vector<8x32xf32>, vector<32x128xf32>, vector<8x128xf32> -> vector<8x128xf32>
    %78 = arith.addf %76, %77 : vector<8x128xf32>
    %79 = arith.addf %78, %5 : vector<8x128xf32>
    %cst_28 = arith.constant 5.000000e-01 : f32
    %80 = vector.broadcast %cst_28 : f32 to vector<8x128xf32>
    %81 = arith.mulf %80, %79 : vector<8x128xf32>
    %82 = math.tanh %81 : vector<8x128xf32>
    %cst_29 = arith.constant 1.000000e+00 : f32
    %83 = vector.broadcast %cst_29 : f32 to vector<8x128xf32>
    %84 = arith.addf %82, %83 : vector<8x128xf32>
    %cst_30 = arith.constant 5.000000e-01 : f32
    %85 = vector.broadcast %cst_30 : f32 to vector<8x128xf32>
    %86 = arith.mulf %85, %84 : vector<8x128xf32>
    %87 = math.tanh %79 : vector<8x128xf32>
    %88 = vector.extract_strided_slice %86 {offsets = [0, 0], sizes = [8, 32], strides = [1, 1]} : vector<8x128xf32> to vector<8x32xf32>
    %89 = vector.extract_strided_slice %86 {offsets = [0, 32], sizes = [8, 32], strides = [1, 1]} : vector<8x128xf32> to vector<8x32xf32>
    %90 = vector.extract_strided_slice %87 {offsets = [0, 64], sizes = [8, 32], strides = [1, 1]} : vector<8x128xf32> to vector<8x32xf32>
    %91 = vector.extract_strided_slice %86 {offsets = [0, 96], sizes = [8, 32], strides = [1, 1]} : vector<8x128xf32> to vector<8x32xf32>
    %92 = arith.mulf %89, %47 : vector<8x32xf32>
    %93 = arith.mulf %88, %90 : vector<8x32xf32>
    %94 = arith.addf %92, %93 : vector<8x32xf32>
    %95 = math.tanh %94 : vector<8x32xf32>
    %96 = arith.mulf %91, %95 : vector<8x32xf32>
    %97 = arith.index_cast %c1_i32 : i32 to index
    %c0_31 = arith.constant 0 : index
    %c0_32 = arith.constant 0 : index
    %98 = vector.load %arg5[%97, %c0_31, %c0_32] : memref<16x8x32xf32, #tpu.memory_space<vmem>>, vector<1x8x32xf32>
    %99 = vector.shape_cast %98 : vector<1x8x32xf32> to vector<8x32xf32>
    %100 = vector.shape_cast %96 : vector<8x32xf32> to vector<1x8x32xf32>
    tpu.vector_store %arg5[%97, %c0_31, %c0_32], %100 {strides = array<i32>} : memref<16x8x32xf32, #tpu.memory_space<vmem>>, vector<1x8x32xf32>,
    %c2_i32 = arith.constant 2 : i32
    %101 = arith.index_cast %c2_i32 : i32 to index
    %c0_33 = arith.constant 0 : index
    %c0_34 = arith.constant 0 : index
    %102 = vector.load %arg0[%101, %c0_33, %c0_34] : memref<16x8x128xf32, #tpu.memory_space<vmem>>, vector<1x8x128xf32>
    %103 = vector.shape_cast %102 : vector<1x8x128xf32> to vector<8x128xf32>
    %cst_35 = arith.constant dense<0.000000e+00> : vector<8x128xf32>
    %104 = tpu.matmul %75, %0, %cst_35 {dimension_numbers = #tpu.dot_dimension_numbers<[1], [0], [0], [1], [0, 0, 1, 1], [], []>} : vector<8x32xf32>, vector<32x128xf32>, vector<8x128xf32> -> vector<8x128xf32>
    %105 = arith.addf %103, %104 : vector<8x128xf32>
    %cst_36 = arith.constant 5.000000e-01 : f32
    %106 = vector.broadcast %cst_36 : f32 to vector<8x128xf32>
    %107 = arith.mulf %106, %105 : vector<8x128xf32>
    %108 = math.tanh %107 : vector<8x128xf32>
    %cst_37 = arith.constant 1.000000e+00 : f32
    %109 = vector.broadcast %cst_37 : f32 to vector<8x128xf32>
    %110 = arith.addf %108, %109 : vector<8x128xf32>
    %cst_38 = arith.constant 5.000000e-01 : f32
    %111 = vector.broadcast %cst_38 : f32 to vector<8x128xf32>
    %112 = arith.mulf %111, %110 : vector<8x128xf32>
    %113 = math.tanh %105 : vector<8x128xf32>
    %114 = vector.extract_strided_slice %112 {offsets = [0, 0], sizes = [8, 32], strides = [1, 1]} : vector<8x128xf32> to vector<8x32xf32>
    %115 = vector.extract_strided_slice %112 {offsets = [0, 32], sizes = [8, 32], strides = [1, 1]} : vector<8x128xf32> to vector<8x32xf32>
    %116 = vector.extract_strided_slice %113 {offsets = [0, 64], sizes = [8, 32], strides = [1, 1]} : vector<8x128xf32> to vector<8x32xf32>
    %117 = vector.extract_strided_slice %112 {offsets = [0, 96], sizes = [8, 32], strides = [1, 1]} : vector<8x128xf32> to vector<8x32xf32>
    %118 = arith.mulf %115, %73 : vector<8x32xf32>
    %119 = arith.mulf %114, %116 : vector<8x32xf32>
    %120 = arith.addf %118, %119 : vector<8x32xf32>
    %121 = math.tanh %120 : vector<8x32xf32>
    %122 = arith.mulf %117, %121 : vector<8x32xf32>
    %cst_39 = arith.constant dense<0.000000e+00> : vector<8x128xf32>
    %123 = tpu.matmul %122, %1, %cst_39 {dimension_numbers = #tpu.dot_dimension_numbers<[1], [0], [0], [1], [0, 0, 1, 1], [], []>} : vector<8x32xf32>, vector<32x128xf32>, vector<8x128xf32> -> vector<8x128xf32>
    %cst_40 = arith.constant dense<0.000000e+00> : vector<8x128xf32>
    %124 = tpu.matmul %96, %2, %cst_40 {dimension_numbers = #tpu.dot_dimension_numbers<[1], [0], [0], [1], [0, 0, 1, 1], [], []>} : vector<8x32xf32>, vector<32x128xf32>, vector<8x128xf32> -> vector<8x128xf32>
    %125 = arith.addf %123, %124 : vector<8x128xf32>
    %126 = arith.addf %125, %5 : vector<8x128xf32>
    %cst_41 = arith.constant 5.000000e-01 : f32
    %127 = vector.broadcast %cst_41 : f32 to vector<8x128xf32>
    %128 = arith.mulf %127, %126 : vector<8x128xf32>
    %129 = math.tanh %128 : vector<8x128xf32>
    %cst_42 = arith.constant 1.000000e+00 : f32
    %130 = vector.broadcast %cst_42 : f32 to vector<8x128xf32>
    %131 = arith.addf %129, %130 : vector<8x128xf32>
    %cst_43 = arith.constant 5.000000e-01 : f32
    %132 = vector.broadcast %cst_43 : f32 to vector<8x128xf32>
    %133 = arith.mulf %132, %131 : vector<8x128xf32>
    %134 = math.tanh %126 : vector<8x128xf32>
    %135 = vector.extract_strided_slice %133 {offsets = [0, 0], sizes = [8, 32], strides = [1, 1]} : vector<8x128xf32> to vector<8x32xf32>
    %136 = vector.extract_strided_slice %133 {offsets = [0, 32], sizes = [8, 32], strides = [1, 1]} : vector<8x128xf32> to vector<8x32xf32>
    %137 = vector.extract_strided_slice %134 {offsets = [0, 64], sizes = [8, 32], strides = [1, 1]} : vector<8x128xf32> to vector<8x32xf32>
    %138 = vector.extract_strided_slice %133 {offsets = [0, 96], sizes = [8, 32], strides = [1, 1]} : vector<8x128xf32> to vector<8x32xf32>
    %139 = arith.mulf %136, %94 : vector<8x32xf32>
    %140 = arith.mulf %135, %137 : vector<8x32xf32>
    %141 = arith.addf %139, %140 : vector<8x32xf32>
    %142 = math.tanh %141 : vector<8x32xf32>
    %143 = arith.mulf %138, %142 : vector<8x32xf32>
    %144 = arith.index_cast %c2_i32 : i32 to index
    %c0_44 = arith.constant 0 : index
    %c0_45 = arith.constant 0 : index
    %145 = vector.load %arg5[%144, %c0_44, %c0_45] : memref<16x8x32xf32, #tpu.memory_space<vmem>>, vector<1x8x32xf32>
    %146 = vector.shape_cast %145 : vector<1x8x32xf32> to vector<8x32xf32>
    %147 = vector.shape_cast %143 : vector<8x32xf32> to vector<1x8x32xf32>
    tpu.vector_store %arg5[%144, %c0_44, %c0_45], %147 {strides = array<i32>} : memref<16x8x32xf32, #tpu.memory_space<vmem>>, vector<1x8x32xf32>,
    %c3_i32 = arith.constant 3 : i32
    %148 = arith.index_cast %c3_i32 : i32 to index
    %c0_46 = arith.constant 0 : index
    %c0_47 = arith.constant 0 : index
    %149 = vector.load %arg0[%148, %c0_46, %c0_47] : memref<16x8x128xf32, #tpu.memory_space<vmem>>, vector<1x8x128xf32>
    %150 = vector.shape_cast %149 : vector<1x8x128xf32> to vector<8x128xf32>
    %cst_48 = arith.constant dense<0.000000e+00> : vector<8x128xf32>
    %151 = tpu.matmul %122, %0, %cst_48 {dimension_numbers = #tpu.dot_dimension_numbers<[1], [0], [0], [1], [0, 0, 1, 1], [], []>} : vector<8x32xf32>, vector<32x128xf32>, vector<8x128xf32> -> vector<8x128xf32>
    %152 = arith.addf %150, %151 : vector<8x128xf32>
    %cst_49 = arith.constant 5.000000e-01 : f32
    %153 = vector.broadcast %cst_49 : f32 to vector<8x128xf32>
    %154 = arith.mulf %153, %152 : vector<8x128xf32>
    %155 = math.tanh %154 : vector<8x128xf32>
    %cst_50 = arith.constant 1.000000e+00 : f32
    %156 = vector.broadcast %cst_50 : f32 to vector<8x128xf32>
    %157 = arith.addf %155, %156 : vector<8x128xf32>
    %cst_51 = arith.constant 5.000000e-01 : f32
    %158 = vector.broadcast %cst_51 : f32 to vector<8x128xf32>
    %159 = arith.mulf %158, %157 : vector<8x128xf32>
    %160 = math.tanh %152 : vector<8x128xf32>
    %161 = vector.extract_strided_slice %159 {offsets = [0, 0], sizes = [8, 32], strides = [1, 1]} : vector<8x128xf32> to vector<8x32xf32>
    %162 = vector.extract_strided_slice %159 {offsets = [0, 32], sizes = [8, 32], strides = [1, 1]} : vector<8x128xf32> to vector<8x32xf32>
    %163 = vector.extract_strided_slice %160 {offsets = [0, 64], sizes = [8, 32], strides = [1, 1]} : vector<8x128xf32> to vector<8x32xf32>
    %164 = vector.extract_strided_slice %159 {offsets = [0, 96], sizes = [8, 32], strides = [1, 1]} : vector<8x128xf32> to vector<8x32xf32>
    %165 = arith.mulf %162, %120 : vector<8x32xf32>
    %166 = arith.mulf %161, %163 : vector<8x32xf32>
    %167 = arith.addf %165, %166 : vector<8x32xf32>
    %168 = math.tanh %167 : vector<8x32xf32>
    %169 = arith.mulf %164, %168 : vector<8x32xf32>
    %cst_52 = arith.constant dense<0.000000e+00> : vector<8x128xf32>
    %170 = tpu.matmul %169, %1, %cst_52 {dimension_numbers = #tpu.dot_dimension_numbers<[1], [0], [0], [1], [0, 0, 1, 1], [], []>} : vector<8x32xf32>, vector<32x128xf32>, vector<8x128xf32> -> vector<8x128xf32>
    %cst_53 = arith.constant dense<0.000000e+00> : vector<8x128xf32>
    %171 = tpu.matmul %143, %2, %cst_53 {dimension_numbers = #tpu.dot_dimension_numbers<[1], [0], [0], [1], [0, 0, 1, 1], [], []>} : vector<8x32xf32>, vector<32x128xf32>, vector<8x128xf32> -> vector<8x128xf32>
    %172 = arith.addf %170, %171 : vector<8x128xf32>
    %173 = arith.addf %172, %5 : vector<8x128xf32>
    %cst_54 = arith.constant 5.000000e-01 : f32
    %174 = vector.broadcast %cst_54 : f32 to vector<8x128xf32>
    %175 = arith.mulf %174, %173 : vector<8x128xf32>
    %176 = math.tanh %175 : vector<8x128xf32>
    %cst_55 = arith.constant 1.000000e+00 : f32
    %177 = vector.broadcast %cst_55 : f32 to vector<8x128xf32>
    %178 = arith.addf %176, %177 : vector<8x128xf32>
    %cst_56 = arith.constant 5.000000e-01 : f32
    %179 = vector.broadcast %cst_56 : f32 to vector<8x128xf32>
    %180 = arith.mulf %179, %178 : vector<8x128xf32>
    %181 = math.tanh %173 : vector<8x128xf32>
    %182 = vector.extract_strided_slice %180 {offsets = [0, 0], sizes = [8, 32], strides = [1, 1]} : vector<8x128xf32> to vector<8x32xf32>
    %183 = vector.extract_strided_slice %180 {offsets = [0, 32], sizes = [8, 32], strides = [1, 1]} : vector<8x128xf32> to vector<8x32xf32>
    %184 = vector.extract_strided_slice %181 {offsets = [0, 64], sizes = [8, 32], strides = [1, 1]} : vector<8x128xf32> to vector<8x32xf32>
    %185 = vector.extract_strided_slice %180 {offsets = [0, 96], sizes = [8, 32], strides = [1, 1]} : vector<8x128xf32> to vector<8x32xf32>
    %186 = arith.mulf %183, %141 : vector<8x32xf32>
    %187 = arith.mulf %182, %184 : vector<8x32xf32>
    %188 = arith.addf %186, %187 : vector<8x32xf32>
    %189 = math.tanh %188 : vector<8x32xf32>
    %190 = arith.mulf %185, %189 : vector<8x32xf32>
    %191 = arith.index_cast %c3_i32 : i32 to index
    %c0_57 = arith.constant 0 : index
    %c0_58 = arith.constant 0 : index
    %192 = vector.load %arg5[%191, %c0_57, %c0_58] : memref<16x8x32xf32, #tpu.memory_space<vmem>>, vector<1x8x32xf32>
    %193 = vector.shape_cast %192 : vector<1x8x32xf32> to vector<8x32xf32>
    %194 = vector.shape_cast %190 : vector<8x32xf32> to vector<1x8x32xf32>
    tpu.vector_store %arg5[%191, %c0_57, %c0_58], %194 {strides = array<i32>} : memref<16x8x32xf32, #tpu.memory_space<vmem>>, vector<1x8x32xf32>,
    %c4_i32 = arith.constant 4 : i32
    %195 = arith.index_cast %c4_i32 : i32 to index
    %c0_59 = arith.constant 0 : index
    %c0_60 = arith.constant 0 : index
    %196 = vector.load %arg0[%195, %c0_59, %c0_60] : memref<16x8x128xf32, #tpu.memory_space<vmem>>, vector<1x8x128xf32>
    %197 = vector.shape_cast %196 : vector<1x8x128xf32> to vector<8x128xf32>
    %cst_61 = arith.constant dense<0.000000e+00> : vector<8x128xf32>
    %198 = tpu.matmul %169, %0, %cst_61 {dimension_numbers = #tpu.dot_dimension_numbers<[1], [0], [0], [1], [0, 0, 1, 1], [], []>} : vector<8x32xf32>, vector<32x128xf32>, vector<8x128xf32> -> vector<8x128xf32>
    %199 = arith.addf %197, %198 : vector<8x128xf32>
    %cst_62 = arith.constant 5.000000e-01 : f32
    %200 = vector.broadcast %cst_62 : f32 to vector<8x128xf32>
    %201 = arith.mulf %200, %199 : vector<8x128xf32>
    %202 = math.tanh %201 : vector<8x128xf32>
    %cst_63 = arith.constant 1.000000e+00 : f32
    %203 = vector.broadcast %cst_63 : f32 to vector<8x128xf32>
    %204 = arith.addf %202, %203 : vector<8x128xf32>
    %cst_64 = arith.constant 5.000000e-01 : f32
    %205 = vector.broadcast %cst_64 : f32 to vector<8x128xf32>
    %206 = arith.mulf %205, %204 : vector<8x128xf32>
    %207 = math.tanh %199 : vector<8x128xf32>
    %208 = vector.extract_strided_slice %206 {offsets = [0, 0], sizes = [8, 32], strides = [1, 1]} : vector<8x128xf32> to vector<8x32xf32>
    %209 = vector.extract_strided_slice %206 {offsets = [0, 32], sizes = [8, 32], strides = [1, 1]} : vector<8x128xf32> to vector<8x32xf32>
    %210 = vector.extract_strided_slice %207 {offsets = [0, 64], sizes = [8, 32], strides = [1, 1]} : vector<8x128xf32> to vector<8x32xf32>
    %211 = vector.extract_strided_slice %206 {offsets = [0, 96], sizes = [8, 32], strides = [1, 1]} : vector<8x128xf32> to vector<8x32xf32>
    %212 = arith.mulf %209, %167 : vector<8x32xf32>
    %213 = arith.mulf %208, %210 : vector<8x32xf32>
    %214 = arith.addf %212, %213 : vector<8x32xf32>
    %215 = math.tanh %214 : vector<8x32xf32>
    %216 = arith.mulf %211, %215 : vector<8x32xf32>
    %cst_65 = arith.constant dense<0.000000e+00> : vector<8x128xf32>
    %217 = tpu.matmul %216, %1, %cst_65 {dimension_numbers = #tpu.dot_dimension_numbers<[1], [0], [0], [1], [0, 0, 1, 1], [], []>} : vector<8x32xf32>, vector<32x128xf32>, vector<8x128xf32> -> vector<8x128xf32>
    %cst_66 = arith.constant dense<0.000000e+00> : vector<8x128xf32>
    %218 = tpu.matmul %190, %2, %cst_66 {dimension_numbers = #tpu.dot_dimension_numbers<[1], [0], [0], [1], [0, 0, 1, 1], [], []>} : vector<8x32xf32>, vector<32x128xf32>, vector<8x128xf32> -> vector<8x128xf32>
    %219 = arith.addf %217, %218 : vector<8x128xf32>
    %220 = arith.addf %219, %5 : vector<8x128xf32>
    %cst_67 = arith.constant 5.000000e-01 : f32
    %221 = vector.broadcast %cst_67 : f32 to vector<8x128xf32>
    %222 = arith.mulf %221, %220 : vector<8x128xf32>
    %223 = math.tanh %222 : vector<8x128xf32>
    %cst_68 = arith.constant 1.000000e+00 : f32
    %224 = vector.broadcast %cst_68 : f32 to vector<8x128xf32>
    %225 = arith.addf %223, %224 : vector<8x128xf32>
    %cst_69 = arith.constant 5.000000e-01 : f32
    %226 = vector.broadcast %cst_69 : f32 to vector<8x128xf32>
    %227 = arith.mulf %226, %225 : vector<8x128xf32>
    %228 = math.tanh %220 : vector<8x128xf32>
    %229 = vector.extract_strided_slice %227 {offsets = [0, 0], sizes = [8, 32], strides = [1, 1]} : vector<8x128xf32> to vector<8x32xf32>
    %230 = vector.extract_strided_slice %227 {offsets = [0, 32], sizes = [8, 32], strides = [1, 1]} : vector<8x128xf32> to vector<8x32xf32>
    %231 = vector.extract_strided_slice %228 {offsets = [0, 64], sizes = [8, 32], strides = [1, 1]} : vector<8x128xf32> to vector<8x32xf32>
    %232 = vector.extract_strided_slice %227 {offsets = [0, 96], sizes = [8, 32], strides = [1, 1]} : vector<8x128xf32> to vector<8x32xf32>
    %233 = arith.mulf %230, %188 : vector<8x32xf32>
    %234 = arith.mulf %229, %231 : vector<8x32xf32>
    %235 = arith.addf %233, %234 : vector<8x32xf32>
    %236 = math.tanh %235 : vector<8x32xf32>
    %237 = arith.mulf %232, %236 : vector<8x32xf32>
    %238 = arith.index_cast %c4_i32 : i32 to index
    %c0_70 = arith.constant 0 : index
    %c0_71 = arith.constant 0 : index
    %239 = vector.load %arg5[%238, %c0_70, %c0_71] : memref<16x8x32xf32, #tpu.memory_space<vmem>>, vector<1x8x32xf32>
    %240 = vector.shape_cast %239 : vector<1x8x32xf32> to vector<8x32xf32>
    %241 = vector.shape_cast %237 : vector<8x32xf32> to vector<1x8x32xf32>
    tpu.vector_store %arg5[%238, %c0_70, %c0_71], %241 {strides = array<i32>} : memref<16x8x32xf32, #tpu.memory_space<vmem>>, vector<1x8x32xf32>,
    %c5_i32 = arith.constant 5 : i32
    %242 = arith.index_cast %c5_i32 : i32 to index
    %c0_72 = arith.constant 0 : index
    %c0_73 = arith.constant 0 : index
    %243 = vector.load %arg0[%242, %c0_72, %c0_73] : memref<16x8x128xf32, #tpu.memory_space<vmem>>, vector<1x8x128xf32>
    %244 = vector.shape_cast %243 : vector<1x8x128xf32> to vector<8x128xf32>
    %cst_74 = arith.constant dense<0.000000e+00> : vector<8x128xf32>
    %245 = tpu.matmul %216, %0, %cst_74 {dimension_numbers = #tpu.dot_dimension_numbers<[1], [0], [0], [1], [0, 0, 1, 1], [], []>} : vector<8x32xf32>, vector<32x128xf32>, vector<8x128xf32> -> vector<8x128xf32>
    %246 = arith.addf %244, %245 : vector<8x128xf32>
    %cst_75 = arith.constant 5.000000e-01 : f32
    %247 = vector.broadcast %cst_75 : f32 to vector<8x128xf32>
    %248 = arith.mulf %247, %246 : vector<8x128xf32>
    %249 = math.tanh %248 : vector<8x128xf32>
    %cst_76 = arith.constant 1.000000e+00 : f32
    %250 = vector.broadcast %cst_76 : f32 to vector<8x128xf32>
    %251 = arith.addf %249, %250 : vector<8x128xf32>
    %cst_77 = arith.constant 5.000000e-01 : f32
    %252 = vector.broadcast %cst_77 : f32 to vector<8x128xf32>
    %253 = arith.mulf %252, %251 : vector<8x128xf32>
    %254 = math.tanh %246 : vector<8x128xf32>
    %255 = vector.extract_strided_slice %253 {offsets = [0, 0], sizes = [8, 32], strides = [1, 1]} : vector<8x128xf32> to vector<8x32xf32>
    %256 = vector.extract_strided_slice %253 {offsets = [0, 32], sizes = [8, 32], strides = [1, 1]} : vector<8x128xf32> to vector<8x32xf32>
    %257 = vector.extract_strided_slice %254 {offsets = [0, 64], sizes = [8, 32], strides = [1, 1]} : vector<8x128xf32> to vector<8x32xf32>
    %258 = vector.extract_strided_slice %253 {offsets = [0, 96], sizes = [8, 32], strides = [1, 1]} : vector<8x128xf32> to vector<8x32xf32>
    %259 = arith.mulf %256, %214 : vector<8x32xf32>
    %260 = arith.mulf %255, %257 : vector<8x32xf32>
    %261 = arith.addf %259, %260 : vector<8x32xf32>
    %262 = math.tanh %261 : vector<8x32xf32>
    %263 = arith.mulf %258, %262 : vector<8x32xf32>
    %cst_78 = arith.constant dense<0.000000e+00> : vector<8x128xf32>
    %264 = tpu.matmul %263, %1, %cst_78 {dimension_numbers = #tpu.dot_dimension_numbers<[1], [0], [0], [1], [0, 0, 1, 1], [], []>} : vector<8x32xf32>, vector<32x128xf32>, vector<8x128xf32> -> vector<8x128xf32>
    %cst_79 = arith.constant dense<0.000000e+00> : vector<8x128xf32>
    %265 = tpu.matmul %237, %2, %cst_79 {dimension_numbers = #tpu.dot_dimension_numbers<[1], [0], [0], [1], [0, 0, 1, 1], [], []>} : vector<8x32xf32>, vector<32x128xf32>, vector<8x128xf32> -> vector<8x128xf32>
    %266 = arith.addf %264, %265 : vector<8x128xf32>
    %267 = arith.addf %266, %5 : vector<8x128xf32>
    %cst_80 = arith.constant 5.000000e-01 : f32
    %268 = vector.broadcast %cst_80 : f32 to vector<8x128xf32>
    %269 = arith.mulf %268, %267 : vector<8x128xf32>
    %270 = math.tanh %269 : vector<8x128xf32>
    %cst_81 = arith.constant 1.000000e+00 : f32
    %271 = vector.broadcast %cst_81 : f32 to vector<8x128xf32>
    %272 = arith.addf %270, %271 : vector<8x128xf32>
    %cst_82 = arith.constant 5.000000e-01 : f32
    %273 = vector.broadcast %cst_82 : f32 to vector<8x128xf32>
    %274 = arith.mulf %273, %272 : vector<8x128xf32>
    %275 = math.tanh %267 : vector<8x128xf32>
    %276 = vector.extract_strided_slice %274 {offsets = [0, 0], sizes = [8, 32], strides = [1, 1]} : vector<8x128xf32> to vector<8x32xf32>
    %277 = vector.extract_strided_slice %274 {offsets = [0, 32], sizes = [8, 32], strides = [1, 1]} : vector<8x128xf32> to vector<8x32xf32>
    %278 = vector.extract_strided_slice %275 {offsets = [0, 64], sizes = [8, 32], strides = [1, 1]} : vector<8x128xf32> to vector<8x32xf32>
    %279 = vector.extract_strided_slice %274 {offsets = [0, 96], sizes = [8, 32], strides = [1, 1]} : vector<8x128xf32> to vector<8x32xf32>
    %280 = arith.mulf %277, %235 : vector<8x32xf32>
    %281 = arith.mulf %276, %278 : vector<8x32xf32>
    %282 = arith.addf %280, %281 : vector<8x32xf32>
    %283 = math.tanh %282 : vector<8x32xf32>
    %284 = arith.mulf %279, %283 : vector<8x32xf32>
    %285 = arith.index_cast %c5_i32 : i32 to index
    %c0_83 = arith.constant 0 : index
    %c0_84 = arith.constant 0 : index
    %286 = vector.load %arg5[%285, %c0_83, %c0_84] : memref<16x8x32xf32, #tpu.memory_space<vmem>>, vector<1x8x32xf32>
    %287 = vector.shape_cast %286 : vector<1x8x32xf32> to vector<8x32xf32>
    %288 = vector.shape_cast %284 : vector<8x32xf32> to vector<1x8x32xf32>
    tpu.vector_store %arg5[%285, %c0_83, %c0_84], %288 {strides = array<i32>} : memref<16x8x32xf32, #tpu.memory_space<vmem>>, vector<1x8x32xf32>,
    %c6_i32 = arith.constant 6 : i32
    %289 = arith.index_cast %c6_i32 : i32 to index
    %c0_85 = arith.constant 0 : index
    %c0_86 = arith.constant 0 : index
    %290 = vector.load %arg0[%289, %c0_85, %c0_86] : memref<16x8x128xf32, #tpu.memory_space<vmem>>, vector<1x8x128xf32>
    %291 = vector.shape_cast %290 : vector<1x8x128xf32> to vector<8x128xf32>
    %cst_87 = arith.constant dense<0.000000e+00> : vector<8x128xf32>
    %292 = tpu.matmul %263, %0, %cst_87 {dimension_numbers = #tpu.dot_dimension_numbers<[1], [0], [0], [1], [0, 0, 1, 1], [], []>} : vector<8x32xf32>, vector<32x128xf32>, vector<8x128xf32> -> vector<8x128xf32>
    %293 = arith.addf %291, %292 : vector<8x128xf32>
    %cst_88 = arith.constant 5.000000e-01 : f32
    %294 = vector.broadcast %cst_88 : f32 to vector<8x128xf32>
    %295 = arith.mulf %294, %293 : vector<8x128xf32>
    %296 = math.tanh %295 : vector<8x128xf32>
    %cst_89 = arith.constant 1.000000e+00 : f32
    %297 = vector.broadcast %cst_89 : f32 to vector<8x128xf32>
    %298 = arith.addf %296, %297 : vector<8x128xf32>
    %cst_90 = arith.constant 5.000000e-01 : f32
    %299 = vector.broadcast %cst_90 : f32 to vector<8x128xf32>
    %300 = arith.mulf %299, %298 : vector<8x128xf32>
    %301 = math.tanh %293 : vector<8x128xf32>
    %302 = vector.extract_strided_slice %300 {offsets = [0, 0], sizes = [8, 32], strides = [1, 1]} : vector<8x128xf32> to vector<8x32xf32>
    %303 = vector.extract_strided_slice %300 {offsets = [0, 32], sizes = [8, 32], strides = [1, 1]} : vector<8x128xf32> to vector<8x32xf32>
    %304 = vector.extract_strided_slice %301 {offsets = [0, 64], sizes = [8, 32], strides = [1, 1]} : vector<8x128xf32> to vector<8x32xf32>
    %305 = vector.extract_strided_slice %300 {offsets = [0, 96], sizes = [8, 32], strides = [1, 1]} : vector<8x128xf32> to vector<8x32xf32>
    %306 = arith.mulf %303, %261 : vector<8x32xf32>
    %307 = arith.mulf %302, %304 : vector<8x32xf32>
    %308 = arith.addf %306, %307 : vector<8x32xf32>
    %309 = math.tanh %308 : vector<8x32xf32>
    %310 = arith.mulf %305, %309 : vector<8x32xf32>
    %cst_91 = arith.constant dense<0.000000e+00> : vector<8x128xf32>
    %311 = tpu.matmul %310, %1, %cst_91 {dimension_numbers = #tpu.dot_dimension_numbers<[1], [0], [0], [1], [0, 0, 1, 1], [], []>} : vector<8x32xf32>, vector<32x128xf32>, vector<8x128xf32> -> vector<8x128xf32>
    %cst_92 = arith.constant dense<0.000000e+00> : vector<8x128xf32>
    %312 = tpu.matmul %284, %2, %cst_92 {dimension_numbers = #tpu.dot_dimension_numbers<[1], [0], [0], [1], [0, 0, 1, 1], [], []>} : vector<8x32xf32>, vector<32x128xf32>, vector<8x128xf32> -> vector<8x128xf32>
    %313 = arith.addf %311, %312 : vector<8x128xf32>
    %314 = arith.addf %313, %5 : vector<8x128xf32>
    %cst_93 = arith.constant 5.000000e-01 : f32
    %315 = vector.broadcast %cst_93 : f32 to vector<8x128xf32>
    %316 = arith.mulf %315, %314 : vector<8x128xf32>
    %317 = math.tanh %316 : vector<8x128xf32>
    %cst_94 = arith.constant 1.000000e+00 : f32
    %318 = vector.broadcast %cst_94 : f32 to vector<8x128xf32>
    %319 = arith.addf %317, %318 : vector<8x128xf32>
    %cst_95 = arith.constant 5.000000e-01 : f32
    %320 = vector.broadcast %cst_95 : f32 to vector<8x128xf32>
    %321 = arith.mulf %320, %319 : vector<8x128xf32>
    %322 = math.tanh %314 : vector<8x128xf32>
    %323 = vector.extract_strided_slice %321 {offsets = [0, 0], sizes = [8, 32], strides = [1, 1]} : vector<8x128xf32> to vector<8x32xf32>
    %324 = vector.extract_strided_slice %321 {offsets = [0, 32], sizes = [8, 32], strides = [1, 1]} : vector<8x128xf32> to vector<8x32xf32>
    %325 = vector.extract_strided_slice %322 {offsets = [0, 64], sizes = [8, 32], strides = [1, 1]} : vector<8x128xf32> to vector<8x32xf32>
    %326 = vector.extract_strided_slice %321 {offsets = [0, 96], sizes = [8, 32], strides = [1, 1]} : vector<8x128xf32> to vector<8x32xf32>
    %327 = arith.mulf %324, %282 : vector<8x32xf32>
    %328 = arith.mulf %323, %325 : vector<8x32xf32>
    %329 = arith.addf %327, %328 : vector<8x32xf32>
    %330 = math.tanh %329 : vector<8x32xf32>
    %331 = arith.mulf %326, %330 : vector<8x32xf32>
    %332 = arith.index_cast %c6_i32 : i32 to index
    %c0_96 = arith.constant 0 : index
    %c0_97 = arith.constant 0 : index
    %333 = vector.load %arg5[%332, %c0_96, %c0_97] : memref<16x8x32xf32, #tpu.memory_space<vmem>>, vector<1x8x32xf32>
    %334 = vector.shape_cast %333 : vector<1x8x32xf32> to vector<8x32xf32>
    %335 = vector.shape_cast %331 : vector<8x32xf32> to vector<1x8x32xf32>
    tpu.vector_store %arg5[%332, %c0_96, %c0_97], %335 {strides = array<i32>} : memref<16x8x32xf32, #tpu.memory_space<vmem>>, vector<1x8x32xf32>,
    %c7_i32 = arith.constant 7 : i32
    %336 = arith.index_cast %c7_i32 : i32 to index
    %c0_98 = arith.constant 0 : index
    %c0_99 = arith.constant 0 : index
    %337 = vector.load %arg0[%336, %c0_98, %c0_99] : memref<16x8x128xf32, #tpu.memory_space<vmem>>, vector<1x8x128xf32>
    %338 = vector.shape_cast %337 : vector<1x8x128xf32> to vector<8x128xf32>
    %cst_100 = arith.constant dense<0.000000e+00> : vector<8x128xf32>
    %339 = tpu.matmul %310, %0, %cst_100 {dimension_numbers = #tpu.dot_dimension_numbers<[1], [0], [0], [1], [0, 0, 1, 1], [], []>} : vector<8x32xf32>, vector<32x128xf32>, vector<8x128xf32> -> vector<8x128xf32>
    %340 = arith.addf %338, %339 : vector<8x128xf32>
    %cst_101 = arith.constant 5.000000e-01 : f32
    %341 = vector.broadcast %cst_101 : f32 to vector<8x128xf32>
    %342 = arith.mulf %341, %340 : vector<8x128xf32>
    %343 = math.tanh %342 : vector<8x128xf32>
    %cst_102 = arith.constant 1.000000e+00 : f32
    %344 = vector.broadcast %cst_102 : f32 to vector<8x128xf32>
    %345 = arith.addf %343, %344 : vector<8x128xf32>
    %cst_103 = arith.constant 5.000000e-01 : f32
    %346 = vector.broadcast %cst_103 : f32 to vector<8x128xf32>
    %347 = arith.mulf %346, %345 : vector<8x128xf32>
    %348 = math.tanh %340 : vector<8x128xf32>
    %349 = vector.extract_strided_slice %347 {offsets = [0, 0], sizes = [8, 32], strides = [1, 1]} : vector<8x128xf32> to vector<8x32xf32>
    %350 = vector.extract_strided_slice %347 {offsets = [0, 32], sizes = [8, 32], strides = [1, 1]} : vector<8x128xf32> to vector<8x32xf32>
    %351 = vector.extract_strided_slice %348 {offsets = [0, 64], sizes = [8, 32], strides = [1, 1]} : vector<8x128xf32> to vector<8x32xf32>
    %352 = vector.extract_strided_slice %347 {offsets = [0, 96], sizes = [8, 32], strides = [1, 1]} : vector<8x128xf32> to vector<8x32xf32>
    %353 = arith.mulf %350, %308 : vector<8x32xf32>
    %354 = arith.mulf %349, %351 : vector<8x32xf32>
    %355 = arith.addf %353, %354 : vector<8x32xf32>
    %356 = math.tanh %355 : vector<8x32xf32>
    %357 = arith.mulf %352, %356 : vector<8x32xf32>
    %cst_104 = arith.constant dense<0.000000e+00> : vector<8x128xf32>
    %358 = tpu.matmul %357, %1, %cst_104 {dimension_numbers = #tpu.dot_dimension_numbers<[1], [0], [0], [1], [0, 0, 1, 1], [], []>} : vector<8x32xf32>, vector<32x128xf32>, vector<8x128xf32> -> vector<8x128xf32>
    %cst_105 = arith.constant dense<0.000000e+00> : vector<8x128xf32>
    %359 = tpu.matmul %331, %2, %cst_105 {dimension_numbers = #tpu.dot_dimension_numbers<[1], [0], [0], [1], [0, 0, 1, 1], [], []>} : vector<8x32xf32>, vector<32x128xf32>, vector<8x128xf32> -> vector<8x128xf32>
    %360 = arith.addf %358, %359 : vector<8x128xf32>
    %361 = arith.addf %360, %5 : vector<8x128xf32>
    %cst_106 = arith.constant 5.000000e-01 : f32
    %362 = vector.broadcast %cst_106 : f32 to vector<8x128xf32>
    %363 = arith.mulf %362, %361 : vector<8x128xf32>
    %364 = math.tanh %363 : vector<8x128xf32>
    %cst_107 = arith.constant 1.000000e+00 : f32
    %365 = vector.broadcast %cst_107 : f32 to vector<8x128xf32>
    %366 = arith.addf %364, %365 : vector<8x128xf32>
    %cst_108 = arith.constant 5.000000e-01 : f32
    %367 = vector.broadcast %cst_108 : f32 to vector<8x128xf32>
    %368 = arith.mulf %367, %366 : vector<8x128xf32>
    %369 = math.tanh %361 : vector<8x128xf32>
    %370 = vector.extract_strided_slice %368 {offsets = [0, 0], sizes = [8, 32], strides = [1, 1]} : vector<8x128xf32> to vector<8x32xf32>
    %371 = vector.extract_strided_slice %368 {offsets = [0, 32], sizes = [8, 32], strides = [1, 1]} : vector<8x128xf32> to vector<8x32xf32>
    %372 = vector.extract_strided_slice %369 {offsets = [0, 64], sizes = [8, 32], strides = [1, 1]} : vector<8x128xf32> to vector<8x32xf32>
    %373 = vector.extract_strided_slice %368 {offsets = [0, 96], sizes = [8, 32], strides = [1, 1]} : vector<8x128xf32> to vector<8x32xf32>
    %374 = arith.mulf %371, %329 : vector<8x32xf32>
    %375 = arith.mulf %370, %372 : vector<8x32xf32>
    %376 = arith.addf %374, %375 : vector<8x32xf32>
    %377 = math.tanh %376 : vector<8x32xf32>
    %378 = arith.mulf %373, %377 : vector<8x32xf32>
    %379 = arith.index_cast %c7_i32 : i32 to index
    %c0_109 = arith.constant 0 : index
    %c0_110 = arith.constant 0 : index
    %380 = vector.load %arg5[%379, %c0_109, %c0_110] : memref<16x8x32xf32, #tpu.memory_space<vmem>>, vector<1x8x32xf32>
    %381 = vector.shape_cast %380 : vector<1x8x32xf32> to vector<8x32xf32>
    %382 = vector.shape_cast %378 : vector<8x32xf32> to vector<1x8x32xf32>
    tpu.vector_store %arg5[%379, %c0_109, %c0_110], %382 {strides = array<i32>} : memref<16x8x32xf32, #tpu.memory_space<vmem>>, vector<1x8x32xf32>,
    %c8_i32 = arith.constant 8 : i32
    %383 = arith.index_cast %c8_i32 : i32 to index
    %c0_111 = arith.constant 0 : index
    %c0_112 = arith.constant 0 : index
    %384 = vector.load %arg0[%383, %c0_111, %c0_112] : memref<16x8x128xf32, #tpu.memory_space<vmem>>, vector<1x8x128xf32>
    %385 = vector.shape_cast %384 : vector<1x8x128xf32> to vector<8x128xf32>
    %cst_113 = arith.constant dense<0.000000e+00> : vector<8x128xf32>
    %386 = tpu.matmul %357, %0, %cst_113 {dimension_numbers = #tpu.dot_dimension_numbers<[1], [0], [0], [1], [0, 0, 1, 1], [], []>} : vector<8x32xf32>, vector<32x128xf32>, vector<8x128xf32> -> vector<8x128xf32>
    %387 = arith.addf %385, %386 : vector<8x128xf32>
    %cst_114 = arith.constant 5.000000e-01 : f32
    %388 = vector.broadcast %cst_114 : f32 to vector<8x128xf32>
    %389 = arith.mulf %388, %387 : vector<8x128xf32>
    %390 = math.tanh %389 : vector<8x128xf32>
    %cst_115 = arith.constant 1.000000e+00 : f32
    %391 = vector.broadcast %cst_115 : f32 to vector<8x128xf32>
    %392 = arith.addf %390, %391 : vector<8x128xf32>
    %cst_116 = arith.constant 5.000000e-01 : f32
    %393 = vector.broadcast %cst_116 : f32 to vector<8x128xf32>
    %394 = arith.mulf %393, %392 : vector<8x128xf32>
    %395 = math.tanh %387 : vector<8x128xf32>
    %396 = vector.extract_strided_slice %394 {offsets = [0, 0], sizes = [8, 32], strides = [1, 1]} : vector<8x128xf32> to vector<8x32xf32>
    %397 = vector.extract_strided_slice %394 {offsets = [0, 32], sizes = [8, 32], strides = [1, 1]} : vector<8x128xf32> to vector<8x32xf32>
    %398 = vector.extract_strided_slice %395 {offsets = [0, 64], sizes = [8, 32], strides = [1, 1]} : vector<8x128xf32> to vector<8x32xf32>
    %399 = vector.extract_strided_slice %394 {offsets = [0, 96], sizes = [8, 32], strides = [1, 1]} : vector<8x128xf32> to vector<8x32xf32>
    %400 = arith.mulf %397, %355 : vector<8x32xf32>
    %401 = arith.mulf %396, %398 : vector<8x32xf32>
    %402 = arith.addf %400, %401 : vector<8x32xf32>
    %403 = math.tanh %402 : vector<8x32xf32>
    %404 = arith.mulf %399, %403 : vector<8x32xf32>
    %cst_117 = arith.constant dense<0.000000e+00> : vector<8x128xf32>
    %405 = tpu.matmul %404, %1, %cst_117 {dimension_numbers = #tpu.dot_dimension_numbers<[1], [0], [0], [1], [0, 0, 1, 1], [], []>} : vector<8x32xf32>, vector<32x128xf32>, vector<8x128xf32> -> vector<8x128xf32>
    %cst_118 = arith.constant dense<0.000000e+00> : vector<8x128xf32>
    %406 = tpu.matmul %378, %2, %cst_118 {dimension_numbers = #tpu.dot_dimension_numbers<[1], [0], [0], [1], [0, 0, 1, 1], [], []>} : vector<8x32xf32>, vector<32x128xf32>, vector<8x128xf32> -> vector<8x128xf32>
    %407 = arith.addf %405, %406 : vector<8x128xf32>
    %408 = arith.addf %407, %5 : vector<8x128xf32>
    %cst_119 = arith.constant 5.000000e-01 : f32
    %409 = vector.broadcast %cst_119 : f32 to vector<8x128xf32>
    %410 = arith.mulf %409, %408 : vector<8x128xf32>
    %411 = math.tanh %410 : vector<8x128xf32>
    %cst_120 = arith.constant 1.000000e+00 : f32
    %412 = vector.broadcast %cst_120 : f32 to vector<8x128xf32>
    %413 = arith.addf %411, %412 : vector<8x128xf32>
    %cst_121 = arith.constant 5.000000e-01 : f32
    %414 = vector.broadcast %cst_121 : f32 to vector<8x128xf32>
    %415 = arith.mulf %414, %413 : vector<8x128xf32>
    %416 = math.tanh %408 : vector<8x128xf32>
    %417 = vector.extract_strided_slice %415 {offsets = [0, 0], sizes = [8, 32], strides = [1, 1]} : vector<8x128xf32> to vector<8x32xf32>
    %418 = vector.extract_strided_slice %415 {offsets = [0, 32], sizes = [8, 32], strides = [1, 1]} : vector<8x128xf32> to vector<8x32xf32>
    %419 = vector.extract_strided_slice %416 {offsets = [0, 64], sizes = [8, 32], strides = [1, 1]} : vector<8x128xf32> to vector<8x32xf32>
    %420 = vector.extract_strided_slice %415 {offsets = [0, 96], sizes = [8, 32], strides = [1, 1]} : vector<8x128xf32> to vector<8x32xf32>
    %421 = arith.mulf %418, %376 : vector<8x32xf32>
    %422 = arith.mulf %417, %419 : vector<8x32xf32>
    %423 = arith.addf %421, %422 : vector<8x32xf32>
    %424 = math.tanh %423 : vector<8x32xf32>
    %425 = arith.mulf %420, %424 : vector<8x32xf32>
    %426 = arith.index_cast %c8_i32 : i32 to index
    %c0_122 = arith.constant 0 : index
    %c0_123 = arith.constant 0 : index
    %427 = vector.load %arg5[%426, %c0_122, %c0_123] : memref<16x8x32xf32, #tpu.memory_space<vmem>>, vector<1x8x32xf32>
    %428 = vector.shape_cast %427 : vector<1x8x32xf32> to vector<8x32xf32>
    %429 = vector.shape_cast %425 : vector<8x32xf32> to vector<1x8x32xf32>
    tpu.vector_store %arg5[%426, %c0_122, %c0_123], %429 {strides = array<i32>} : memref<16x8x32xf32, #tpu.memory_space<vmem>>, vector<1x8x32xf32>,
    %c9_i32 = arith.constant 9 : i32
    %430 = arith.index_cast %c9_i32 : i32 to index
    %c0_124 = arith.constant 0 : index
    %c0_125 = arith.constant 0 : index
    %431 = vector.load %arg0[%430, %c0_124, %c0_125] : memref<16x8x128xf32, #tpu.memory_space<vmem>>, vector<1x8x128xf32>
    %432 = vector.shape_cast %431 : vector<1x8x128xf32> to vector<8x128xf32>
    %cst_126 = arith.constant dense<0.000000e+00> : vector<8x128xf32>
    %433 = tpu.matmul %404, %0, %cst_126 {dimension_numbers = #tpu.dot_dimension_numbers<[1], [0], [0], [1], [0, 0, 1, 1], [], []>} : vector<8x32xf32>, vector<32x128xf32>, vector<8x128xf32> -> vector<8x128xf32>
    %434 = arith.addf %432, %433 : vector<8x128xf32>
    %cst_127 = arith.constant 5.000000e-01 : f32
    %435 = vector.broadcast %cst_127 : f32 to vector<8x128xf32>
    %436 = arith.mulf %435, %434 : vector<8x128xf32>
    %437 = math.tanh %436 : vector<8x128xf32>
    %cst_128 = arith.constant 1.000000e+00 : f32
    %438 = vector.broadcast %cst_128 : f32 to vector<8x128xf32>
    %439 = arith.addf %437, %438 : vector<8x128xf32>
    %cst_129 = arith.constant 5.000000e-01 : f32
    %440 = vector.broadcast %cst_129 : f32 to vector<8x128xf32>
    %441 = arith.mulf %440, %439 : vector<8x128xf32>
    %442 = math.tanh %434 : vector<8x128xf32>
    %443 = vector.extract_strided_slice %441 {offsets = [0, 0], sizes = [8, 32], strides = [1, 1]} : vector<8x128xf32> to vector<8x32xf32>
    %444 = vector.extract_strided_slice %441 {offsets = [0, 32], sizes = [8, 32], strides = [1, 1]} : vector<8x128xf32> to vector<8x32xf32>
    %445 = vector.extract_strided_slice %442 {offsets = [0, 64], sizes = [8, 32], strides = [1, 1]} : vector<8x128xf32> to vector<8x32xf32>
    %446 = vector.extract_strided_slice %441 {offsets = [0, 96], sizes = [8, 32], strides = [1, 1]} : vector<8x128xf32> to vector<8x32xf32>
    %447 = arith.mulf %444, %402 : vector<8x32xf32>
    %448 = arith.mulf %443, %445 : vector<8x32xf32>
    %449 = arith.addf %447, %448 : vector<8x32xf32>
    %450 = math.tanh %449 : vector<8x32xf32>
    %451 = arith.mulf %446, %450 : vector<8x32xf32>
    %cst_130 = arith.constant dense<0.000000e+00> : vector<8x128xf32>
    %452 = tpu.matmul %451, %1, %cst_130 {dimension_numbers = #tpu.dot_dimension_numbers<[1], [0], [0], [1], [0, 0, 1, 1], [], []>} : vector<8x32xf32>, vector<32x128xf32>, vector<8x128xf32> -> vector<8x128xf32>
    %cst_131 = arith.constant dense<0.000000e+00> : vector<8x128xf32>
    %453 = tpu.matmul %425, %2, %cst_131 {dimension_numbers = #tpu.dot_dimension_numbers<[1], [0], [0], [1], [0, 0, 1, 1], [], []>} : vector<8x32xf32>, vector<32x128xf32>, vector<8x128xf32> -> vector<8x128xf32>
    %454 = arith.addf %452, %453 : vector<8x128xf32>
    %455 = arith.addf %454, %5 : vector<8x128xf32>
    %cst_132 = arith.constant 5.000000e-01 : f32
    %456 = vector.broadcast %cst_132 : f32 to vector<8x128xf32>
    %457 = arith.mulf %456, %455 : vector<8x128xf32>
    %458 = math.tanh %457 : vector<8x128xf32>
    %cst_133 = arith.constant 1.000000e+00 : f32
    %459 = vector.broadcast %cst_133 : f32 to vector<8x128xf32>
    %460 = arith.addf %458, %459 : vector<8x128xf32>
    %cst_134 = arith.constant 5.000000e-01 : f32
    %461 = vector.broadcast %cst_134 : f32 to vector<8x128xf32>
    %462 = arith.mulf %461, %460 : vector<8x128xf32>
    %463 = math.tanh %455 : vector<8x128xf32>
    %464 = vector.extract_strided_slice %462 {offsets = [0, 0], sizes = [8, 32], strides = [1, 1]} : vector<8x128xf32> to vector<8x32xf32>
    %465 = vector.extract_strided_slice %462 {offsets = [0, 32], sizes = [8, 32], strides = [1, 1]} : vector<8x128xf32> to vector<8x32xf32>
    %466 = vector.extract_strided_slice %463 {offsets = [0, 64], sizes = [8, 32], strides = [1, 1]} : vector<8x128xf32> to vector<8x32xf32>
    %467 = vector.extract_strided_slice %462 {offsets = [0, 96], sizes = [8, 32], strides = [1, 1]} : vector<8x128xf32> to vector<8x32xf32>
    %468 = arith.mulf %465, %423 : vector<8x32xf32>
    %469 = arith.mulf %464, %466 : vector<8x32xf32>
    %470 = arith.addf %468, %469 : vector<8x32xf32>
    %471 = math.tanh %470 : vector<8x32xf32>
    %472 = arith.mulf %467, %471 : vector<8x32xf32>
    %473 = arith.index_cast %c9_i32 : i32 to index
    %c0_135 = arith.constant 0 : index
    %c0_136 = arith.constant 0 : index
    %474 = vector.load %arg5[%473, %c0_135, %c0_136] : memref<16x8x32xf32, #tpu.memory_space<vmem>>, vector<1x8x32xf32>
    %475 = vector.shape_cast %474 : vector<1x8x32xf32> to vector<8x32xf32>
    %476 = vector.shape_cast %472 : vector<8x32xf32> to vector<1x8x32xf32>
    tpu.vector_store %arg5[%473, %c0_135, %c0_136], %476 {strides = array<i32>} : memref<16x8x32xf32, #tpu.memory_space<vmem>>, vector<1x8x32xf32>,
    %c10_i32 = arith.constant 10 : i32
    %477 = arith.index_cast %c10_i32 : i32 to index
    %c0_137 = arith.constant 0 : index
    %c0_138 = arith.constant 0 : index
    %478 = vector.load %arg0[%477, %c0_137, %c0_138] : memref<16x8x128xf32, #tpu.memory_space<vmem>>, vector<1x8x128xf32>
    %479 = vector.shape_cast %478 : vector<1x8x128xf32> to vector<8x128xf32>
    %cst_139 = arith.constant dense<0.000000e+00> : vector<8x128xf32>
    %480 = tpu.matmul %451, %0, %cst_139 {dimension_numbers = #tpu.dot_dimension_numbers<[1], [0], [0], [1], [0, 0, 1, 1], [], []>} : vector<8x32xf32>, vector<32x128xf32>, vector<8x128xf32> -> vector<8x128xf32>
    %481 = arith.addf %479, %480 : vector<8x128xf32>
    %cst_140 = arith.constant 5.000000e-01 : f32
    %482 = vector.broadcast %cst_140 : f32 to vector<8x128xf32>
    %483 = arith.mulf %482, %481 : vector<8x128xf32>
    %484 = math.tanh %483 : vector<8x128xf32>
    %cst_141 = arith.constant 1.000000e+00 : f32
    %485 = vector.broadcast %cst_141 : f32 to vector<8x128xf32>
    %486 = arith.addf %484, %485 : vector<8x128xf32>
    %cst_142 = arith.constant 5.000000e-01 : f32
    %487 = vector.broadcast %cst_142 : f32 to vector<8x128xf32>
    %488 = arith.mulf %487, %486 : vector<8x128xf32>
    %489 = math.tanh %481 : vector<8x128xf32>
    %490 = vector.extract_strided_slice %488 {offsets = [0, 0], sizes = [8, 32], strides = [1, 1]} : vector<8x128xf32> to vector<8x32xf32>
    %491 = vector.extract_strided_slice %488 {offsets = [0, 32], sizes = [8, 32], strides = [1, 1]} : vector<8x128xf32> to vector<8x32xf32>
    %492 = vector.extract_strided_slice %489 {offsets = [0, 64], sizes = [8, 32], strides = [1, 1]} : vector<8x128xf32> to vector<8x32xf32>
    %493 = vector.extract_strided_slice %488 {offsets = [0, 96], sizes = [8, 32], strides = [1, 1]} : vector<8x128xf32> to vector<8x32xf32>
    %494 = arith.mulf %491, %449 : vector<8x32xf32>
    %495 = arith.mulf %490, %492 : vector<8x32xf32>
    %496 = arith.addf %494, %495 : vector<8x32xf32>
    %497 = math.tanh %496 : vector<8x32xf32>
    %498 = arith.mulf %493, %497 : vector<8x32xf32>
    %cst_143 = arith.constant dense<0.000000e+00> : vector<8x128xf32>
    %499 = tpu.matmul %498, %1, %cst_143 {dimension_numbers = #tpu.dot_dimension_numbers<[1], [0], [0], [1], [0, 0, 1, 1], [], []>} : vector<8x32xf32>, vector<32x128xf32>, vector<8x128xf32> -> vector<8x128xf32>
    %cst_144 = arith.constant dense<0.000000e+00> : vector<8x128xf32>
    %500 = tpu.matmul %472, %2, %cst_144 {dimension_numbers = #tpu.dot_dimension_numbers<[1], [0], [0], [1], [0, 0, 1, 1], [], []>} : vector<8x32xf32>, vector<32x128xf32>, vector<8x128xf32> -> vector<8x128xf32>
    %501 = arith.addf %499, %500 : vector<8x128xf32>
    %502 = arith.addf %501, %5 : vector<8x128xf32>
    %cst_145 = arith.constant 5.000000e-01 : f32
    %503 = vector.broadcast %cst_145 : f32 to vector<8x128xf32>
    %504 = arith.mulf %503, %502 : vector<8x128xf32>
    %505 = math.tanh %504 : vector<8x128xf32>
    %cst_146 = arith.constant 1.000000e+00 : f32
    %506 = vector.broadcast %cst_146 : f32 to vector<8x128xf32>
    %507 = arith.addf %505, %506 : vector<8x128xf32>
    %cst_147 = arith.constant 5.000000e-01 : f32
    %508 = vector.broadcast %cst_147 : f32 to vector<8x128xf32>
    %509 = arith.mulf %508, %507 : vector<8x128xf32>
    %510 = math.tanh %502 : vector<8x128xf32>
    %511 = vector.extract_strided_slice %509 {offsets = [0, 0], sizes = [8, 32], strides = [1, 1]} : vector<8x128xf32> to vector<8x32xf32>
    %512 = vector.extract_strided_slice %509 {offsets = [0, 32], sizes = [8, 32], strides = [1, 1]} : vector<8x128xf32> to vector<8x32xf32>
    %513 = vector.extract_strided_slice %510 {offsets = [0, 64], sizes = [8, 32], strides = [1, 1]} : vector<8x128xf32> to vector<8x32xf32>
    %514 = vector.extract_strided_slice %509 {offsets = [0, 96], sizes = [8, 32], strides = [1, 1]} : vector<8x128xf32> to vector<8x32xf32>
    %515 = arith.mulf %512, %470 : vector<8x32xf32>
    %516 = arith.mulf %511, %513 : vector<8x32xf32>
    %517 = arith.addf %515, %516 : vector<8x32xf32>
    %518 = math.tanh %517 : vector<8x32xf32>
    %519 = arith.mulf %514, %518 : vector<8x32xf32>
    %520 = arith.index_cast %c10_i32 : i32 to index
    %c0_148 = arith.constant 0 : index
    %c0_149 = arith.constant 0 : index
    %521 = vector.load %arg5[%520, %c0_148, %c0_149] : memref<16x8x32xf32, #tpu.memory_space<vmem>>, vector<1x8x32xf32>
    %522 = vector.shape_cast %521 : vector<1x8x32xf32> to vector<8x32xf32>
    %523 = vector.shape_cast %519 : vector<8x32xf32> to vector<1x8x32xf32>
    tpu.vector_store %arg5[%520, %c0_148, %c0_149], %523 {strides = array<i32>} : memref<16x8x32xf32, #tpu.memory_space<vmem>>, vector<1x8x32xf32>,
    %c11_i32 = arith.constant 11 : i32
    %524 = arith.index_cast %c11_i32 : i32 to index
    %c0_150 = arith.constant 0 : index
    %c0_151 = arith.constant 0 : index
    %525 = vector.load %arg0[%524, %c0_150, %c0_151] : memref<16x8x128xf32, #tpu.memory_space<vmem>>, vector<1x8x128xf32>
    %526 = vector.shape_cast %525 : vector<1x8x128xf32> to vector<8x128xf32>
    %cst_152 = arith.constant dense<0.000000e+00> : vector<8x128xf32>
    %527 = tpu.matmul %498, %0, %cst_152 {dimension_numbers = #tpu.dot_dimension_numbers<[1], [0], [0], [1], [0, 0, 1, 1], [], []>} : vector<8x32xf32>, vector<32x128xf32>, vector<8x128xf32> -> vector<8x128xf32>
    %528 = arith.addf %526, %527 : vector<8x128xf32>
    %cst_153 = arith.constant 5.000000e-01 : f32
    %529 = vector.broadcast %cst_153 : f32 to vector<8x128xf32>
    %530 = arith.mulf %529, %528 : vector<8x128xf32>
    %531 = math.tanh %530 : vector<8x128xf32>
    %cst_154 = arith.constant 1.000000e+00 : f32
    %532 = vector.broadcast %cst_154 : f32 to vector<8x128xf32>
    %533 = arith.addf %531, %532 : vector<8x128xf32>
    %cst_155 = arith.constant 5.000000e-01 : f32
    %534 = vector.broadcast %cst_155 : f32 to vector<8x128xf32>
    %535 = arith.mulf %534, %533 : vector<8x128xf32>
    %536 = math.tanh %528 : vector<8x128xf32>
    %537 = vector.extract_strided_slice %535 {offsets = [0, 0], sizes = [8, 32], strides = [1, 1]} : vector<8x128xf32> to vector<8x32xf32>
    %538 = vector.extract_strided_slice %535 {offsets = [0, 32], sizes = [8, 32], strides = [1, 1]} : vector<8x128xf32> to vector<8x32xf32>
    %539 = vector.extract_strided_slice %536 {offsets = [0, 64], sizes = [8, 32], strides = [1, 1]} : vector<8x128xf32> to vector<8x32xf32>
    %540 = vector.extract_strided_slice %535 {offsets = [0, 96], sizes = [8, 32], strides = [1, 1]} : vector<8x128xf32> to vector<8x32xf32>
    %541 = arith.mulf %538, %496 : vector<8x32xf32>
    %542 = arith.mulf %537, %539 : vector<8x32xf32>
    %543 = arith.addf %541, %542 : vector<8x32xf32>
    %544 = math.tanh %543 : vector<8x32xf32>
    %545 = arith.mulf %540, %544 : vector<8x32xf32>
    %cst_156 = arith.constant dense<0.000000e+00> : vector<8x128xf32>
    %546 = tpu.matmul %545, %1, %cst_156 {dimension_numbers = #tpu.dot_dimension_numbers<[1], [0], [0], [1], [0, 0, 1, 1], [], []>} : vector<8x32xf32>, vector<32x128xf32>, vector<8x128xf32> -> vector<8x128xf32>
    %cst_157 = arith.constant dense<0.000000e+00> : vector<8x128xf32>
    %547 = tpu.matmul %519, %2, %cst_157 {dimension_numbers = #tpu.dot_dimension_numbers<[1], [0], [0], [1], [0, 0, 1, 1], [], []>} : vector<8x32xf32>, vector<32x128xf32>, vector<8x128xf32> -> vector<8x128xf32>
    %548 = arith.addf %546, %547 : vector<8x128xf32>
    %549 = arith.addf %548, %5 : vector<8x128xf32>
    %cst_158 = arith.constant 5.000000e-01 : f32
    %550 = vector.broadcast %cst_158 : f32 to vector<8x128xf32>
    %551 = arith.mulf %550, %549 : vector<8x128xf32>
    %552 = math.tanh %551 : vector<8x128xf32>
    %cst_159 = arith.constant 1.000000e+00 : f32
    %553 = vector.broadcast %cst_159 : f32 to vector<8x128xf32>
    %554 = arith.addf %552, %553 : vector<8x128xf32>
    %cst_160 = arith.constant 5.000000e-01 : f32
    %555 = vector.broadcast %cst_160 : f32 to vector<8x128xf32>
    %556 = arith.mulf %555, %554 : vector<8x128xf32>
    %557 = math.tanh %549 : vector<8x128xf32>
    %558 = vector.extract_strided_slice %556 {offsets = [0, 0], sizes = [8, 32], strides = [1, 1]} : vector<8x128xf32> to vector<8x32xf32>
    %559 = vector.extract_strided_slice %556 {offsets = [0, 32], sizes = [8, 32], strides = [1, 1]} : vector<8x128xf32> to vector<8x32xf32>
    %560 = vector.extract_strided_slice %557 {offsets = [0, 64], sizes = [8, 32], strides = [1, 1]} : vector<8x128xf32> to vector<8x32xf32>
    %561 = vector.extract_strided_slice %556 {offsets = [0, 96], sizes = [8, 32], strides = [1, 1]} : vector<8x128xf32> to vector<8x32xf32>
    %562 = arith.mulf %559, %517 : vector<8x32xf32>
    %563 = arith.mulf %558, %560 : vector<8x32xf32>
    %564 = arith.addf %562, %563 : vector<8x32xf32>
    %565 = math.tanh %564 : vector<8x32xf32>
    %566 = arith.mulf %561, %565 : vector<8x32xf32>
    %567 = arith.index_cast %c11_i32 : i32 to index
    %c0_161 = arith.constant 0 : index
    %c0_162 = arith.constant 0 : index
    %568 = vector.load %arg5[%567, %c0_161, %c0_162] : memref<16x8x32xf32, #tpu.memory_space<vmem>>, vector<1x8x32xf32>
    %569 = vector.shape_cast %568 : vector<1x8x32xf32> to vector<8x32xf32>
    %570 = vector.shape_cast %566 : vector<8x32xf32> to vector<1x8x32xf32>
    tpu.vector_store %arg5[%567, %c0_161, %c0_162], %570 {strides = array<i32>} : memref<16x8x32xf32, #tpu.memory_space<vmem>>, vector<1x8x32xf32>,
    %c12_i32 = arith.constant 12 : i32
    %571 = arith.index_cast %c12_i32 : i32 to index
    %c0_163 = arith.constant 0 : index
    %c0_164 = arith.constant 0 : index
    %572 = vector.load %arg0[%571, %c0_163, %c0_164] : memref<16x8x128xf32, #tpu.memory_space<vmem>>, vector<1x8x128xf32>
    %573 = vector.shape_cast %572 : vector<1x8x128xf32> to vector<8x128xf32>
    %cst_165 = arith.constant dense<0.000000e+00> : vector<8x128xf32>
    %574 = tpu.matmul %545, %0, %cst_165 {dimension_numbers = #tpu.dot_dimension_numbers<[1], [0], [0], [1], [0, 0, 1, 1], [], []>} : vector<8x32xf32>, vector<32x128xf32>, vector<8x128xf32> -> vector<8x128xf32>
    %575 = arith.addf %573, %574 : vector<8x128xf32>
    %cst_166 = arith.constant 5.000000e-01 : f32
    %576 = vector.broadcast %cst_166 : f32 to vector<8x128xf32>
    %577 = arith.mulf %576, %575 : vector<8x128xf32>
    %578 = math.tanh %577 : vector<8x128xf32>
    %cst_167 = arith.constant 1.000000e+00 : f32
    %579 = vector.broadcast %cst_167 : f32 to vector<8x128xf32>
    %580 = arith.addf %578, %579 : vector<8x128xf32>
    %cst_168 = arith.constant 5.000000e-01 : f32
    %581 = vector.broadcast %cst_168 : f32 to vector<8x128xf32>
    %582 = arith.mulf %581, %580 : vector<8x128xf32>
    %583 = math.tanh %575 : vector<8x128xf32>
    %584 = vector.extract_strided_slice %582 {offsets = [0, 0], sizes = [8, 32], strides = [1, 1]} : vector<8x128xf32> to vector<8x32xf32>
    %585 = vector.extract_strided_slice %582 {offsets = [0, 32], sizes = [8, 32], strides = [1, 1]} : vector<8x128xf32> to vector<8x32xf32>
    %586 = vector.extract_strided_slice %583 {offsets = [0, 64], sizes = [8, 32], strides = [1, 1]} : vector<8x128xf32> to vector<8x32xf32>
    %587 = vector.extract_strided_slice %582 {offsets = [0, 96], sizes = [8, 32], strides = [1, 1]} : vector<8x128xf32> to vector<8x32xf32>
    %588 = arith.mulf %585, %543 : vector<8x32xf32>
    %589 = arith.mulf %584, %586 : vector<8x32xf32>
    %590 = arith.addf %588, %589 : vector<8x32xf32>
    %591 = math.tanh %590 : vector<8x32xf32>
    %592 = arith.mulf %587, %591 : vector<8x32xf32>
    %cst_169 = arith.constant dense<0.000000e+00> : vector<8x128xf32>
    %593 = tpu.matmul %592, %1, %cst_169 {dimension_numbers = #tpu.dot_dimension_numbers<[1], [0], [0], [1], [0, 0, 1, 1], [], []>} : vector<8x32xf32>, vector<32x128xf32>, vector<8x128xf32> -> vector<8x128xf32>
    %cst_170 = arith.constant dense<0.000000e+00> : vector<8x128xf32>
    %594 = tpu.matmul %566, %2, %cst_170 {dimension_numbers = #tpu.dot_dimension_numbers<[1], [0], [0], [1], [0, 0, 1, 1], [], []>} : vector<8x32xf32>, vector<32x128xf32>, vector<8x128xf32> -> vector<8x128xf32>
    %595 = arith.addf %593, %594 : vector<8x128xf32>
    %596 = arith.addf %595, %5 : vector<8x128xf32>
    %cst_171 = arith.constant 5.000000e-01 : f32
    %597 = vector.broadcast %cst_171 : f32 to vector<8x128xf32>
    %598 = arith.mulf %597, %596 : vector<8x128xf32>
    %599 = math.tanh %598 : vector<8x128xf32>
    %cst_172 = arith.constant 1.000000e+00 : f32
    %600 = vector.broadcast %cst_172 : f32 to vector<8x128xf32>
    %601 = arith.addf %599, %600 : vector<8x128xf32>
    %cst_173 = arith.constant 5.000000e-01 : f32
    %602 = vector.broadcast %cst_173 : f32 to vector<8x128xf32>
    %603 = arith.mulf %602, %601 : vector<8x128xf32>
    %604 = math.tanh %596 : vector<8x128xf32>
    %605 = vector.extract_strided_slice %603 {offsets = [0, 0], sizes = [8, 32], strides = [1, 1]} : vector<8x128xf32> to vector<8x32xf32>
    %606 = vector.extract_strided_slice %603 {offsets = [0, 32], sizes = [8, 32], strides = [1, 1]} : vector<8x128xf32> to vector<8x32xf32>
    %607 = vector.extract_strided_slice %604 {offsets = [0, 64], sizes = [8, 32], strides = [1, 1]} : vector<8x128xf32> to vector<8x32xf32>
    %608 = vector.extract_strided_slice %603 {offsets = [0, 96], sizes = [8, 32], strides = [1, 1]} : vector<8x128xf32> to vector<8x32xf32>
    %609 = arith.mulf %606, %564 : vector<8x32xf32>
    %610 = arith.mulf %605, %607 : vector<8x32xf32>
    %611 = arith.addf %609, %610 : vector<8x32xf32>
    %612 = math.tanh %611 : vector<8x32xf32>
    %613 = arith.mulf %608, %612 : vector<8x32xf32>
    %614 = arith.index_cast %c12_i32 : i32 to index
    %c0_174 = arith.constant 0 : index
    %c0_175 = arith.constant 0 : index
    %615 = vector.load %arg5[%614, %c0_174, %c0_175] : memref<16x8x32xf32, #tpu.memory_space<vmem>>, vector<1x8x32xf32>
    %616 = vector.shape_cast %615 : vector<1x8x32xf32> to vector<8x32xf32>
    %617 = vector.shape_cast %613 : vector<8x32xf32> to vector<1x8x32xf32>
    tpu.vector_store %arg5[%614, %c0_174, %c0_175], %617 {strides = array<i32>} : memref<16x8x32xf32, #tpu.memory_space<vmem>>, vector<1x8x32xf32>,
    %c13_i32 = arith.constant 13 : i32
    %618 = arith.index_cast %c13_i32 : i32 to index
    %c0_176 = arith.constant 0 : index
    %c0_177 = arith.constant 0 : index
    %619 = vector.load %arg0[%618, %c0_176, %c0_177] : memref<16x8x128xf32, #tpu.memory_space<vmem>>, vector<1x8x128xf32>
    %620 = vector.shape_cast %619 : vector<1x8x128xf32> to vector<8x128xf32>
    %cst_178 = arith.constant dense<0.000000e+00> : vector<8x128xf32>
    %621 = tpu.matmul %592, %0, %cst_178 {dimension_numbers = #tpu.dot_dimension_numbers<[1], [0], [0], [1], [0, 0, 1, 1], [], []>} : vector<8x32xf32>, vector<32x128xf32>, vector<8x128xf32> -> vector<8x128xf32>
    %622 = arith.addf %620, %621 : vector<8x128xf32>
    %cst_179 = arith.constant 5.000000e-01 : f32
    %623 = vector.broadcast %cst_179 : f32 to vector<8x128xf32>
    %624 = arith.mulf %623, %622 : vector<8x128xf32>
    %625 = math.tanh %624 : vector<8x128xf32>
    %cst_180 = arith.constant 1.000000e+00 : f32
    %626 = vector.broadcast %cst_180 : f32 to vector<8x128xf32>
    %627 = arith.addf %625, %626 : vector<8x128xf32>
    %cst_181 = arith.constant 5.000000e-01 : f32
    %628 = vector.broadcast %cst_181 : f32 to vector<8x128xf32>
    %629 = arith.mulf %628, %627 : vector<8x128xf32>
    %630 = math.tanh %622 : vector<8x128xf32>
    %631 = vector.extract_strided_slice %629 {offsets = [0, 0], sizes = [8, 32], strides = [1, 1]} : vector<8x128xf32> to vector<8x32xf32>
    %632 = vector.extract_strided_slice %629 {offsets = [0, 32], sizes = [8, 32], strides = [1, 1]} : vector<8x128xf32> to vector<8x32xf32>
    %633 = vector.extract_strided_slice %630 {offsets = [0, 64], sizes = [8, 32], strides = [1, 1]} : vector<8x128xf32> to vector<8x32xf32>
    %634 = vector.extract_strided_slice %629 {offsets = [0, 96], sizes = [8, 32], strides = [1, 1]} : vector<8x128xf32> to vector<8x32xf32>
    %635 = arith.mulf %632, %590 : vector<8x32xf32>
    %636 = arith.mulf %631, %633 : vector<8x32xf32>
    %637 = arith.addf %635, %636 : vector<8x32xf32>
    %638 = math.tanh %637 : vector<8x32xf32>
    %639 = arith.mulf %634, %638 : vector<8x32xf32>
    %cst_182 = arith.constant dense<0.000000e+00> : vector<8x128xf32>
    %640 = tpu.matmul %639, %1, %cst_182 {dimension_numbers = #tpu.dot_dimension_numbers<[1], [0], [0], [1], [0, 0, 1, 1], [], []>} : vector<8x32xf32>, vector<32x128xf32>, vector<8x128xf32> -> vector<8x128xf32>
    %cst_183 = arith.constant dense<0.000000e+00> : vector<8x128xf32>
    %641 = tpu.matmul %613, %2, %cst_183 {dimension_numbers = #tpu.dot_dimension_numbers<[1], [0], [0], [1], [0, 0, 1, 1], [], []>} : vector<8x32xf32>, vector<32x128xf32>, vector<8x128xf32> -> vector<8x128xf32>
    %642 = arith.addf %640, %641 : vector<8x128xf32>
    %643 = arith.addf %642, %5 : vector<8x128xf32>
    %cst_184 = arith.constant 5.000000e-01 : f32
    %644 = vector.broadcast %cst_184 : f32 to vector<8x128xf32>
    %645 = arith.mulf %644, %643 : vector<8x128xf32>
    %646 = math.tanh %645 : vector<8x128xf32>
    %cst_185 = arith.constant 1.000000e+00 : f32
    %647 = vector.broadcast %cst_185 : f32 to vector<8x128xf32>
    %648 = arith.addf %646, %647 : vector<8x128xf32>
    %cst_186 = arith.constant 5.000000e-01 : f32
    %649 = vector.broadcast %cst_186 : f32 to vector<8x128xf32>
    %650 = arith.mulf %649, %648 : vector<8x128xf32>
    %651 = math.tanh %643 : vector<8x128xf32>
    %652 = vector.extract_strided_slice %650 {offsets = [0, 0], sizes = [8, 32], strides = [1, 1]} : vector<8x128xf32> to vector<8x32xf32>
    %653 = vector.extract_strided_slice %650 {offsets = [0, 32], sizes = [8, 32], strides = [1, 1]} : vector<8x128xf32> to vector<8x32xf32>
    %654 = vector.extract_strided_slice %651 {offsets = [0, 64], sizes = [8, 32], strides = [1, 1]} : vector<8x128xf32> to vector<8x32xf32>
    %655 = vector.extract_strided_slice %650 {offsets = [0, 96], sizes = [8, 32], strides = [1, 1]} : vector<8x128xf32> to vector<8x32xf32>
    %656 = arith.mulf %653, %611 : vector<8x32xf32>
    %657 = arith.mulf %652, %654 : vector<8x32xf32>
    %658 = arith.addf %656, %657 : vector<8x32xf32>
    %659 = math.tanh %658 : vector<8x32xf32>
    %660 = arith.mulf %655, %659 : vector<8x32xf32>
    %661 = arith.index_cast %c13_i32 : i32 to index
    %c0_187 = arith.constant 0 : index
    %c0_188 = arith.constant 0 : index
    %662 = vector.load %arg5[%661, %c0_187, %c0_188] : memref<16x8x32xf32, #tpu.memory_space<vmem>>, vector<1x8x32xf32>
    %663 = vector.shape_cast %662 : vector<1x8x32xf32> to vector<8x32xf32>
    %664 = vector.shape_cast %660 : vector<8x32xf32> to vector<1x8x32xf32>
    tpu.vector_store %arg5[%661, %c0_187, %c0_188], %664 {strides = array<i32>} : memref<16x8x32xf32, #tpu.memory_space<vmem>>, vector<1x8x32xf32>,
    %c14_i32 = arith.constant 14 : i32
    %665 = arith.index_cast %c14_i32 : i32 to index
    %c0_189 = arith.constant 0 : index
    %c0_190 = arith.constant 0 : index
    %666 = vector.load %arg0[%665, %c0_189, %c0_190] : memref<16x8x128xf32, #tpu.memory_space<vmem>>, vector<1x8x128xf32>
    %667 = vector.shape_cast %666 : vector<1x8x128xf32> to vector<8x128xf32>
    %cst_191 = arith.constant dense<0.000000e+00> : vector<8x128xf32>
    %668 = tpu.matmul %639, %0, %cst_191 {dimension_numbers = #tpu.dot_dimension_numbers<[1], [0], [0], [1], [0, 0, 1, 1], [], []>} : vector<8x32xf32>, vector<32x128xf32>, vector<8x128xf32> -> vector<8x128xf32>
    %669 = arith.addf %667, %668 : vector<8x128xf32>
    %cst_192 = arith.constant 5.000000e-01 : f32
    %670 = vector.broadcast %cst_192 : f32 to vector<8x128xf32>
    %671 = arith.mulf %670, %669 : vector<8x128xf32>
    %672 = math.tanh %671 : vector<8x128xf32>
    %cst_193 = arith.constant 1.000000e+00 : f32
    %673 = vector.broadcast %cst_193 : f32 to vector<8x128xf32>
    %674 = arith.addf %672, %673 : vector<8x128xf32>
    %cst_194 = arith.constant 5.000000e-01 : f32
    %675 = vector.broadcast %cst_194 : f32 to vector<8x128xf32>
    %676 = arith.mulf %675, %674 : vector<8x128xf32>
    %677 = math.tanh %669 : vector<8x128xf32>
    %678 = vector.extract_strided_slice %676 {offsets = [0, 0], sizes = [8, 32], strides = [1, 1]} : vector<8x128xf32> to vector<8x32xf32>
    %679 = vector.extract_strided_slice %676 {offsets = [0, 32], sizes = [8, 32], strides = [1, 1]} : vector<8x128xf32> to vector<8x32xf32>
    %680 = vector.extract_strided_slice %677 {offsets = [0, 64], sizes = [8, 32], strides = [1, 1]} : vector<8x128xf32> to vector<8x32xf32>
    %681 = vector.extract_strided_slice %676 {offsets = [0, 96], sizes = [8, 32], strides = [1, 1]} : vector<8x128xf32> to vector<8x32xf32>
    %682 = arith.mulf %679, %637 : vector<8x32xf32>
    %683 = arith.mulf %678, %680 : vector<8x32xf32>
    %684 = arith.addf %682, %683 : vector<8x32xf32>
    %685 = math.tanh %684 : vector<8x32xf32>
    %686 = arith.mulf %681, %685 : vector<8x32xf32>
    %cst_195 = arith.constant dense<0.000000e+00> : vector<8x128xf32>
    %687 = tpu.matmul %686, %1, %cst_195 {dimension_numbers = #tpu.dot_dimension_numbers<[1], [0], [0], [1], [0, 0, 1, 1], [], []>} : vector<8x32xf32>, vector<32x128xf32>, vector<8x128xf32> -> vector<8x128xf32>
    %cst_196 = arith.constant dense<0.000000e+00> : vector<8x128xf32>
    %688 = tpu.matmul %660, %2, %cst_196 {dimension_numbers = #tpu.dot_dimension_numbers<[1], [0], [0], [1], [0, 0, 1, 1], [], []>} : vector<8x32xf32>, vector<32x128xf32>, vector<8x128xf32> -> vector<8x128xf32>
    %689 = arith.addf %687, %688 : vector<8x128xf32>
    %690 = arith.addf %689, %5 : vector<8x128xf32>
    %cst_197 = arith.constant 5.000000e-01 : f32
    %691 = vector.broadcast %cst_197 : f32 to vector<8x128xf32>
    %692 = arith.mulf %691, %690 : vector<8x128xf32>
    %693 = math.tanh %692 : vector<8x128xf32>
    %cst_198 = arith.constant 1.000000e+00 : f32
    %694 = vector.broadcast %cst_198 : f32 to vector<8x128xf32>
    %695 = arith.addf %693, %694 : vector<8x128xf32>
    %cst_199 = arith.constant 5.000000e-01 : f32
    %696 = vector.broadcast %cst_199 : f32 to vector<8x128xf32>
    %697 = arith.mulf %696, %695 : vector<8x128xf32>
    %698 = math.tanh %690 : vector<8x128xf32>
    %699 = vector.extract_strided_slice %697 {offsets = [0, 0], sizes = [8, 32], strides = [1, 1]} : vector<8x128xf32> to vector<8x32xf32>
    %700 = vector.extract_strided_slice %697 {offsets = [0, 32], sizes = [8, 32], strides = [1, 1]} : vector<8x128xf32> to vector<8x32xf32>
    %701 = vector.extract_strided_slice %698 {offsets = [0, 64], sizes = [8, 32], strides = [1, 1]} : vector<8x128xf32> to vector<8x32xf32>
    %702 = vector.extract_strided_slice %697 {offsets = [0, 96], sizes = [8, 32], strides = [1, 1]} : vector<8x128xf32> to vector<8x32xf32>
    %703 = arith.mulf %700, %658 : vector<8x32xf32>
    %704 = arith.mulf %699, %701 : vector<8x32xf32>
    %705 = arith.addf %703, %704 : vector<8x32xf32>
    %706 = math.tanh %705 : vector<8x32xf32>
    %707 = arith.mulf %702, %706 : vector<8x32xf32>
    %708 = arith.index_cast %c14_i32 : i32 to index
    %c0_200 = arith.constant 0 : index
    %c0_201 = arith.constant 0 : index
    %709 = vector.load %arg5[%708, %c0_200, %c0_201] : memref<16x8x32xf32, #tpu.memory_space<vmem>>, vector<1x8x32xf32>
    %710 = vector.shape_cast %709 : vector<1x8x32xf32> to vector<8x32xf32>
    %711 = vector.shape_cast %707 : vector<8x32xf32> to vector<1x8x32xf32>
    tpu.vector_store %arg5[%708, %c0_200, %c0_201], %711 {strides = array<i32>} : memref<16x8x32xf32, #tpu.memory_space<vmem>>, vector<1x8x32xf32>,
    %c15_i32 = arith.constant 15 : i32
    %712 = arith.index_cast %c15_i32 : i32 to index
    %c0_202 = arith.constant 0 : index
    %c0_203 = arith.constant 0 : index
    %713 = vector.load %arg0[%712, %c0_202, %c0_203] : memref<16x8x128xf32, #tpu.memory_space<vmem>>, vector<1x8x128xf32>
    %714 = vector.shape_cast %713 : vector<1x8x128xf32> to vector<8x128xf32>
    %cst_204 = arith.constant dense<0.000000e+00> : vector<8x128xf32>
    %715 = tpu.matmul %686, %0, %cst_204 {dimension_numbers = #tpu.dot_dimension_numbers<[1], [0], [0], [1], [0, 0, 1, 1], [], []>} : vector<8x32xf32>, vector<32x128xf32>, vector<8x128xf32> -> vector<8x128xf32>
    %716 = arith.addf %714, %715 : vector<8x128xf32>
    %cst_205 = arith.constant 5.000000e-01 : f32
    %717 = vector.broadcast %cst_205 : f32 to vector<8x128xf32>
    %718 = arith.mulf %717, %716 : vector<8x128xf32>
    %719 = math.tanh %718 : vector<8x128xf32>
    %cst_206 = arith.constant 1.000000e+00 : f32
    %720 = vector.broadcast %cst_206 : f32 to vector<8x128xf32>
    %721 = arith.addf %719, %720 : vector<8x128xf32>
    %cst_207 = arith.constant 5.000000e-01 : f32
    %722 = vector.broadcast %cst_207 : f32 to vector<8x128xf32>
    %723 = arith.mulf %722, %721 : vector<8x128xf32>
    %724 = math.tanh %716 : vector<8x128xf32>
    %725 = vector.extract_strided_slice %723 {offsets = [0, 0], sizes = [8, 32], strides = [1, 1]} : vector<8x128xf32> to vector<8x32xf32>
    %726 = vector.extract_strided_slice %723 {offsets = [0, 32], sizes = [8, 32], strides = [1, 1]} : vector<8x128xf32> to vector<8x32xf32>
    %727 = vector.extract_strided_slice %724 {offsets = [0, 64], sizes = [8, 32], strides = [1, 1]} : vector<8x128xf32> to vector<8x32xf32>
    %728 = vector.extract_strided_slice %723 {offsets = [0, 96], sizes = [8, 32], strides = [1, 1]} : vector<8x128xf32> to vector<8x32xf32>
    %729 = arith.mulf %726, %684 : vector<8x32xf32>
    %730 = arith.mulf %725, %727 : vector<8x32xf32>
    %731 = arith.addf %729, %730 : vector<8x32xf32>
    %732 = math.tanh %731 : vector<8x32xf32>
    %733 = arith.mulf %728, %732 : vector<8x32xf32>
    %cst_208 = arith.constant dense<0.000000e+00> : vector<8x128xf32>
    %734 = tpu.matmul %733, %1, %cst_208 {dimension_numbers = #tpu.dot_dimension_numbers<[1], [0], [0], [1], [0, 0, 1, 1], [], []>} : vector<8x32xf32>, vector<32x128xf32>, vector<8x128xf32> -> vector<8x128xf32>
    %cst_209 = arith.constant dense<0.000000e+00> : vector<8x128xf32>
    %735 = tpu.matmul %707, %2, %cst_209 {dimension_numbers = #tpu.dot_dimension_numbers<[1], [0], [0], [1], [0, 0, 1, 1], [], []>} : vector<8x32xf32>, vector<32x128xf32>, vector<8x128xf32> -> vector<8x128xf32>
    %736 = arith.addf %734, %735 : vector<8x128xf32>
    %737 = arith.addf %736, %5 : vector<8x128xf32>
    %cst_210 = arith.constant 5.000000e-01 : f32
    %738 = vector.broadcast %cst_210 : f32 to vector<8x128xf32>
    %739 = arith.mulf %738, %737 : vector<8x128xf32>
    %740 = math.tanh %739 : vector<8x128xf32>
    %cst_211 = arith.constant 1.000000e+00 : f32
    %741 = vector.broadcast %cst_211 : f32 to vector<8x128xf32>
    %742 = arith.addf %740, %741 : vector<8x128xf32>
    %cst_212 = arith.constant 5.000000e-01 : f32
    %743 = vector.broadcast %cst_212 : f32 to vector<8x128xf32>
    %744 = arith.mulf %743, %742 : vector<8x128xf32>
    %745 = math.tanh %737 : vector<8x128xf32>
    %746 = vector.extract_strided_slice %744 {offsets = [0, 0], sizes = [8, 32], strides = [1, 1]} : vector<8x128xf32> to vector<8x32xf32>
    %747 = vector.extract_strided_slice %744 {offsets = [0, 32], sizes = [8, 32], strides = [1, 1]} : vector<8x128xf32> to vector<8x32xf32>
    %748 = vector.extract_strided_slice %745 {offsets = [0, 64], sizes = [8, 32], strides = [1, 1]} : vector<8x128xf32> to vector<8x32xf32>
    %749 = vector.extract_strided_slice %744 {offsets = [0, 96], sizes = [8, 32], strides = [1, 1]} : vector<8x128xf32> to vector<8x32xf32>
    %750 = arith.mulf %747, %705 : vector<8x32xf32>
    %751 = arith.mulf %746, %748 : vector<8x32xf32>
    %752 = arith.addf %750, %751 : vector<8x32xf32>
    %753 = math.tanh %752 : vector<8x32xf32>
    %754 = arith.mulf %749, %753 : vector<8x32xf32>
    %755 = arith.index_cast %c15_i32 : i32 to index
    %c0_213 = arith.constant 0 : index
    %c0_214 = arith.constant 0 : index
    %756 = vector.load %arg5[%755, %c0_213, %c0_214] : memref<16x8x32xf32, #tpu.memory_space<vmem>>, vector<1x8x32xf32>
    %757 = vector.shape_cast %756 : vector<1x8x32xf32> to vector<8x32xf32>
    %758 = vector.shape_cast %754 : vector<8x32xf32> to vector<1x8x32xf32>
    tpu.vector_store %arg5[%755, %c0_213, %c0_214], %758 {strides = array<i32>} : memref<16x8x32xf32, #tpu.memory_space<vmem>>, vector<1x8x32xf32>,
    %c16_i32 = arith.constant 16 : i32
    return
  }
}

</mosaic_0001>

<llo_original>
// kernel: tpu_custom_call.1
$region0: #{tpu_custom_call.1}
  #allocation0 [shape = 'u32[]', space=smem, size = 0x4, offset = 0x4, fixed_abs, tag = 'smem constant byte address 0x4 - core index']
  #allocation1 [shape = 'u32[144,128]{1,0:T(1,128)}', space=vmem, size = 0x12000, scoped, tag = 'internal scratch']
  %s0 = inlined_call_operand.hbm [shape: f32[16,8,128], index: 0, kind: input, shape index: {}]
  %s1 = inlined_call_operand.hbm [shape: f32[32,128], index: 1, kind: input, shape index: {}]
  %s2 = inlined_call_operand.hbm [shape: f32[32,128], index: 2, kind: input, shape index: {}]
  %s3 = inlined_call_operand.hbm [shape: f32[32,128], index: 3, kind: input, shape index: {}]
  %s4 = inlined_call_operand.vmem [shape: f32[1,128], index: 4, kind: input, shape index: {}]
  %s5 = inlined_call_operand.hbm [shape: f32[16,8,32], index: 5, kind: output, shape index: {}]
  %s6 = sld [smem:[#allocation0]]
  $region46: #{tpu_custom_call.1} parent=0
    _
  %s8 = ssub.s32 1, %s6
  %s9 = scalar_select 0, %s8, %s6
  $region1: #{tpu_custom_call.1} parent=0
    #allocation2 [shape = 'u8[65536]{0}', space=vmem, size = 0x10000, scoped, tag = 'input window, operand 0, single buffered']
    #allocation3 [shape = 's32[1]{0}', space=sflag, size = 0x4, scoped, tag = 'scoped memory for tpu_custom_call.1']
    #allocation4 [shape = 's32[1]{0}', space=sflag, size = 0x4, scoped, tag = 'scoped memory for tpu_custom_call.1']
    #allocation5 [shape = 'u8[16384]{0}', space=vmem, size = 0x4000, scoped, tag = 'input window, operand 1, single buffered']
    #allocation6 [shape = 's32[1]{0}', space=sflag, size = 0x4, scoped, tag = 'scoped memory for tpu_custom_call.1']
    #allocation7 [shape = 'u8[16384]{0}', space=vmem, size = 0x4000, scoped, tag = 'input window, operand 2, single buffered']
    #allocation8 [shape = 'u8[16384]{0}', space=vmem, size = 0x4000, scoped, tag = 'input window, operand 3, single buffered']
    #allocation9 [shape = 's32[1]{0}', space=sflag, size = 0x4, scoped, tag = 'scoped memory for tpu_custom_call.1']
    #allocation10 [shape = 'u8[65536]{0}', space=vmem, size = 0x10000, scoped, tag = 'output window, operand 0, single buffered']
    %10 = vsyncpa [#allocation3], 0
    %11 = vsyncpa [#allocation6], 0
    %12 = vsyncpa [#allocation9], 0
    %13 = vsyncpa [#allocation4], 0
    // Predicated region
    $region2: #{tpu_custom_call.1} parent=1 // pred_check
      _
    $region3: #{tpu_custom_call.1} parent=1 // pred_check_branch
      %15 = sbr.rel (0) target = $region5
    $region4: #{tpu_custom_call.1} parent=1 // pred_region
      %s17 = ssub.s32 2048, 2048
      %18 = vsyncadd [#allocation3], %s17
      %s19 = sshll.u32 [#allocation2], 4
      %s20 = int_to_ptr.vmem [resolvable:$true] %s19
      %25 = dma.hbm_to_vmem [thread:$0]  %s0, 2048, %s20, [#allocation3], 128, 128, 8
    $region5: #{tpu_custom_call.1} parent=1 // pred_fallthru
      _
    // Predicated region
    $region6: #{tpu_custom_call.1} parent=1 // pred_check
      _
    $region7: #{tpu_custom_call.1} parent=1 // pred_check_branch
      %27 = sbr.rel (0) target = $region9
    $region8: #{tpu_custom_call.1} parent=1 // pred_region
      %s29 = ssub.s32 512, 512
      %30 = vsyncadd [#allocation6], %s29
      %s31 = sshll.u32 [#allocation5], 4
      %s32 = int_to_ptr.vmem [resolvable:$true] %s31
      %37 = dma.hbm_to_vmem [thread:$0]  %s1, 512, %s32, [#allocation6], 128, 128, 8
    $region9: #{tpu_custom_call.1} parent=1 // pred_fallthru
      _
    // Predicated region
    $region10: #{tpu_custom_call.1} parent=1 // pred_check
      _
    $region11: #{tpu_custom_call.1} parent=1 // pred_check_branch
      %39 = sbr.rel (0) target = $region13
    $region12: #{tpu_custom_call.1} parent=1 // pred_region
      %s41 = ssub.s32 512, 512
      %42 = vsyncadd [#allocation6], %s41
      %s43 = sshll.u32 [#allocation7], 4
      %s44 = int_to_ptr.vmem [resolvable:$true] %s43
      %49 = dma.hbm_to_vmem [thread:$0]  %s2, 512, %s44, [#allocation6], 128, 128, 8
    $region13: #{tpu_custom_call.1} parent=1 // pred_fallthru
      _
    // Predicated region
    $region14: #{tpu_custom_call.1} parent=1 // pred_check
      _
    $region15: #{tpu_custom_call.1} parent=1 // pred_check_branch
      %51 = sbr.rel (0) target = $region17
    $region16: #{tpu_custom_call.1} parent=1 // pred_region
      %s53 = ssub.s32 512, 512
      %54 = vsyncadd [#allocation9], %s53
      %s55 = sshll.u32 [#allocation8], 4
      %s56 = int_to_ptr.vmem [resolvable:$true] %s55
      %61 = dma.hbm_to_vmem [thread:$0]  %s3, 512, %s56, [#allocation9], 128, 128, 8
    $region17: #{tpu_custom_call.1} parent=1 // pred_fallthru
      _
    // Predicated region
    $region18: #{tpu_custom_call.1} parent=1 // pred_check
      _
    $region19: #{tpu_custom_call.1} parent=1 // pred_check_branch
      %63 = sbr.rel (0) target = $region21
    $region20: #{tpu_custom_call.1} parent=1 // pred_region
      _
    $region21: #{tpu_custom_call.1} parent=1 // pred_fallthru
      _
    // Predicated region
    $region22: #{tpu_custom_call.1} parent=1 // pred_check
      _
    $region23: #{tpu_custom_call.1} parent=1 // pred_check_branch
      %65 = sbr.rel (0) target = $region25
    $region24: #{tpu_custom_call.1} parent=1 // pred_region
      %66 = dma.done [#allocation3], 2048
    $region25: #{tpu_custom_call.1} parent=1 // pred_fallthru
      _
    // Predicated region
    $region26: #{tpu_custom_call.1} parent=1 // pred_check
      _
    $region27: #{tpu_custom_call.1} parent=1 // pred_check_branch
      %68 = sbr.rel (0) target = $region29
    $region28: #{tpu_custom_call.1} parent=1 // pred_region
      %69 = dma.done [#allocation6], 512
    $region29: #{tpu_custom_call.1} parent=1 // pred_fallthru
      _
    // Predicated region
    $region30: #{tpu_custom_call.1} parent=1 // pred_check
      _
    $region31: #{tpu_custom_call.1} parent=1 // pred_check_branch
      %71 = sbr.rel (0) target = $region33
    $region32: #{tpu_custom_call.1} parent=1 // pred_region
      %72 = dma.done [#allocation6], 512
    $region33: #{tpu_custom_call.1} parent=1 // pred_fallthru
      _
    // Predicated region
    $region34: #{tpu_custom_call.1} parent=1 // pred_check
      _
    $region35: #{tpu_custom_call.1} parent=1 // pred_check_branch
      %74 = sbr.rel (0) target = $region37
    $region36: #{tpu_custom_call.1} parent=1 // pred_region
      %75 = dma.done [#allocation9], 512
    $region37: #{tpu_custom_call.1} parent=1 // pred_fallthru
      _
    %v76 = vld [vmem:[#allocation5] sm:$0xff]
    %v77 = vld [vmem:[#allocation5 + $0x8] sm:$0xff]
    %v78 = vld [vmem:[#allocation5 + $0x10] sm:$0xff]
    %v79 = vld [vmem:[#allocation5 + $0x18] sm:$0xff]
    %v80 = vld [vmem:[#allocation7] sm:$0xff]
    %v81 = vld [vmem:[#allocation7 + $0x8] sm:$0xff]
    %v82 = vld [vmem:[#allocation7 + $0x10] sm:$0xff]
    %v83 = vld [vmem:[#allocation7 + $0x18] sm:$0xff]
    %v84 = vld [vmem:[#allocation8] sm:$0xff]
    %v85 = vld [vmem:[#allocation8 + $0x8] sm:$0xff]
    %v86 = vld [vmem:[#allocation8 + $0x10] sm:$0xff]
    %v87 = vld [vmem:[#allocation8 + $0x18] sm:$0xff]
    %v88 = vld [vmem:[%s4] sm:$0x1]
    %v90 = vlaneseq
    %v91 = vshrl.u32 %v90, 7
    %v92 = vsub.s32 0, %v91
    %v93 = vrot.slane %v88, %v92
    %v95 = vld [vmem:[#allocation2] sm:$0xff]
    %vm96 = vcmask 261120
    %v98 = vsel %vm96, 0.0, 0
    %100 = vmatprep.subr.mxu0 0.0
    %101 = vmatpush1.msra.mxu0 %v76
    %102 = vmatprep.subr.mxu0 0.0
    %103 = vmatpush1.msra.mxu0 %v77
    %104 = vmatprep.subr.mxu0 0.0
    %105 = vmatpush1.msra.mxu0 %v78
    %106 = vmatprep.subr.mxu0 0.0
    %107 = vmatpush1.msra.mxu0 %v79
    %108 = vmatprep.subr.mxu0 0.0
    %109 = vmatpush1.msra.mxu0 0.0
    %110 = vmatprep.subr.mxu0 0.0
    %111 = vmatpush1.msra.mxu0 0.0
    %112 = vmatprep.subr.mxu0 0.0
    %113 = vmatpush1.msra.mxu0 0.0
    %114 = vmatprep.subr.mxu0 0.0
    %115 = vmatpush1.msra.mxu0 0.0
    %116 = vmatprep.subr.mxu0 0.0
    %117 = vmatpush1.msra.mxu0 0.0
    %118 = vmatprep.subr.mxu0 0.0
    %119 = vmatpush1.msra.mxu0 0.0
    %120 = vmatprep.subr.mxu0 0.0
    %121 = vmatpush1.msra.mxu0 0.0
    %122 = vmatprep.subr.mxu0 0.0
    %123 = vmatpush1.msra.mxu0 0.0
    %124 = vmatprep.subr.mxu0 0.0
    %125 = vmatpush1.msra.mxu0 0.0
    %126 = vmatprep.subr.mxu0 0.0
    %127 = vmatpush1.msra.mxu0 0.0
    %128 = vmatprep.subr.mxu0 0.0
    %129 = vmatpush1.msra.mxu0 0.0
    %130 = vmatprep.subr.mxu0 0.0
    %131 = vmatpush1.msra.mxu0 0.0
    %132 = vmatprep.subr.mxu0 0.0
    %133 = vmatpush1.msra.mxu0 0.0
    %134 = vmatprep.subr.mxu0 0.0
    %135 = vmatpush1.msra.mxu0 0.0
    %136 = vmatprep.subr.mxu0 0.0
    %137 = vmatpush1.msra.mxu0 0.0
    %138 = vmatprep.subr.mxu0 0.0
    %139 = vmatpush1.msra.mxu0 0.0
    %140 = vmatprep.subr.mxu0 0.0
    %141 = vmatpush1.msra.mxu0 0.0
    %142 = vmatprep.subr.mxu0 0.0
    %143 = vmatpush1.msra.mxu0 0.0
    %144 = vmatprep.subr.mxu0 0.0
    %145 = vmatpush1.msra.mxu0 0.0
    %146 = vmatprep.subr.mxu0 0.0
    %147 = vmatpush1.msra.mxu0 0.0
    %148 = vmatprep.subr.mxu0 0.0
    %149 = vmatpush1.msra.mxu0 0.0
    %150 = vmatprep.subr.mxu0 0.0
    %151 = vmatpush1.msra.mxu0 0.0
    %152 = vmatprep.subr.mxu0 0.0
    %153 = vmatpush1.msra.mxu0 0.0
    %154 = vmatprep.subr.mxu0 0.0
    %155 = vmatpush1.msra.mxu0 0.0
    %156 = vmatprep.subr.mxu0 0.0
    %157 = vmatpush1.msra.mxu0 0.0
    %158 = vmatprep.subr.mxu0 0.0
    %159 = vmatpush1.msra.mxu0 0.0
    %160 = vmatprep.subr.mxu0 0.0
    %161 = vmatpush1.msra.mxu0 0.0
    %162 = vmatprep.subr.mxu0 0.0
    %163 = vmatpush1.msra.mxu0 0.0
    %164 = vmatprep.mubr.f32.mxu0 0.0
    %165 = vmatmul.mubr.f32.gmra.mrb[0].mxu0 %v98
    %v166 = vpop.f32.mrb[0].mxu0
    %v167 = vadd.f32 0.0, %v166
    %v168 = vpop.f32.mrb[0].mxu0
    %169 = vdwg.mxu0
    %v170 = vadd.f32 %v95, %v167
    %v171 = vmul.f32 %v170, 0.5
    %v172 = vtanh.pop %v171
    %v173 = vadd.f32 %v172, 1.0
    %v174 = vmul.f32 %v173, 0.5
    %v175 = vtanh.pop %v170
    %v176 = vmul.f32 %v174, 0.0
    %178 = vrot.lane.b32.xlu0 %v175, 64
    %v179 = vpop.permute.xlu0 %178
    %v181 = vmul.f32 %v174, %v179
    %183 = vrot.lane.b32.xlu0 %v181, 32
    %v184 = vpop.permute.xlu0 %183
    %v186 = vadd.f32 %v176, %v184
    %v187 = vtanh.pop %v186
    %189 = vrot.lane.b32.xlu0 %v187, 64
    %v190 = vpop.permute.xlu0 %189
    %v192 = vmul.f32 %v174, %v190
    %193 = vmatprep.subr.mxu0 0.0
    %194 = vmatpush1.msra.mxu0 %v84
    %195 = vmatprep.subr.mxu0 0.0
    %196 = vmatpush1.msra.mxu0 %v85
    %197 = vmatprep.subr.mxu0 0.0
    %198 = vmatpush1.msra.mxu0 %v86
    %199 = vmatprep.subr.mxu0 0.0
    %200 = vmatpush1.msra.mxu0 %v87
    %201 = vmatprep.subr.mxu0 0.0
    %202 = vmatpush1.msra.mxu0 0.0
    %203 = vmatprep.subr.mxu0 0.0
    %204 = vmatpush1.msra.mxu0 0.0
    %205 = vmatprep.subr.mxu0 0.0
    %206 = vmatpush1.msra.mxu0 0.0
    %207 = vmatprep.subr.mxu0 0.0
    %208 = vmatpush1.msra.mxu0 0.0
    %209 = vmatprep.subr.mxu0 0.0
    %210 = vmatpush1.msra.mxu0 0.0
    %211 = vmatprep.subr.mxu0 0.0
    %212 = vmatpush1.msra.mxu0 0.0
    %213 = vmatprep.subr.mxu0 0.0
    %214 = vmatpush1.msra.mxu0 0.0
    %215 = vmatprep.subr.mxu0 0.0
    %216 = vmatpush1.msra.mxu0 0.0
    %217 = vmatprep.subr.mxu0 0.0
    %218 = vmatpush1.msra.mxu0 0.0
    %219 = vmatprep.subr.mxu0 0.0
    %220 = vmatpush1.msra.mxu0 0.0
    %221 = vmatprep.subr.mxu0 0.0
    %222 = vmatpush1.msra.mxu0 0.0
    %223 = vmatprep.subr.mxu0 0.0
    %224 = vmatpush1.msra.mxu0 0.0
    %225 = vmatprep.subr.mxu0 0.0
    %226 = vmatpush1.msra.mxu0 0.0
    %227 = vmatprep.subr.mxu0 0.0
    %228 = vmatpush1.msra.mxu0 0.0
    %229 = vmatprep.subr.mxu0 0.0
    %230 = vmatpush1.msra.mxu0 0.0
    %231 = vmatprep.subr.mxu0 0.0
    %232 = vmatpush1.msra.mxu0 0.0
    %233 = vmatprep.subr.mxu0 0.0
    %234 = vmatpush1.msra.mxu0 0.0
    %235 = vmatprep.subr.mxu0 0.0
    %236 = vmatpush1.msra.mxu0 0.0
    %237 = vmatprep.subr.mxu0 0.0
    %238 = vmatpush1.msra.mxu0 0.0
    %239 = vmatprep.subr.mxu0 0.0
    %240 = vmatpush1.msra.mxu0 0.0
    %241 = vmatprep.subr.mxu0 0.0
    %242 = vmatpush1.msra.mxu0 0.0
    %243 = vmatprep.subr.mxu0 0.0
    %244 = vmatpush1.msra.mxu0 0.0
    %245 = vmatprep.subr.mxu0 0.0
    %246 = vmatpush1.msra.mxu0 0.0
    %247 = vmatprep.subr.mxu0 0.0
    %248 = vmatpush1.msra.mxu0 0.0
    %249 = vmatprep.subr.mxu0 0.0
    %250 = vmatpush1.msra.mxu0 0.0
    %251 = vmatprep.subr.mxu0 0.0
    %252 = vmatpush1.msra.mxu0 0.0
    %253 = vmatprep.subr.mxu0 0.0
    %254 = vmatpush1.msra.mxu0 0.0
    %255 = vmatprep.subr.mxu0 0.0
    %256 = vmatpush1.msra.mxu0 0.0
    %257 = vmatprep.mubr.f32.mxu0 0.0
    %258 = vmatmul.mubr.f32.gmra.mrb[0].mxu0 %v98
    %v259 = vpop.f32.mrb[0].mxu0
    %v260 = vadd.f32 0.0, %v259
    %v261 = vpop.f32.mrb[0].mxu0
    %262 = vdwg.mxu0
    %264 = vrot.lane.b32.xlu0 %v192, 32
    %v265 = vpop.permute.xlu0 %264
    %v266 = vsel %vm96, %v265, 0
    %268 = vmatprep.subr.mxu0 0.0
    %269 = vmatpush1.msra.mxu0 %v80
    %270 = vmatprep.subr.mxu0 0.0
    %271 = vmatpush1.msra.mxu0 %v81
    %272 = vmatprep.subr.mxu0 0.0
    %273 = vmatpush1.msra.mxu0 %v82
    %274 = vmatprep.subr.mxu0 0.0
    %275 = vmatpush1.msra.mxu0 %v83
    %276 = vmatprep.subr.mxu0 0.0
    %277 = vmatpush1.msra.mxu0 0.0
    %278 = vmatprep.subr.mxu0 0.0
    %279 = vmatpush1.msra.mxu0 0.0
    %280 = vmatprep.subr.mxu0 0.0
    %281 = vmatpush1.msra.mxu0 0.0
    %282 = vmatprep.subr.mxu0 0.0
    %283 = vmatpush1.msra.mxu0 0.0
    %284 = vmatprep.subr.mxu0 0.0
    %285 = vmatpush1.msra.mxu0 0.0
    %286 = vmatprep.subr.mxu0 0.0
    %287 = vmatpush1.msra.mxu0 0.0
    %288 = vmatprep.subr.mxu0 0.0
    %289 = vmatpush1.msra.mxu0 0.0
    %290 = vmatprep.subr.mxu0 0.0
    %291 = vmatpush1.msra.mxu0 0.0
    %292 = vmatprep.subr.mxu0 0.0
    %293 = vmatpush1.msra.mxu0 0.0
    %294 = vmatprep.subr.mxu0 0.0
    %295 = vmatpush1.msra.mxu0 0.0
    %296 = vmatprep.subr.mxu0 0.0
    %297 = vmatpush1.msra.mxu0 0.0
    %298 = vmatprep.subr.mxu0 0.0
    %299 = vmatpush1.msra.mxu0 0.0
    %300 = vmatprep.subr.mxu0 0.0
    %301 = vmatpush1.msra.mxu0 0.0
    %302 = vmatprep.subr.mxu0 0.0
    %303 = vmatpush1.msra.mxu0 0.0
    %304 = vmatprep.subr.mxu0 0.0
    %305 = vmatpush1.msra.mxu0 0.0
    %306 = vmatprep.subr.mxu0 0.0
    %307 = vmatpush1.msra.mxu0 0.0
    %308 = vmatprep.subr.mxu0 0.0
    %309 = vmatpush1.msra.mxu0 0.0
    %310 = vmatprep.subr.mxu0 0.0
    %311 = vmatpush1.msra.mxu0 0.0
    %312 = vmatprep.subr.mxu0 0.0
    %313 = vmatpush1.msra.mxu0 0.0
    %314 = vmatprep.subr.mxu0 0.0
    %315 = vmatpush1.msra.mxu0 0.0
    %316 = vmatprep.subr.mxu0 0.0
    %317 = vmatpush1.msra.mxu0 0.0
    %318 = vmatprep.subr.mxu0 0.0
    %319 = vmatpush1.msra.mxu0 0.0
    %320 = vmatprep.subr.mxu0 0.0
    %321 = vmatpush1.msra.mxu0 0.0
    %322 = vmatprep.subr.mxu0 0.0
    %323 = vmatpush1.msra.mxu0 0.0
    %324 = vmatprep.subr.mxu0 0.0
    %325 = vmatpush1.msra.mxu0 0.0
    %326 = vmatprep.subr.mxu0 0.0
    %327 = vmatpush1.msra.mxu0 0.0
    %328 = vmatprep.subr.mxu0 0.0
    %329 = vmatpush1.msra.mxu0 0.0
    %330 = vmatprep.subr.mxu0 0.0
    %331 = vmatpush1.msra.mxu0 0.0
    %332 = vmatprep.mubr.f32.mxu0 0.0
    %333 = vmatmul.mubr.f32.gmra.mrb[0].mxu0 %v266
    %v334 = vpop.f32.mrb[0].mxu0
    %v335 = vadd.f32 %v260, %v334
    %v336 = vpop.f32.mrb[0].mxu0
    %337 = vdwg.mxu0
    %v338 = vadd.f32 %v335, %v93
    %v339 = vmul.f32 %v338, 0.5
    %v340 = vtanh.pop %v339
    %v341 = vadd.f32 %v340, 1.0
    %v342 = vmul.f32 %v341, 0.5
    %v343 = vtanh.pop %v338
    %v344 = vmul.f32 %v342, 0.0
    %346 = vrot.lane.b32.xlu0 %v343, 64
    %v347 = vpop.permute.xlu0 %346
    %v349 = vmul.f32 %v342, %v347
    %351 = vrot.lane.b32.xlu0 %v349, 32
    %v352 = vpop.permute.xlu0 %351
    %v354 = vadd.f32 %v344, %v352
    %v355 = vtanh.pop %v354
    %357 = vrot.lane.b32.xlu0 %v355, 64
    %v358 = vpop.permute.xlu0 %357
    %v360 = vmul.f32 %v342, %v358
    %362 = vrot.lane.b32.xlu0 %v360, 32
    %v363 = vpop.permute.xlu0 %362
    %365 = vst.msk [vmem:[#allocation10] sm:$0xff] %vm96, %v363
    %s366 = scalar_lea.vmem [#allocation2], 8
    %v367 = vld [vmem:[%s366] sm:$0xff]
    %368 = vmatprep.subr.mxu0 0.0
    %369 = vmatpush1.msra.mxu0 %v76
    %370 = vmatprep.subr.mxu0 0.0
    %371 = vmatpush1.msra.mxu0 %v77
    %372 = vmatprep.subr.mxu0 0.0
    %373 = vmatpush1.msra.mxu0 %v78
    %374 = vmatprep.subr.mxu0 0.0
    %375 = vmatpush1.msra.mxu0 %v79
    %376 = vmatprep.subr.mxu0 0.0
    %377 = vmatpush1.msra.mxu0 0.0
    %378 = vmatprep.subr.mxu0 0.0
    %379 = vmatpush1.msra.mxu0 0.0
    %380 = vmatprep.subr.mxu0 0.0
    %381 = vmatpush1.msra.mxu0 0.0
    %382 = vmatprep.subr.mxu0 0.0
    %383 = vmatpush1.msra.mxu0 0.0
    %384 = vmatprep.subr.mxu0 0.0
    %385 = vmatpush1.msra.mxu0 0.0
    %386 = vmatprep.subr.mxu0 0.0
    %387 = vmatpush1.msra.mxu0 0.0
    %388 = vmatprep.subr.mxu0 0.0
    %389 = vmatpush1.msra.mxu0 0.0
    %390 = vmatprep.subr.mxu0 0.0
    %391 = vmatpush1.msra.mxu0 0.0
    %392 = vmatprep.subr.mxu0 0.0
    %393 = vmatpush1.msra.mxu0 0.0
    %394 = vmatprep.subr.mxu0 0.0
    %395 = vmatpush1.msra.mxu0 0.0
    %396 = vmatprep.subr.mxu0 0.0
    %397 = vmatpush1.msra.mxu0 0.0
    %398 = vmatprep.subr.mxu0 0.0
    %399 = vmatpush1.msra.mxu0 0.0
    %400 = vmatprep.subr.mxu0 0.0
    %401 = vmatpush1.msra.mxu0 0.0
    %402 = vmatprep.subr.mxu0 0.0
    %403 = vmatpush1.msra.mxu0 0.0
    %404 = vmatprep.subr.mxu0 0.0
    %405 = vmatpush1.msra.mxu0 0.0
    %406 = vmatprep.subr.mxu0 0.0
    %407 = vmatpush1.msra.mxu0 0.0
    %408 = vmatprep.subr.mxu0 0.0
    %409 = vmatpush1.msra.mxu0 0.0
    %410 = vmatprep.subr.mxu0 0.0
    %411 = vmatpush1.msra.mxu0 0.0
    %412 = vmatprep.subr.mxu0 0.0
    %413 = vmatpush1.msra.mxu0 0.0
    %414 = vmatprep.subr.mxu0 0.0
    %415 = vmatpush1.msra.mxu0 0.0
    %416 = vmatprep.subr.mxu0 0.0
    %417 = vmatpush1.msra.mxu0 0.0
    %418 = vmatprep.subr.mxu0 0.0
    %419 = vmatpush1.msra.mxu0 0.0
    %420 = vmatprep.subr.mxu0 0.0
    %421 = vmatpush1.msra.mxu0 0.0
    %422 = vmatprep.subr.mxu0 0.0
    %423 = vmatpush1.msra.mxu0 0.0
    %424 = vmatprep.subr.mxu0 0.0
    %425 = vmatpush1.msra.mxu0 0.0
    %426 = vmatprep.subr.mxu0 0.0
    %427 = vmatpush1.msra.mxu0 0.0
    %428 = vmatprep.subr.mxu0 0.0
    %429 = vmatpush1.msra.mxu0 0.0
    %430 = vmatprep.subr.mxu0 0.0
    %431 = vmatpush1.msra.mxu0 0.0
    %432 = vmatprep.mubr.f32.mxu0 0.0
    %433 = vmatmul.mubr.f32.gmra.mrb[0].mxu0 %v266
    %v434 = vpop.f32.mrb[0].mxu0
    %v435 = vadd.f32 0.0, %v434
    %v436 = vpop.f32.mrb[0].mxu0
    %437 = vdwg.mxu0
    %v438 = vadd.f32 %v367, %v435
    %v439 = vmul.f32 %v438, 0.5
    %v440 = vtanh.pop %v439
    %v441 = vadd.f32 %v440, 1.0
    %v442 = vmul.f32 %v441, 0.5
    %v443 = vtanh.pop %v438
    %v444 = vmul.f32 %v442, %v186
    %446 = vrot.lane.b32.xlu0 %v443, 64
    %v447 = vpop.permute.xlu0 %446
    %v449 = vmul.f32 %v442, %v447
    %451 = vrot.lane.b32.xlu0 %v449, 32
    %v452 = vpop.permute.xlu0 %451
    %v454 = vadd.f32 %v444, %v452
    %v455 = vtanh.pop %v454
    %457 = vrot.lane.b32.xlu0 %v455, 64
    %v458 = vpop.permute.xlu0 %457
    %v460 = vmul.f32 %v442, %v458
    %v461 = vsel %vm96, %v363, 0
    %463 = vmatprep.subr.mxu0 0.0
    %464 = vmatpush1.msra.mxu0 %v84
    %465 = vmatprep.subr.mxu0 0.0
    %466 = vmatpush1.msra.mxu0 %v85
    %467 = vmatprep.subr.mxu0 0.0
    %468 = vmatpush1.msra.mxu0 %v86
    %469 = vmatprep.subr.mxu0 0.0
    %470 = vmatpush1.msra.mxu0 %v87
    %471 = vmatprep.subr.mxu0 0.0
    %472 = vmatpush1.msra.mxu0 0.0
    %473 = vmatprep.subr.mxu0 0.0
    %474 = vmatpush1.msra.mxu0 0.0
    %475 = vmatprep.subr.mxu0 0.0
    %476 = vmatpush1.msra.mxu0 0.0
    %477 = vmatprep.subr.mxu0 0.0
    %478 = vmatpush1.msra.mxu0 0.0
    %479 = vmatprep.subr.mxu0 0.0
    %480 = vmatpush1.msra.mxu0 0.0
    %481 = vmatprep.subr.mxu0 0.0
    %482 = vmatpush1.msra.mxu0 0.0
    %483 = vmatprep.subr.mxu0 0.0
    %484 = vmatpush1.msra.mxu0 0.0
    %485 = vmatprep.subr.mxu0 0.0
    %486 = vmatpush1.msra.mxu0 0.0
    %487 = vmatprep.subr.mxu0 0.0
    %488 = vmatpush1.msra.mxu0 0.0
    %489 = vmatprep.subr.mxu0 0.0
    %490 = vmatpush1.msra.mxu0 0.0
    %491 = vmatprep.subr.mxu0 0.0
    %492 = vmatpush1.msra.mxu0 0.0
    %493 = vmatprep.subr.mxu0 0.0
    %494 = vmatpush1.msra.mxu0 0.0
    %495 = vmatprep.subr.mxu0 0.0
    %496 = vmatpush1.msra.mxu0 0.0
    %497 = vmatprep.subr.mxu0 0.0
    %498 = vmatpush1.msra.mxu0 0.0
    %499 = vmatprep.subr.mxu0 0.0
    %500 = vmatpush1.msra.mxu0 0.0
    %501 = vmatprep.subr.mxu0 0.0
    %502 = vmatpush1.msra.mxu0 0.0
    %503 = vmatprep.subr.mxu0 0.0
    %504 = vmatpush1.msra.mxu0 0.0
    %505 = vmatprep.subr.mxu0 0.0
    %506 = vmatpush1.msra.mxu0 0.0
    %507 = vmatprep.subr.mxu0 0.0
    %508 = vmatpush1.msra.mxu0 0.0
    %509 = vmatprep.subr.mxu0 0.0
    %510 = vmatpush1.msra.mxu0 0.0
    %511 = vmatprep.subr.mxu0 0.0
    %512 = vmatpush1.msra.mxu0 0.0
    %513 = vmatprep.subr.mxu0 0.0
    %514 = vmatpush1.msra.mxu0 0.0
    %515 = vmatprep.subr.mxu0 0.0
    %516 = vmatpush1.msra.mxu0 0.0
    %517 = vmatprep.subr.mxu0 0.0
    %518 = vmatpush1.msra.mxu0 0.0
    %519 = vmatprep.subr.mxu0 0.0
    %520 = vmatpush1.msra.mxu0 0.0
    %521 = vmatprep.subr.mxu0 0.0
    %522 = vmatpush1.msra.mxu0 0.0
    %523 = vmatprep.subr.mxu0 0.0
    %524 = vmatpush1.msra.mxu0 0.0
    %525 = vmatprep.subr.mxu0 0.0
    %526 = vmatpush1.msra.mxu0 0.0
    %527 = vmatprep.mubr.f32.mxu0 0.0
    %528 = vmatmul.mubr.f32.gmra.mrb[0].mxu0 %v461
    %v529 = vpop.f32.mrb[0].mxu0
    %v530 = vadd.f32 0.0, %v529
    %v531 = vpop.f32.mrb[0].mxu0
    %532 = vdwg.mxu0
    %534 = vrot.lane.b32.xlu0 %v460, 32
    %v535 = vpop.permute.xlu0 %534
    %v536 = vsel %vm96, %v535, 0
    %538 = vmatprep.subr.mxu0 0.0
    %539 = vmatpush1.msra.mxu0 %v80
    %540 = vmatprep.subr.mxu0 0.0
    %541 = vmatpush1.msra.mxu0 %v81
    %542 = vmatprep.subr.mxu0 0.0
    %543 = vmatpush1.msra.mxu0 %v82
    %544 = vmatprep.subr.mxu0 0.0
    %545 = vmatpush1.msra.mxu0 %v83
    %546 = vmatprep.subr.mxu0 0.0
    %547 = vmatpush1.msra.mxu0 0.0
    %548 = vmatprep.subr.mxu0 0.0
    %549 = vmatpush1.msra.mxu0 0.0
    %550 = vmatprep.subr.mxu0 0.0
    %551 = vmatpush1.msra.mxu0 0.0
    %552 = vmatprep.subr.mxu0 0.0
    %553 = vmatpush1.msra.mxu0 0.0
    %554 = vmatprep.subr.mxu0 0.0
    %555 = vmatpush1.msra.mxu0 0.0
    %556 = vmatprep.subr.mxu0 0.0
    %557 = vmatpush1.msra.mxu0 0.0
    %558 = vmatprep.subr.mxu0 0.0
    %559 = vmatpush1.msra.mxu0 0.0
    %560 = vmatprep.subr.mxu0 0.0
    %561 = vmatpush1.msra.mxu0 0.0
    %562 = vmatprep.subr.mxu0 0.0
    %563 = vmatpush1.msra.mxu0 0.0
    %564 = vmatprep.subr.mxu0 0.0
    %565 = vmatpush1.msra.mxu0 0.0
    %566 = vmatprep.subr.mxu0 0.0
    %567 = vmatpush1.msra.mxu0 0.0
    %568 = vmatprep.subr.mxu0 0.0
    %569 = vmatpush1.msra.mxu0 0.0
    %570 = vmatprep.subr.mxu0 0.0
    %571 = vmatpush1.msra.mxu0 0.0
    %572 = vmatprep.subr.mxu0 0.0
    %573 = vmatpush1.msra.mxu0 0.0
    %574 = vmatprep.subr.mxu0 0.0
    %575 = vmatpush1.msra.mxu0 0.0
    %576 = vmatprep.subr.mxu0 0.0
    %577 = vmatpush1.msra.mxu0 0.0
    %578 = vmatprep.subr.mxu0 0.0
    %579 = vmatpush1.msra.mxu0 0.0
    %580 = vmatprep.subr.mxu0 0.0
    %581 = vmatpush1.msra.mxu0 0.0
    %582 = vmatprep.subr.mxu0 0.0
    %583 = vmatpush1.msra.mxu0 0.0
    %584 = vmatprep.subr.mxu0 0.0
    %585 = vmatpush1.msra.mxu0 0.0
    %586 = vmatprep.subr.mxu0 0.0
    %587 = vmatpush1.msra.mxu0 0.0
    %588 = vmatprep.subr.mxu0 0.0
    %589 = vmatpush1.msra.mxu0 0.0
    %590 = vmatprep.subr.mxu0 0.0
    %591 = vmatpush1.msra.mxu0 0.0
    %592 = vmatprep.subr.mxu0 0.0
    %593 = vmatpush1.msra.mxu0 0.0
    %594 = vmatprep.subr.mxu0 0.0
    %595 = vmatpush1.msra.mxu0 0.0
    %596 = vmatprep.subr.mxu0 0.0
    %597 = vmatpush1.msra.mxu0 0.0
    %598 = vmatprep.subr.mxu0 0.0
    %599 = vmatpush1.msra.mxu0 0.0
    %600 = vmatprep.subr.mxu0 0.0
    %601 = vmatpush1.msra.mxu0 0.0
    %602 = vmatprep.mubr.f32.mxu0 0.0
    %603 = vmatmul.mubr.f32.gmra.mrb[0].mxu0 %v536
    %v604 = vpop.f32.mrb[0].mxu0
    %v605 = vadd.f32 %v530, %v604
    %v606 = vpop.f32.mrb[0].mxu0
    %607 = vdwg.mxu0
    %v608 = vadd.f32 %v605, %v93
    %v609 = vmul.f32 %v608, 0.5
    %v610 = vtanh.pop %v609
    %v611 = vadd.f32 %v610, 1.0
    %v612 = vmul.f32 %v611, 0.5
    %v613 = vtanh.pop %v608
    %v614 = vmul.f32 %v612, %v354
    %616 = vrot.lane.b32.xlu0 %v613, 64
    %v617 = vpop.permute.xlu0 %616
    %v619 = vmul.f32 %v612, %v617
    %621 = vrot.lane.b32.xlu0 %v619, 32
    %v622 = vpop.permute.xlu0 %621
    %v624 = vadd.f32 %v614, %v622
    %v625 = vtanh.pop %v624
    %627 = vrot.lane.b32.xlu0 %v625, 64
    %v628 = vpop.permute.xlu0 %627
    %v630 = vmul.f32 %v612, %v628
    %632 = vrot.lane.b32.xlu0 %v630, 32
    %v633 = vpop.permute.xlu0 %632
    %s635 = scalar_lea.vmem [#allocation10], 8
    %636 = vst.msk [vmem:[%s635] sm:$0xff] %vm96, %v633
    %s637 = scalar_lea.vmem [#allocation2], 16
    %v638 = vld [vmem:[%s637] sm:$0xff]
    %639 = vmatprep.subr.mxu0 0.0
    %640 = vmatpush1.msra.mxu0 %v76
    %641 = vmatprep.subr.mxu0 0.0
    %642 = vmatpush1.msra.mxu0 %v77
    %643 = vmatprep.subr.mxu0 0.0
    %644 = vmatpush1.msra.mxu0 %v78
    %645 = vmatprep.subr.mxu0 0.0
    %646 = vmatpush1.msra.mxu0 %v79
    %647 = vmatprep.subr.mxu0 0.0
    %648 = vmatpush1.msra.mxu0 0.0
    %649 = vmatprep.subr.mxu0 0.0
    %650 = vmatpush1.msra.mxu0 0.0
    %651 = vmatprep.subr.mxu0 0.0
    %652 = vmatpush1.msra.mxu0 0.0
    %653 = vmatprep.subr.mxu0 0.0
    %654 = vmatpush1.msra.mxu0 0.0
    %655 = vmatprep.subr.mxu0 0.0
    %656 = vmatpush1.msra.mxu0 0.0
    %657 = vmatprep.subr.mxu0 0.0
    %658 = vmatpush1.msra.mxu0 0.0
    %659 = vmatprep.subr.mxu0 0.0
    %660 = vmatpush1.msra.mxu0 0.0
    %661 = vmatprep.subr.mxu0 0.0
    %662 = vmatpush1.msra.mxu0 0.0
    %663 = vmatprep.subr.mxu0 0.0
    %664 = vmatpush1.msra.mxu0 0.0
    %665 = vmatprep.subr.mxu0 0.0
    %666 = vmatpush1.msra.mxu0 0.0
    %667 = vmatprep.subr.mxu0 0.0
    %668 = vmatpush1.msra.mxu0 0.0
    %669 = vmatprep.subr.mxu0 0.0
    %670 = vmatpush1.msra.mxu0 0.0
    %671 = vmatprep.subr.mxu0 0.0
    %672 = vmatpush1.msra.mxu0 0.0
    %673 = vmatprep.subr.mxu0 0.0
    %674 = vmatpush1.msra.mxu0 0.0
    %675 = vmatprep.subr.mxu0 0.0
    %676 = vmatpush1.msra.mxu0 0.0
    %677 = vmatprep.subr.mxu0 0.0
    %678 = vmatpush1.msra.mxu0 0.0
    %679 = vmatprep.subr.mxu0 0.0
    %680 = vmatpush1.msra.mxu0 0.0
    %681 = vmatprep.subr.mxu0 0.0
    %682 = vmatpush1.msra.mxu0 0.0
    %683 = vmatprep.subr.mxu0 0.0
    %684 = vmatpush1.msra.mxu0 0.0
    %685 = vmatprep.subr.mxu0 0.0
    %686 = vmatpush1.msra.mxu0 0.0
    %687 = vmatprep.subr.mxu0 0.0
    %688 = vmatpush1.msra.mxu0 0.0
    %689 = vmatprep.subr.mxu0 0.0
    %690 = vmatpush1.msra.mxu0 0.0
    %691 = vmatprep.subr.mxu0 0.0
    %692 = vmatpush1.msra.mxu0 0.0
    %693 = vmatprep.subr.mxu0 0.0
    %694 = vmatpush1.msra.mxu0 0.0
    %695 = vmatprep.subr.mxu0 0.0
    %696 = vmatpush1.msra.mxu0 0.0
    %697 = vmatprep.subr.mxu0 0.0
    %698 = vmatpush1.msra.mxu0 0.0
    %699 = vmatprep.subr.mxu0 0.0
    %700 = vmatpush1.msra.mxu0 0.0
    %701 = vmatprep.subr.mxu0 0.0
    %702 = vmatpush1.msra.mxu0 0.0
    %703 = vmatprep.mubr.f32.mxu0 0.0
    %704 = vmatmul.mubr.f32.gmra.mrb[0].mxu0 %v536
    %v705 = vpop.f32.mrb[0].mxu0
    %v706 = vadd.f32 0.0, %v705
    %v707 = vpop.f32.mrb[0].mxu0
    %708 = vdwg.mxu0
    %v709 = vadd.f32 %v638, %v706
    %v710 = vmul.f32 %v709, 0.5
    %v711 = vtanh.pop %v710
    %v712 = vadd.f32 %v711, 1.0
    %v713 = vmul.f32 %v712, 0.5
    %v714 = vtanh.pop %v709
    %v715 = vmul.f32 %v713, %v454
    %717 = vrot.lane.b32.xlu0 %v714, 64
    %v718 = vpop.permute.xlu0 %717
    %v720 = vmul.f32 %v713, %v718
    %722 = vrot.lane.b32.xlu0 %v720, 32
    %v723 = vpop.permute.xlu0 %722
    %v725 = vadd.f32 %v715, %v723
    %v726 = vtanh.pop %v725
    %728 = vrot.lane.b32.xlu0 %v726, 64
    %v729 = vpop.permute.xlu0 %728
    %v731 = vmul.f32 %v713, %v729
    %v732 = vsel %vm96, %v633, 0
    %734 = vmatprep.subr.mxu0 0.0
    %735 = vmatpush1.msra.mxu0 %v84
    %736 = vmatprep.subr.mxu0 0.0
    %737 = vmatpush1.msra.mxu0 %v85
    %738 = vmatprep.subr.mxu0 0.0
    %739 = vmatpush1.msra.mxu0 %v86
    %740 = vmatprep.subr.mxu0 0.0
    %741 = vmatpush1.msra.mxu0 %v87
    %742 = vmatprep.subr.mxu0 0.0
    %743 = vmatpush1.msra.mxu0 0.0
    %744 = vmatprep.subr.mxu0 0.0
    %745 = vmatpush1.msra.mxu0 0.0
    %746 = vmatprep.subr.mxu0 0.0
    %747 = vmatpush1.msra.mxu0 0.0
    %748 = vmatprep.subr.mxu0 0.0
    %749 = vmatpush1.msra.mxu0 0.0
    %750 = vmatprep.subr.mxu0 0.0
    %751 = vmatpush1.msra.mxu0 0.0
    %752 = vmatprep.subr.mxu0 0.0
    %753 = vmatpush1.msra.mxu0 0.0
    %754 = vmatprep.subr.mxu0 0.0
    %755 = vmatpush1.msra.mxu0 0.0
    %756 = vmatprep.subr.mxu0 0.0
    %757 = vmatpush1.msra.mxu0 0.0
    %758 = vmatprep.subr.mxu0 0.0
    %759 = vmatpush1.msra.mxu0 0.0
    %760 = vmatprep.subr.mxu0 0.0
    %761 = vmatpush1.msra.mxu0 0.0
    %762 = vmatprep.subr.mxu0 0.0
    %763 = vmatpush1.msra.mxu0 0.0
    %764 = vmatprep.subr.mxu0 0.0
    %765 = vmatpush1.msra.mxu0 0.0
    %766 = vmatprep.subr.mxu0 0.0
    %767 = vmatpush1.msra.mxu0 0.0
    %768 = vmatprep.subr.mxu0 0.0
    %769 = vmatpush1.msra.mxu0 0.0
    %770 = vmatprep.subr.mxu0 0.0
    %771 = vmatpush1.msra.mxu0 0.0
    %772 = vmatprep.subr.mxu0 0.0
    %773 = vmatpush1.msra.mxu0 0.0
    %774 = vmatprep.subr.mxu0 0.0
    %775 = vmatpush1.msra.mxu0 0.0
    %776 = vmatprep.subr.mxu0 0.0
    %777 = vmatpush1.msra.mxu0 0.0
    %778 = vmatprep.subr.mxu0 0.0
    %779 = vmatpush1.msra.mxu0 0.0
    %780 = vmatprep.subr.mxu0 0.0
    %781 = vmatpush1.msra.mxu0 0.0
    %782 = vmatprep.subr.mxu0 0.0
    %783 = vmatpush1.msra.mxu0 0.0
    %784 = vmatprep.subr.mxu0 0.0
    %785 = vmatpush1.msra.mxu0 0.0
    %786 = vmatprep.subr.mxu0 0.0
    %787 = vmatpush1.msra.mxu0 0.0
    %788 = vmatprep.subr.mxu0 0.0
    %789 = vmatpush1.msra.mxu0 0.0
    %790 = vmatprep.subr.mxu0 0.0
    %791 = vmatpush1.msra.mxu0 0.0
    %792 = vmatprep.subr.mxu0 0.0
    %793 = vmatpush1.msra.mxu0 0.0
    %794 = vmatprep.subr.mxu0 0.0
    %795 = vmatpush1.msra.mxu0 0.0
    %796 = vmatprep.subr.mxu0 0.0
    %797 = vmatpush1.msra.mxu0 0.0
    %798 = vmatprep.mubr.f32.mxu0 0.0
    %799 = vmatmul.mubr.f32.gmra.mrb[0].mxu0 %v732
    %v800 = vpop.f32.mrb[0].mxu0
    %v801 = vadd.f32 0.0, %v800
    %v802 = vpop.f32.mrb[0].mxu0
    %803 = vdwg.mxu0
    %805 = vrot.lane.b32.xlu0 %v731, 32
    %v806 = vpop.permute.xlu0 %805
    %v807 = vsel %vm96, %v806, 0
    %809 = vmatprep.subr.mxu0 0.0
    %810 = vmatpush1.msra.mxu0 %v80
    %811 = vmatprep.subr.mxu0 0.0
    %812 = vmatpush1.msra.mxu0 %v81
    %813 = vmatprep.subr.mxu0 0.0
    %814 = vmatpush1.msra.mxu0 %v82
    %815 = vmatprep.subr.mxu0 0.0
    %816 = vmatpush1.msra.mxu0 %v83
    %817 = vmatprep.subr.mxu0 0.0
    %818 = vmatpush1.msra.mxu0 0.0
    %819 = vmatprep.subr.mxu0 0.0
    %820 = vmatpush1.msra.mxu0 0.0
    %821 = vmatprep.subr.mxu0 0.0
    %822 = vmatpush1.msra.mxu0 0.0
    %823 = vmatprep.subr.mxu0 0.0
    %824 = vmatpush1.msra.mxu0 0.0
    %825 = vmatprep.subr.mxu0 0.0
    %826 = vmatpush1.msra.mxu0 0.0
    %827 = vmatprep.subr.mxu0 0.0
    %828 = vmatpush1.msra.mxu0 0.0
    %829 = vmatprep.subr.mxu0 0.0
    %830 = vmatpush1.msra.mxu0 0.0
    %831 = vmatprep.subr.mxu0 0.0
    %832 = vmatpush1.msra.mxu0 0.0
    %833 = vmatprep.subr.mxu0 0.0
    %834 = vmatpush1.msra.mxu0 0.0
    %835 = vmatprep.subr.mxu0 0.0
    %836 = vmatpush1.msra.mxu0 0.0
    %837 = vmatprep.subr.mxu0 0.0
    %838 = vmatpush1.msra.mxu0 0.0
    %839 = vmatprep.subr.mxu0 0.0
    %840 = vmatpush1.msra.mxu0 0.0
    %841 = vmatprep.subr.mxu0 0.0
    %842 = vmatpush1.msra.mxu0 0.0
    %843 = vmatprep.subr.mxu0 0.0
    %844 = vmatpush1.msra.mxu0 0.0
    %845 = vmatprep.subr.mxu0 0.0
    %846 = vmatpush1.msra.mxu0 0.0
    %847 = vmatprep.subr.mxu0 0.0
    %848 = vmatpush1.msra.mxu0 0.0
    %849 = vmatprep.subr.mxu0 0.0
    %850 = vmatpush1.msra.mxu0 0.0
    %851 = vmatprep.subr.mxu0 0.0
    %852 = vmatpush1.msra.mxu0 0.0
    %853 = vmatprep.subr.mxu0 0.0
    %854 = vmatpush1.msra.mxu0 0.0
    %855 = vmatprep.subr.mxu0 0.0
    %856 = vmatpush1.msra.mxu0 0.0
    %857 = vmatprep.subr.mxu0 0.0
    %858 = vmatpush1.msra.mxu0 0.0
    %859 = vmatprep.subr.mxu0 0.0
    %860 = vmatpush1.msra.mxu0 0.0
    %861 = vmatprep.subr.mxu0 0.0
    %862 = vmatpush1.msra.mxu0 0.0
    %863 = vmatprep.subr.mxu0 0.0
    %864 = vmatpush1.msra.mxu0 0.0
    %865 = vmatprep.subr.mxu0 0.0
    %866 = vmatpush1.msra.mxu0 0.0
    %867 = vmatprep.subr.mxu0 0.0
    %868 = vmatpush1.msra.mxu0 0.0
    %869 = vmatprep.subr.mxu0 0.0
    %870 = vmatpush1.msra.mxu0 0.0
    %871 = vmatprep.subr.mxu0 0.0
    %872 = vmatpush1.msra.mxu0 0.0
    %873 = vmatprep.mubr.f32.mxu0 0.0
    %874 = vmatmul.mubr.f32.gmra.mrb[0].mxu0 %v807
    %v875 = vpop.f32.mrb[0].mxu0
    %v876 = vadd.f32 %v801, %v875
    %v877 = vpop.f32.mrb[0].mxu0
    %878 = vdwg.mxu0
    %v879 = vadd.f32 %v876, %v93
    %v880 = vmul.f32 %v879, 0.5
    %v881 = vtanh.pop %v880
    %v882 = vadd.f32 %v881, 1.0
    %v883 = vmul.f32 %v882, 0.5
    %v884 = vtanh.pop %v879
    %v885 = vmul.f32 %v883, %v624
    %887 = vrot.lane.b32.xlu0 %v884, 64
    %v888 = vpop.permute.xlu0 %887
    %v890 = vmul.f32 %v883, %v888
    %892 = vrot.lane.b32.xlu0 %v890, 32
    %v893 = vpop.permute.xlu0 %892
    %v895 = vadd.f32 %v885, %v893
    %v896 = vtanh.pop %v895
    %898 = vrot.lane.b32.xlu0 %v896, 64
    %v899 = vpop.permute.xlu0 %898
    %v901 = vmul.f32 %v883, %v899
    %903 = vrot.lane.b32.xlu0 %v901, 32
    %v904 = vpop.permute.xlu0 %903
    %s906 = scalar_lea.vmem [#allocation10], 16
    %907 = vst.msk [vmem:[%s906] sm:$0xff] %vm96, %v904
    %s908 = scalar_lea.vmem [#allocation2], 24
    %v909 = vld [vmem:[%s908] sm:$0xff]
    %910 = vmatprep.subr.mxu0 0.0
    %911 = vmatpush1.msra.mxu0 %v76
    %912 = vmatprep.subr.mxu0 0.0
    %913 = vmatpush1.msra.mxu0 %v77
    %914 = vmatprep.subr.mxu0 0.0
    %915 = vmatpush1.msra.mxu0 %v78
    %916 = vmatprep.subr.mxu0 0.0
    %917 = vmatpush1.msra.mxu0 %v79
    %918 = vmatprep.subr.mxu0 0.0
    %919 = vmatpush1.msra.mxu0 0.0
    %920 = vmatprep.subr.mxu0 0.0
    %921 = vmatpush1.msra.mxu0 0.0
    %922 = vmatprep.subr.mxu0 0.0
    %923 = vmatpush1.msra.mxu0 0.0
    %924 = vmatprep.subr.mxu0 0.0
    %925 = vmatpush1.msra.mxu0 0.0
    %926 = vmatprep.subr.mxu0 0.0
    %927 = vmatpush1.msra.mxu0 0.0
    %928 = vmatprep.subr.mxu0 0.0
    %929 = vmatpush1.msra.mxu0 0.0
    %930 = vmatprep.subr.mxu0 0.0
    %931 = vmatpush1.msra.mxu0 0.0
    %932 = vmatprep.subr.mxu0 0.0
    %933 = vmatpush1.msra.mxu0 0.0
    %934 = vmatprep.subr.mxu0 0.0
    %935 = vmatpush1.msra.mxu0 0.0
    %936 = vmatprep.subr.mxu0 0.0
    %937 = vmatpush1.msra.mxu0 0.0
    %938 = vmatprep.subr.mxu0 0.0
    %939 = vmatpush1.msra.mxu0 0.0
    %940 = vmatprep.subr.mxu0 0.0
    %941 = vmatpush1.msra.mxu0 0.0
    %942 = vmatprep.subr.mxu0 0.0
    %943 = vmatpush1.msra.mxu0 0.0
    %944 = vmatprep.subr.mxu0 0.0
    %945 = vmatpush1.msra.mxu0 0.0
    %946 = vmatprep.subr.mxu0 0.0
    %947 = vmatpush1.msra.mxu0 0.0
    %948 = vmatprep.subr.mxu0 0.0
    %949 = vmatpush1.msra.mxu0 0.0
    %950 = vmatprep.subr.mxu0 0.0
    %951 = vmatpush1.msra.mxu0 0.0
    %952 = vmatprep.subr.mxu0 0.0
    %953 = vmatpush1.msra.mxu0 0.0
    %954 = vmatprep.subr.mxu0 0.0
    %955 = vmatpush1.msra.mxu0 0.0
    %956 = vmatprep.subr.mxu0 0.0
    %957 = vmatpush1.msra.mxu0 0.0
    %958 = vmatprep.subr.mxu0 0.0
    %959 = vmatpush1.msra.mxu0 0.0
    %960 = vmatprep.subr.mxu0 0.0
    %961 = vmatpush1.msra.mxu0 0.0
    %962 = vmatprep.subr.mxu0 0.0
    %963 = vmatpush1.msra.mxu0 0.0
    %964 = vmatprep.subr.mxu0 0.0
    %965 = vmatpush1.msra.mxu0 0.0
    %966 = vmatprep.subr.mxu0 0.0
    %967 = vmatpush1.msra.mxu0 0.0
    %968 = vmatprep.subr.mxu0 0.0
    %969 = vmatpush1.msra.mxu0 0.0
    %970 = vmatprep.subr.mxu0 0.0
    %971 = vmatpush1.msra.mxu0 0.0
    %972 = vmatprep.subr.mxu0 0.0
    %973 = vmatpush1.msra.mxu0 0.0
    %974 = vmatprep.mubr.f32.mxu0 0.0
    %975 = vmatmul.mubr.f32.gmra.mrb[0].mxu0 %v807
    %v976 = vpop.f32.mrb[0].mxu0
    %v977 = vadd.f32 0.0, %v976
    %v978 = vpop.f32.mrb[0].mxu0
    %979 = vdwg.mxu0
    %v980 = vadd.f32 %v909, %v977
    %v981 = vmul.f32 %v980, 0.5
    %v982 = vtanh.pop %v981
    %v983 = vadd.f32 %v982, 1.0
    %v984 = vmul.f32 %v983, 0.5
    %v985 = vtanh.pop %v980
    %v986 = vmul.f32 %v984, %v725
    %988 = vrot.lane.b32.xlu0 %v985, 64
    %v989 = vpop.permute.xlu0 %988
    %v991 = vmul.f32 %v984, %v989
    %993 = vrot.lane.b32.xlu0 %v991, 32
    %v994 = vpop.permute.xlu0 %993
    %v996 = vadd.f32 %v986, %v994
    %v997 = vtanh.pop %v996
    %999 = vrot.lane.b32.xlu0 %v997, 64
    %v1000 = vpop.permute.xlu0 %999
    %v1002 = vmul.f32 %v984, %v1000
    %v1003 = vsel %vm96, %v904, 0
    %1005 = vmatprep.subr.mxu0 0.0
    %1006 = vmatpush1.msra.mxu0 %v84
    %1007 = vmatprep.subr.mxu0 0.0
    %1008 = vmatpush1.msra.mxu0 %v85
    %1009 = vmatprep.subr.mxu0 0.0
    %1010 = vmatpush1.msra.mxu0 %v86
    %1011 = vmatprep.subr.mxu0 0.0
    %1012 = vmatpush1.msra.mxu0 %v87
    %1013 = vmatprep.subr.mxu0 0.0
    %1014 = vmatpush1.msra.mxu0 0.0
    %1015 = vmatprep.subr.mxu0 0.0
    %1016 = vmatpush1.msra.mxu0 0.0
    %1017 = vmatprep.subr.mxu0 0.0
    %1018 = vmatpush1.msra.mxu0 0.0
    %1019 = vmatprep.subr.mxu0 0.0
    %1020 = vmatpush1.msra.mxu0 0.0
    %1021 = vmatprep.subr.mxu0 0.0
    %1022 = vmatpush1.msra.mxu0 0.0
    %1023 = vmatprep.subr.mxu0 0.0
    %1024 = vmatpush1.msra.mxu0 0.0
    %1025 = vmatprep.subr.mxu0 0.0
    %1026 = vmatpush1.msra.mxu0 0.0
    %1027 = vmatprep.subr.mxu0 0.0
    %1028 = vmatpush1.msra.mxu0 0.0
    %1029 = vmatprep.subr.mxu0 0.0
    %1030 = vmatpush1.msra.mxu0 0.0
    %1031 = vmatprep.subr.mxu0 0.0
    %1032 = vmatpush1.msra.mxu0 0.0
    %1033 = vmatprep.subr.mxu0 0.0
    %1034 = vmatpush1.msra.mxu0 0.0
    %1035 = vmatprep.subr.mxu0 0.0
    %1036 = vmatpush1.msra.mxu0 0.0
    %1037 = vmatprep.subr.mxu0 0.0
    %1038 = vmatpush1.msra.mxu0 0.0
    %1039 = vmatprep.subr.mxu0 0.0
    %1040 = vmatpush1.msra.mxu0 0.0
    %1041 = vmatprep.subr.mxu0 0.0
    %1042 = vmatpush1.msra.mxu0 0.0
    %1043 = vmatprep.subr.mxu0 0.0
    %1044 = vmatpush1.msra.mxu0 0.0
    %1045 = vmatprep.subr.mxu0 0.0
    %1046 = vmatpush1.msra.mxu0 0.0
    %1047 = vmatprep.subr.mxu0 0.0
    %1048 = vmatpush1.msra.mxu0 0.0
    %1049 = vmatprep.subr.mxu0 0.0
    %1050 = vmatpush1.msra.mxu0 0.0
    %1051 = vmatprep.subr.mxu0 0.0
    %1052 = vmatpush1.msra.mxu0 0.0
    %1053 = vmatprep.subr.mxu0 0.0
    %1054 = vmatpush1.msra.mxu0 0.0
    %1055 = vmatprep.subr.mxu0 0.0
    %1056 = vmatpush1.msra.mxu0 0.0
    %1057 = vmatprep.subr.mxu0 0.0
    %1058 = vmatpush1.msra.mxu0 0.0
    %1059 = vmatprep.subr.mxu0 0.0
    %1060 = vmatpush1.msra.mxu0 0.0
    %1061 = vmatprep.subr.mxu0 0.0
    %1062 = vmatpush1.msra.mxu0 0.0
    %1063 = vmatprep.subr.mxu0 0.0
    %1064 = vmatpush1.msra.mxu0 0.0
    %1065 = vmatprep.subr.mxu0 0.0
    %1066 = vmatpush1.msra.mxu0 0.0
    %1067 = vmatprep.subr.mxu0 0.0
    %1068 = vmatpush1.msra.mxu0 0.0
    %1069 = vmatprep.mubr.f32.mxu0 0.0
    %1070 = vmatmul.mubr.f32.gmra.mrb[0].mxu0 %v1003
    %v1071 = vpop.f32.mrb[0].mxu0
    %v1072 = vadd.f32 0.0, %v1071
    %v1073 = vpop.f32.mrb[0].mxu0
    %1074 = vdwg.mxu0
    %1076 = vrot.lane.b32.xlu0 %v1002, 32
    %v1077 = vpop.permute.xlu0 %1076
    %v1078 = vsel %vm96, %v1077, 0
    %1080 = vmatprep.subr.mxu0 0.0
    %1081 = vmatpush1.msra.mxu0 %v80
    %1082 = vmatprep.subr.mxu0 0.0
    %1083 = vmatpush1.msra.mxu0 %v81
    %1084 = vmatprep.subr.mxu0 0.0
    %1085 = vmatpush1.msra.mxu0 %v82
    %1086 = vmatprep.subr.mxu0 0.0
    %1087 = vmatpush1.msra.mxu0 %v83
    %1088 = vmatprep.subr.mxu0 0.0
    %1089 = vmatpush1.msra.mxu0 0.0
    %1090 = vmatprep.subr.mxu0 0.0
    %1091 = vmatpush1.msra.mxu0 0.0
    %1092 = vmatprep.subr.mxu0 0.0
    %1093 = vmatpush1.msra.mxu0 0.0
    %1094 = vmatprep.subr.mxu0 0.0
    %1095 = vmatpush1.msra.mxu0 0.0
    %1096 = vmatprep.subr.mxu0 0.0
    %1097 = vmatpush1.msra.mxu0 0.0
    %1098 = vmatprep.subr.mxu0 0.0
    %1099 = vmatpush1.msra.mxu0 0.0
    %1100 = vmatprep.subr.mxu0 0.0
    %1101 = vmatpush1.msra.mxu0 0.0
    %1102 = vmatprep.subr.mxu0 0.0
    %1103 = vmatpush1.msra.mxu0 0.0
    %1104 = vmatprep.subr.mxu0 0.0
    %1105 = vmatpush1.msra.mxu0 0.0
    %1106 = vmatprep.subr.mxu0 0.0
    %1107 = vmatpush1.msra.mxu0 0.0
    %1108 = vmatprep.subr.mxu0 0.0
    %1109 = vmatpush1.msra.mxu0 0.0
    %1110 = vmatprep.subr.mxu0 0.0
    %1111 = vmatpush1.msra.mxu0 0.0
    %1112 = vmatprep.subr.mxu0 0.0
    %1113 = vmatpush1.msra.mxu0 0.0
    %1114 = vmatprep.subr.mxu0 0.0
    %1115 = vmatpush1.msra.mxu0 0.0
    %1116 = vmatprep.subr.mxu0 0.0
    %1117 = vmatpush1.msra.mxu0 0.0
    %1118 = vmatprep.subr.mxu0 0.0
    %1119 = vmatpush1.msra.mxu0 0.0
    %1120 = vmatprep.subr.mxu0 0.0
    %1121 = vmatpush1.msra.mxu0 0.0
    %1122 = vmatprep.subr.mxu0 0.0
    %1123 = vmatpush1.msra.mxu0 0.0
    %1124 = vmatprep.subr.mxu0 0.0
    %1125 = vmatpush1.msra.mxu0 0.0
    %1126 = vmatprep.subr.mxu0 0.0
    %1127 = vmatpush1.msra.mxu0 0.0
    %1128 = vmatprep.subr.mxu0 0.0
    %1129 = vmatpush1.msra.mxu0 0.0
    %1130 = vmatprep.subr.mxu0 0.0
    %1131 = vmatpush1.msra.mxu0 0.0
    %1132 = vmatprep.subr.mxu0 0.0
    %1133 = vmatpush1.msra.mxu0 0.0
    %1134 = vmatprep.subr.mxu0 0.0
    %1135 = vmatpush1.msra.mxu0 0.0
    %1136 = vmatprep.subr.mxu0 0.0
    %1137 = vmatpush1.msra.mxu0 0.0
    %1138 = vmatprep.subr.mxu0 0.0
    %1139 = vmatpush1.msra.mxu0 0.0
    %1140 = vmatprep.subr.mxu0 0.0
    %1141 = vmatpush1.msra.mxu0 0.0
    %1142 = vmatprep.subr.mxu0 0.0
    %1143 = vmatpush1.msra.mxu0 0.0
    %1144 = vmatprep.mubr.f32.mxu0 0.0
    %1145 = vmatmul.mubr.f32.gmra.mrb[0].mxu0 %v1078
    %v1146 = vpop.f32.mrb[0].mxu0
    %v1147 = vadd.f32 %v1072, %v1146
    %v1148 = vpop.f32.mrb[0].mxu0
    %1149 = vdwg.mxu0
    %v1150 = vadd.f32 %v1147, %v93
    %v1151 = vmul.f32 %v1150, 0.5
    %v1152 = vtanh.pop %v1151
    %v1153 = vadd.f32 %v1152, 1.0
    %v1154 = vmul.f32 %v1153, 0.5
    %v1155 = vtanh.pop %v1150
    %v1156 = vmul.f32 %v1154, %v895
    %1158 = vrot.lane.b32.xlu0 %v1155, 64
    %v1159 = vpop.permute.xlu0 %1158
    %v1161 = vmul.f32 %v1154, %v1159
    %1163 = vrot.lane.b32.xlu0 %v1161, 32
    %v1164 = vpop.permute.xlu0 %1163
    %v1166 = vadd.f32 %v1156, %v1164
    %v1167 = vtanh.pop %v1166
    %1169 = vrot.lane.b32.xlu0 %v1167, 64
    %v1170 = vpop.permute.xlu0 %1169
    %v1172 = vmul.f32 %v1154, %v1170
    %1174 = vrot.lane.b32.xlu0 %v1172, 32
    %v1175 = vpop.permute.xlu0 %1174
    %s1177 = scalar_lea.vmem [#allocation10], 24
    %1178 = vst.msk [vmem:[%s1177] sm:$0xff] %vm96, %v1175
    %s1179 = scalar_lea.vmem [#allocation2], 32
    %v1180 = vld [vmem:[%s1179] sm:$0xff]
    %1181 = vmatprep.subr.mxu0 0.0
    %1182 = vmatpush1.msra.mxu0 %v76
    %1183 = vmatprep.subr.mxu0 0.0
    %1184 = vmatpush1.msra.mxu0 %v77
    %1185 = vmatprep.subr.mxu0 0.0
    %1186 = vmatpush1.msra.mxu0 %v78
    %1187 = vmatprep.subr.mxu0 0.0
    %1188 = vmatpush1.msra.mxu0 %v79
    %1189 = vmatprep.subr.mxu0 0.0
    %1190 = vmatpush1.msra.mxu0 0.0
    %1191 = vmatprep.subr.mxu0 0.0
    %1192 = vmatpush1.msra.mxu0 0.0
    %1193 = vmatprep.subr.mxu0 0.0
    %1194 = vmatpush1.msra.mxu0 0.0
    %1195 = vmatprep.subr.mxu0 0.0
    %1196 = vmatpush1.msra.mxu0 0.0
    %1197 = vmatprep.subr.mxu0 0.0
    %1198 = vmatpush1.msra.mxu0 0.0
    %1199 = vmatprep.subr.mxu0 0.0
    %1200 = vmatpush1.msra.mxu0 0.0
    %1201 = vmatprep.subr.mxu0 0.0
    %1202 = vmatpush1.msra.mxu0 0.0
    %1203 = vmatprep.subr.mxu0 0.0
    %1204 = vmatpush1.msra.mxu0 0.0
    %1205 = vmatprep.subr.mxu0 0.0
    %1206 = vmatpush1.msra.mxu0 0.0
    %1207 = vmatprep.subr.mxu0 0.0
    %1208 = vmatpush1.msra.mxu0 0.0
    %1209 = vmatprep.subr.mxu0 0.0
    %1210 = vmatpush1.msra.mxu0 0.0
    %1211 = vmatprep.subr.mxu0 0.0
    %1212 = vmatpush1.msra.mxu0 0.0
    %1213 = vmatprep.subr.mxu0 0.0
    %1214 = vmatpush1.msra.mxu0 0.0
    %1215 = vmatprep.subr.mxu0 0.0
    %1216 = vmatpush1.msra.mxu0 0.0
    %1217 = vmatprep.subr.mxu0 0.0
    %1218 = vmatpush1.msra.mxu0 0.0
    %1219 = vmatprep.subr.mxu0 0.0
    %1220 = vmatpush1.msra.mxu0 0.0
    %1221 = vmatprep.subr.mxu0 0.0
    %1222 = vmatpush1.msra.mxu0 0.0
    %1223 = vmatprep.subr.mxu0 0.0
    %1224 = vmatpush1.msra.mxu0 0.0
    %1225 = vmatprep.subr.mxu0 0.0
    %1226 = vmatpush1.msra.mxu0 0.0
    %1227 = vmatprep.subr.mxu0 0.0
    %1228 = vmatpush1.msra.mxu0 0.0
    %1229 = vmatprep.subr.mxu0 0.0
    %1230 = vmatpush1.msra.mxu0 0.0
    %1231 = vmatprep.subr.mxu0 0.0
    %1232 = vmatpush1.msra.mxu0 0.0
    %1233 = vmatprep.subr.mxu0 0.0
    %1234 = vmatpush1.msra.mxu0 0.0
    %1235 = vmatprep.subr.mxu0 0.0
    %1236 = vmatpush1.msra.mxu0 0.0
    %1237 = vmatprep.subr.mxu0 0.0
    %1238 = vmatpush1.msra.mxu0 0.0
    %1239 = vmatprep.subr.mxu0 0.0
    %1240 = vmatpush1.msra.mxu0 0.0
    %1241 = vmatprep.subr.mxu0 0.0
    %1242 = vmatpush1.msra.mxu0 0.0
    %1243 = vmatprep.subr.mxu0 0.0
    %1244 = vmatpush1.msra.mxu0 0.0
    %1245 = vmatprep.mubr.f32.mxu0 0.0
    %1246 = vmatmul.mubr.f32.gmra.mrb[0].mxu0 %v1078
    %v1247 = vpop.f32.mrb[0].mxu0
    %v1248 = vadd.f32 0.0, %v1247
    %v1249 = vpop.f32.mrb[0].mxu0
    %1250 = vdwg.mxu0
    %v1251 = vadd.f32 %v1180, %v1248
    %v1252 = vmul.f32 %v1251, 0.5
    %v1253 = vtanh.pop %v1252
    %v1254 = vadd.f32 %v1253, 1.0
    %v1255 = vmul.f32 %v1254, 0.5
    %v1256 = vtanh.pop %v1251
    %v1257 = vmul.f32 %v1255, %v996
    %1259 = vrot.lane.b32.xlu0 %v1256, 64
    %v1260 = vpop.permute.xlu0 %1259
    %v1262 = vmul.f32 %v1255, %v1260
    %1264 = vrot.lane.b32.xlu0 %v1262, 32
    %v1265 = vpop.permute.xlu0 %1264
    %v1267 = vadd.f32 %v1257, %v1265
    %v1268 = vtanh.pop %v1267
    %1270 = vrot.lane.b32.xlu0 %v1268, 64
    %v1271 = vpop.permute.xlu0 %1270
    %v1273 = vmul.f32 %v1255, %v1271
    %v1274 = vsel %vm96, %v1175, 0
    %1276 = vmatprep.subr.mxu0 0.0
    %1277 = vmatpush1.msra.mxu0 %v84
    %1278 = vmatprep.subr.mxu0 0.0
    %1279 = vmatpush1.msra.mxu0 %v85
    %1280 = vmatprep.subr.mxu0 0.0
    %1281 = vmatpush1.msra.mxu0 %v86
    %1282 = vmatprep.subr.mxu0 0.0
    %1283 = vmatpush1.msra.mxu0 %v87
    %1284 = vmatprep.subr.mxu0 0.0
    %1285 = vmatpush1.msra.mxu0 0.0
    %1286 = vmatprep.subr.mxu0 0.0
    %1287 = vmatpush1.msra.mxu0 0.0
    %1288 = vmatprep.subr.mxu0 0.0
    %1289 = vmatpush1.msra.mxu0 0.0
    %1290 = vmatprep.subr.mxu0 0.0
    %1291 = vmatpush1.msra.mxu0 0.0
    %1292 = vmatprep.subr.mxu0 0.0
    %1293 = vmatpush1.msra.mxu0 0.0
    %1294 = vmatprep.subr.mxu0 0.0
    %1295 = vmatpush1.msra.mxu0 0.0
    %1296 = vmatprep.subr.mxu0 0.0
    %1297 = vmatpush1.msra.mxu0 0.0
    %1298 = vmatprep.subr.mxu0 0.0
    %1299 = vmatpush1.msra.mxu0 0.0
    %1300 = vmatprep.subr.mxu0 0.0
    %1301 = vmatpush1.msra.mxu0 0.0
    %1302 = vmatprep.subr.mxu0 0.0
    %1303 = vmatpush1.msra.mxu0 0.0
    %1304 = vmatprep.subr.mxu0 0.0
    %1305 = vmatpush1.msra.mxu0 0.0
    %1306 = vmatprep.subr.mxu0 0.0
    %1307 = vmatpush1.msra.mxu0 0.0
    %1308 = vmatprep.subr.mxu0 0.0
    %1309 = vmatpush1.msra.mxu0 0.0
    %1310 = vmatprep.subr.mxu0 0.0
    %1311 = vmatpush1.msra.mxu0 0.0
    %1312 = vmatprep.subr.mxu0 0.0
    %1313 = vmatpush1.msra.mxu0 0.0
    %1314 = vmatprep.subr.mxu0 0.0
    %1315 = vmatpush1.msra.mxu0 0.0
    %1316 = vmatprep.subr.mxu0 0.0
    %1317 = vmatpush1.msra.mxu0 0.0
    %1318 = vmatprep.subr.mxu0 0.0
    %1319 = vmatpush1.msra.mxu0 0.0
    %1320 = vmatprep.subr.mxu0 0.0
    %1321 = vmatpush1.msra.mxu0 0.0
    %1322 = vmatprep.subr.mxu0 0.0
    %1323 = vmatpush1.msra.mxu0 0.0
    %1324 = vmatprep.subr.mxu0 0.0
    %1325 = vmatpush1.msra.mxu0 0.0
    %1326 = vmatprep.subr.mxu0 0.0
    %1327 = vmatpush1.msra.mxu0 0.0
    %1328 = vmatprep.subr.mxu0 0.0
    %1329 = vmatpush1.msra.mxu0 0.0
    %1330 = vmatprep.subr.mxu0 0.0
    %1331 = vmatpush1.msra.mxu0 0.0
    %1332 = vmatprep.subr.mxu0 0.0
    %1333 = vmatpush1.msra.mxu0 0.0
    %1334 = vmatprep.subr.mxu0 0.0
    %1335 = vmatpush1.msra.mxu0 0.0
    %1336 = vmatprep.subr.mxu0 0.0
    %1337 = vmatpush1.msra.mxu0 0.0
    %1338 = vmatprep.subr.mxu0 0.0
    %1339 = vmatpush1.msra.mxu0 0.0
    %1340 = vmatprep.mubr.f32.mxu0 0.0
    %1341 = vmatmul.mubr.f32.gmra.mrb[0].mxu0 %v1274
    %v1342 = vpop.f32.mrb[0].mxu0
    %v1343 = vadd.f32 0.0, %v1342
    %v1344 = vpop.f32.mrb[0].mxu0
    %1345 = vdwg.mxu0
    %1347 = vrot.lane.b32.xlu0 %v1273, 32
    %v1348 = vpop.permute.xlu0 %1347
    %v1349 = vsel %vm96, %v1348, 0
    %1351 = vmatprep.subr.mxu0 0.0
    %1352 = vmatpush1.msra.mxu0 %v80
    %1353 = vmatprep.subr.mxu0 0.0
    %1354 = vmatpush1.msra.mxu0 %v81
    %1355 = vmatprep.subr.mxu0 0.0
    %1356 = vmatpush1.msra.mxu0 %v82
    %1357 = vmatprep.subr.mxu0 0.0
    %1358 = vmatpush1.msra.mxu0 %v83
    %1359 = vmatprep.subr.mxu0 0.0
    %1360 = vmatpush1.msra.mxu0 0.0
    %1361 = vmatprep.subr.mxu0 0.0
    %1362 = vmatpush1.msra.mxu0 0.0
    %1363 = vmatprep.subr.mxu0 0.0
    %1364 = vmatpush1.msra.mxu0 0.0
    %1365 = vmatprep.subr.mxu0 0.0
    %1366 = vmatpush1.msra.mxu0 0.0
    %1367 = vmatprep.subr.mxu0 0.0
    %1368 = vmatpush1.msra.mxu0 0.0
    %1369 = vmatprep.subr.mxu0 0.0
    %1370 = vmatpush1.msra.mxu0 0.0
    %1371 = vmatprep.subr.mxu0 0.0
    %1372 = vmatpush1.msra.mxu0 0.0
    %1373 = vmatprep.subr.mxu0 0.0
    %1374 = vmatpush1.msra.mxu0 0.0
    %1375 = vmatprep.subr.mxu0 0.0
    %1376 = vmatpush1.msra.mxu0 0.0
    %1377 = vmatprep.subr.mxu0 0.0
    %1378 = vmatpush1.msra.mxu0 0.0
    %1379 = vmatprep.subr.mxu0 0.0
    %1380 = vmatpush1.msra.mxu0 0.0
    %1381 = vmatprep.subr.mxu0 0.0
    %1382 = vmatpush1.msra.mxu0 0.0
    %1383 = vmatprep.subr.mxu0 0.0
    %1384 = vmatpush1.msra.mxu0 0.0
    %1385 = vmatprep.subr.mxu0 0.0
    %1386 = vmatpush1.msra.mxu0 0.0
    %1387 = vmatprep.subr.mxu0 0.0
    %1388 = vmatpush1.msra.mxu0 0.0
    %1389 = vmatprep.subr.mxu0 0.0
    %1390 = vmatpush1.msra.mxu0 0.0
    %1391 = vmatprep.subr.mxu0 0.0
    %1392 = vmatpush1.msra.mxu0 0.0
    %1393 = vmatprep.subr.mxu0 0.0
    %1394 = vmatpush1.msra.mxu0 0.0
    %1395 = vmatprep.subr.mxu0 0.0
    %1396 = vmatpush1.msra.mxu0 0.0
    %1397 = vmatprep.subr.mxu0 0.0
    %1398 = vmatpush1.msra.mxu0 0.0
    %1399 = vmatprep.subr.mxu0 0.0
    %1400 = vmatpush1.msra.mxu0 0.0
    %1401 = vmatprep.subr.mxu0 0.0
    %1402 = vmatpush1.msra.mxu0 0.0
    %1403 = vmatprep.subr.mxu0 0.0
    %1404 = vmatpush1.msra.mxu0 0.0
    %1405 = vmatprep.subr.mxu0 0.0
    %1406 = vmatpush1.msra.mxu0 0.0
    %1407 = vmatprep.subr.mxu0 0.0
    %1408 = vmatpush1.msra.mxu0 0.0
    %1409 = vmatprep.subr.mxu0 0.0
    %1410 = vmatpush1.msra.mxu0 0.0
    %1411 = vmatprep.subr.mxu0 0.0
    %1412 = vmatpush1.msra.mxu0 0.0
    %1413 = vmatprep.subr.mxu0 0.0
    %1414 = vmatpush1.msra.mxu0 0.0
    %1415 = vmatprep.mubr.f32.mxu0 0.0
    %1416 = vmatmul.mubr.f32.gmra.mrb[0].mxu0 %v1349
    %v1417 = vpop.f32.mrb[0].mxu0
    %v1418 = vadd.f32 %v1343, %v1417
    %v1419 = vpop.f32.mrb[0].mxu0
    %1420 = vdwg.mxu0
    %v1421 = vadd.f32 %v1418, %v93
    %v1422 = vmul.f32 %v1421, 0.5
    %v1423 = vtanh.pop %v1422
    %v1424 = vadd.f32 %v1423, 1.0
    %v1425 = vmul.f32 %v1424, 0.5
    %v1426 = vtanh.pop %v1421
    %v1427 = vmul.f32 %v1425, %v1166
    %1429 = vrot.lane.b32.xlu0 %v1426, 64
    %v1430 = vpop.permute.xlu0 %1429
    %v1432 = vmul.f32 %v1425, %v1430
    %1434 = vrot.lane.b32.xlu0 %v1432, 32
    %v1435 = vpop.permute.xlu0 %1434
    %v1437 = vadd.f32 %v1427, %v1435
    %v1438 = vtanh.pop %v1437
    %1440 = vrot.lane.b32.xlu0 %v1438, 64
    %v1441 = vpop.permute.xlu0 %1440
    %v1443 = vmul.f32 %v1425, %v1441
    %1445 = vrot.lane.b32.xlu0 %v1443, 32
    %v1446 = vpop.permute.xlu0 %1445
    %s1448 = scalar_lea.vmem [#allocation10], 32
    %1449 = vst.msk [vmem:[%s1448] sm:$0xff] %vm96, %v1446
    %s1450 = scalar_lea.vmem [#allocation2], 40
    %v1451 = vld [vmem:[%s1450] sm:$0xff]
    %1452 = vmatprep.subr.mxu0 0.0
    %1453 = vmatpush1.msra.mxu0 %v76
    %1454 = vmatprep.subr.mxu0 0.0
    %1455 = vmatpush1.msra.mxu0 %v77
    %1456 = vmatprep.subr.mxu0 0.0
    %1457 = vmatpush1.msra.mxu0 %v78
    %1458 = vmatprep.subr.mxu0 0.0
    %1459 = vmatpush1.msra.mxu0 %v79
    %1460 = vmatprep.subr.mxu0 0.0
    %1461 = vmatpush1.msra.mxu0 0.0
    %1462 = vmatprep.subr.mxu0 0.0
    %1463 = vmatpush1.msra.mxu0 0.0
    %1464 = vmatprep.subr.mxu0 0.0
    %1465 = vmatpush1.msra.mxu0 0.0
    %1466 = vmatprep.subr.mxu0 0.0
    %1467 = vmatpush1.msra.mxu0 0.0
    %1468 = vmatprep.subr.mxu0 0.0
    %1469 = vmatpush1.msra.mxu0 0.0
    %1470 = vmatprep.subr.mxu0 0.0
    %1471 = vmatpush1.msra.mxu0 0.0
    %1472 = vmatprep.subr.mxu0 0.0
    %1473 = vmatpush1.msra.mxu0 0.0
    %1474 = vmatprep.subr.mxu0 0.0
    %1475 = vmatpush1.msra.mxu0 0.0
    %1476 = vmatprep.subr.mxu0 0.0
    %1477 = vmatpush1.msra.mxu0 0.0
    %1478 = vmatprep.subr.mxu0 0.0
    %1479 = vmatpush1.msra.mxu0 0.0
    %1480 = vmatprep.subr.mxu0 0.0
    %1481 = vmatpush1.msra.mxu0 0.0
    %1482 = vmatprep.subr.mxu0 0.0
    %1483 = vmatpush1.msra.mxu0 0.0
    %1484 = vmatprep.subr.mxu0 0.0
    %1485 = vmatpush1.msra.mxu0 0.0
    %1486 = vmatprep.subr.mxu0 0.0
    %1487 = vmatpush1.msra.mxu0 0.0
    %1488 = vmatprep.subr.mxu0 0.0
    %1489 = vmatpush1.msra.mxu0 0.0
    %1490 = vmatprep.subr.mxu0 0.0
    %1491 = vmatpush1.msra.mxu0 0.0
    %1492 = vmatprep.subr.mxu0 0.0
    %1493 = vmatpush1.msra.mxu0 0.0
    %1494 = vmatprep.subr.mxu0 0.0
    %1495 = vmatpush1.msra.mxu0 0.0
    %1496 = vmatprep.subr.mxu0 0.0
    %1497 = vmatpush1.msra.mxu0 0.0
    %1498 = vmatprep.subr.mxu0 0.0
    %1499 = vmatpush1.msra.mxu0 0.0
    %1500 = vmatprep.subr.mxu0 0.0
    %1501 = vmatpush1.msra.mxu0 0.0
    %1502 = vmatprep.subr.mxu0 0.0
    %1503 = vmatpush1.msra.mxu0 0.0
    %1504 = vmatprep.subr.mxu0 0.0
    %1505 = vmatpush1.msra.mxu0 0.0
    %1506 = vmatprep.subr.mxu0 0.0
    %1507 = vmatpush1.msra.mxu0 0.0
    %1508 = vmatprep.subr.mxu0 0.0
    %1509 = vmatpush1.msra.mxu0 0.0
    %1510 = vmatprep.subr.mxu0 0.0
    %1511 = vmatpush1.msra.mxu0 0.0
    %1512 = vmatprep.subr.mxu0 0.0
    %1513 = vmatpush1.msra.mxu0 0.0
    %1514 = vmatprep.subr.mxu0 0.0
    %1515 = vmatpush1.msra.mxu0 0.0
    %1516 = vmatprep.mubr.f32.mxu0 0.0
    %1517 = vmatmul.mubr.f32.gmra.mrb[0].mxu0 %v1349
    %v1518 = vpop.f32.mrb[0].mxu0
    %v1519 = vadd.f32 0.0, %v1518
    %v1520 = vpop.f32.mrb[0].mxu0
    %1521 = vdwg.mxu0
    %v1522 = vadd.f32 %v1451, %v1519
    %v1523 = vmul.f32 %v1522, 0.5
    %v1524 = vtanh.pop %v1523
    %v1525 = vadd.f32 %v1524, 1.0
    %v1526 = vmul.f32 %v1525, 0.5
    %v1527 = vtanh.pop %v1522
    %v1528 = vmul.f32 %v1526, %v1267
    %1530 = vrot.lane.b32.xlu0 %v1527, 64
    %v1531 = vpop.permute.xlu0 %1530
    %v1533 = vmul.f32 %v1526, %v1531
    %1535 = vrot.lane.b32.xlu0 %v1533, 32
    %v1536 = vpop.permute.xlu0 %1535
    %v1538 = vadd.f32 %v1528, %v1536
    %v1539 = vtanh.pop %v1538
    %1541 = vrot.lane.b32.xlu0 %v1539, 64
    %v1542 = vpop.permute.xlu0 %1541
    %v1544 = vmul.f32 %v1526, %v1542
    %v1545 = vsel %vm96, %v1446, 0
    %1547 = vmatprep.subr.mxu0 0.0
    %1548 = vmatpush1.msra.mxu0 %v84
    %1549 = vmatprep.subr.mxu0 0.0
    %1550 = vmatpush1.msra.mxu0 %v85
    %1551 = vmatprep.subr.mxu0 0.0
    %1552 = vmatpush1.msra.mxu0 %v86
    %1553 = vmatprep.subr.mxu0 0.0
    %1554 = vmatpush1.msra.mxu0 %v87
    %1555 = vmatprep.subr.mxu0 0.0
    %1556 = vmatpush1.msra.mxu0 0.0
    %1557 = vmatprep.subr.mxu0 0.0
    %1558 = vmatpush1.msra.mxu0 0.0
    %1559 = vmatprep.subr.mxu0 0.0
    %1560 = vmatpush1.msra.mxu0 0.0
    %1561 = vmatprep.subr.mxu0 0.0
    %1562 = vmatpush1.msra.mxu0 0.0
    %1563 = vmatprep.subr.mxu0 0.0
    %1564 = vmatpush1.msra.mxu0 0.0
    %1565 = vmatprep.subr.mxu0 0.0
    %1566 = vmatpush1.msra.mxu0 0.0
    %1567 = vmatprep.subr.mxu0 0.0
    %1568 = vmatpush1.msra.mxu0 0.0
    %1569 = vmatprep.subr.mxu0 0.0
    %1570 = vmatpush1.msra.mxu0 0.0
    %1571 = vmatprep.subr.mxu0 0.0
    %1572 = vmatpush1.msra.mxu0 0.0
    %1573 = vmatprep.subr.mxu0 0.0
    %1574 = vmatpush1.msra.mxu0 0.0
    %1575 = vmatprep.subr.mxu0 0.0
    %1576 = vmatpush1.msra.mxu0 0.0
    %1577 = vmatprep.subr.mxu0 0.0
    %1578 = vmatpush1.msra.mxu0 0.0
    %1579 = vmatprep.subr.mxu0 0.0
    %1580 = vmatpush1.msra.mxu0 0.0
    %1581 = vmatprep.subr.mxu0 0.0
    %1582 = vmatpush1.msra.mxu0 0.0
    %1583 = vmatprep.subr.mxu0 0.0
    %1584 = vmatpush1.msra.mxu0 0.0
    %1585 = vmatprep.subr.mxu0 0.0
    %1586 = vmatpush1.msra.mxu0 0.0
    %1587 = vmatprep.subr.mxu0 0.0
    %1588 = vmatpush1.msra.mxu0 0.0
    %1589 = vmatprep.subr.mxu0 0.0
    %1590 = vmatpush1.msra.mxu0 0.0
    %1591 = vmatprep.subr.mxu0 0.0
    %1592 = vmatpush1.msra.mxu0 0.0
    %1593 = vmatprep.subr.mxu0 0.0
    %1594 = vmatpush1.msra.mxu0 0.0
    %1595 = vmatprep.subr.mxu0 0.0
    %1596 = vmatpush1.msra.mxu0 0.0
    %1597 = vmatprep.subr.mxu0 0.0
    %1598 = vmatpush1.msra.mxu0 0.0
    %1599 = vmatprep.subr.mxu0 0.0
    %1600 = vmatpush1.msra.mxu0 0.0
    %1601 = vmatprep.subr.mxu0 0.0
    %1602 = vmatpush1.msra.mxu0 0.0
    %1603 = vmatprep.subr.mxu0 0.0
    %1604 = vmatpush1.msra.mxu0 0.0
    %1605 = vmatprep.subr.mxu0 0.0
    %1606 = vmatpush1.msra.mxu0 0.0
    %1607 = vmatprep.subr.mxu0 0.0
    %1608 = vmatpush1.msra.mxu0 0.0
    %1609 = vmatprep.subr.mxu0 0.0
    %1610 = vmatpush1.msra.mxu0 0.0
    %1611 = vmatprep.mubr.f32.mxu0 0.0
    %1612 = vmatmul.mubr.f32.gmra.mrb[0].mxu0 %v1545
    %v1613 = vpop.f32.mrb[0].mxu0
    %v1614 = vadd.f32 0.0, %v1613
    %v1615 = vpop.f32.mrb[0].mxu0
    %1616 = vdwg.mxu0
    %1618 = vrot.lane.b32.xlu0 %v1544, 32
    %v1619 = vpop.permute.xlu0 %1618
    %v1620 = vsel %vm96, %v1619, 0
    %1622 = vmatprep.subr.mxu0 0.0
    %1623 = vmatpush1.msra.mxu0 %v80
    %1624 = vmatprep.subr.mxu0 0.0
    %1625 = vmatpush1.msra.mxu0 %v81
    %1626 = vmatprep.subr.mxu0 0.0
    %1627 = vmatpush1.msra.mxu0 %v82
    %1628 = vmatprep.subr.mxu0 0.0
    %1629 = vmatpush1.msra.mxu0 %v83
    %1630 = vmatprep.subr.mxu0 0.0
    %1631 = vmatpush1.msra.mxu0 0.0
    %1632 = vmatprep.subr.mxu0 0.0
    %1633 = vmatpush1.msra.mxu0 0.0
    %1634 = vmatprep.subr.mxu0 0.0
    %1635 = vmatpush1.msra.mxu0 0.0
    %1636 = vmatprep.subr.mxu0 0.0
    %1637 = vmatpush1.msra.mxu0 0.0
    %1638 = vmatprep.subr.mxu0 0.0
    %1639 = vmatpush1.msra.mxu0 0.0
    %1640 = vmatprep.subr.mxu0 0.0
    %1641 = vmatpush1.msra.mxu0 0.0
    %1642 = vmatprep.subr.mxu0 0.0
    %1643 = vmatpush1.msra.mxu0 0.0
    %1644 = vmatprep.subr.mxu0 0.0
    %1645 = vmatpush1.msra.mxu0 0.0
    %1646 = vmatprep.subr.mxu0 0.0
    %1647 = vmatpush1.msra.mxu0 0.0
    %1648 = vmatprep.subr.mxu0 0.0
    %1649 = vmatpush1.msra.mxu0 0.0
    %1650 = vmatprep.subr.mxu0 0.0
    %1651 = vmatpush1.msra.mxu0 0.0
    %1652 = vmatprep.subr.mxu0 0.0
    %1653 = vmatpush1.msra.mxu0 0.0
    %1654 = vmatprep.subr.mxu0 0.0
    %1655 = vmatpush1.msra.mxu0 0.0
    %1656 = vmatprep.subr.mxu0 0.0
    %1657 = vmatpush1.msra.mxu0 0.0
    %1658 = vmatprep.subr.mxu0 0.0
    %1659 = vmatpush1.msra.mxu0 0.0
    %1660 = vmatprep.subr.mxu0 0.0
    %1661 = vmatpush1.msra.mxu0 0.0
    %1662 = vmatprep.subr.mxu0 0.0
    %1663 = vmatpush1.msra.mxu0 0.0
    %1664 = vmatprep.subr.mxu0 0.0
    %1665 = vmatpush1.msra.mxu0 0.0
    %1666 = vmatprep.subr.mxu0 0.0
    %1667 = vmatpush1.msra.mxu0 0.0
    %1668 = vmatprep.subr.mxu0 0.0
    %1669 = vmatpush1.msra.mxu0 0.0
    %1670 = vmatprep.subr.mxu0 0.0
    %1671 = vmatpush1.msra.mxu0 0.0
    %1672 = vmatprep.subr.mxu0 0.0
    %1673 = vmatpush1.msra.mxu0 0.0
    %1674 = vmatprep.subr.mxu0 0.0
    %1675 = vmatpush1.msra.mxu0 0.0
    %1676 = vmatprep.subr.mxu0 0.0
    %1677 = vmatpush1.msra.mxu0 0.0
    %1678 = vmatprep.subr.mxu0 0.0
    %1679 = vmatpush1.msra.mxu0 0.0
    %1680 = vmatprep.subr.mxu0 0.0
    %1681 = vmatpush1.msra.mxu0 0.0
    %1682 = vmatprep.subr.mxu0 0.0
    %1683 = vmatpush1.msra.mxu0 0.0
    %1684 = vmatprep.subr.mxu0 0.0
    %1685 = vmatpush1.msra.mxu0 0.0
    %1686 = vmatprep.mubr.f32.mxu0 0.0
    %1687 = vmatmul.mubr.f32.gmra.mrb[0].mxu0 %v1620
    %v1688 = vpop.f32.mrb[0].mxu0
    %v1689 = vadd.f32 %v1614, %v1688
    %v1690 = vpop.f32.mrb[0].mxu0
    %1691 = vdwg.mxu0
    %v1692 = vadd.f32 %v1689, %v93
    %v1693 = vmul.f32 %v1692, 0.5
    %v1694 = vtanh.pop %v1693
    %v1695 = vadd.f32 %v1694, 1.0
    %v1696 = vmul.f32 %v1695, 0.5
    %v1697 = vtanh.pop %v1692
    %v1698 = vmul.f32 %v1696, %v1437
    %1700 = vrot.lane.b32.xlu0 %v1697, 64
    %v1701 = vpop.permute.xlu0 %1700
    %v1703 = vmul.f32 %v1696, %v1701
    %1705 = vrot.lane.b32.xlu0 %v1703, 32
    %v1706 = vpop.permute.xlu0 %1705
    %v1708 = vadd.f32 %v1698, %v1706
    %v1709 = vtanh.pop %v1708
    %1711 = vrot.lane.b32.xlu0 %v1709, 64
    %v1712 = vpop.permute.xlu0 %1711
    %v1714 = vmul.f32 %v1696, %v1712
    %1716 = vrot.lane.b32.xlu0 %v1714, 32
    %v1717 = vpop.permute.xlu0 %1716
    %s1719 = scalar_lea.vmem [#allocation10], 40
    %1720 = vst.msk [vmem:[%s1719] sm:$0xff] %vm96, %v1717
    %s1721 = scalar_lea.vmem [#allocation2], 48
    %v1722 = vld [vmem:[%s1721] sm:$0xff]
    %1723 = vmatprep.subr.mxu0 0.0
    %1724 = vmatpush1.msra.mxu0 %v76
    %1725 = vmatprep.subr.mxu0 0.0
    %1726 = vmatpush1.msra.mxu0 %v77
    %1727 = vmatprep.subr.mxu0 0.0
    %1728 = vmatpush1.msra.mxu0 %v78
    %1729 = vmatprep.subr.mxu0 0.0
    %1730 = vmatpush1.msra.mxu0 %v79
    %1731 = vmatprep.subr.mxu0 0.0
    %1732 = vmatpush1.msra.mxu0 0.0
    %1733 = vmatprep.subr.mxu0 0.0
    %1734 = vmatpush1.msra.mxu0 0.0
    %1735 = vmatprep.subr.mxu0 0.0
    %1736 = vmatpush1.msra.mxu0 0.0
    %1737 = vmatprep.subr.mxu0 0.0
    %1738 = vmatpush1.msra.mxu0 0.0
    %1739 = vmatprep.subr.mxu0 0.0
    %1740 = vmatpush1.msra.mxu0 0.0
    %1741 = vmatprep.subr.mxu0 0.0
    %1742 = vmatpush1.msra.mxu0 0.0
    %1743 = vmatprep.subr.mxu0 0.0
    %1744 = vmatpush1.msra.mxu0 0.0
    %1745 = vmatprep.subr.mxu0 0.0
    %1746 = vmatpush1.msra.mxu0 0.0
    %1747 = vmatprep.subr.mxu0 0.0
    %1748 = vmatpush1.msra.mxu0 0.0
    %1749 = vmatprep.subr.mxu0 0.0
    %1750 = vmatpush1.msra.mxu0 0.0
    %1751 = vmatprep.subr.mxu0 0.0
    %1752 = vmatpush1.msra.mxu0 0.0
    %1753 = vmatprep.subr.mxu0 0.0
    %1754 = vmatpush1.msra.mxu0 0.0
    %1755 = vmatprep.subr.mxu0 0.0
    %1756 = vmatpush1.msra.mxu0 0.0
    %1757 = vmatprep.subr.mxu0 0.0
    %1758 = vmatpush1.msra.mxu0 0.0
    %1759 = vmatprep.subr.mxu0 0.0
    %1760 = vmatpush1.msra.mxu0 0.0
    %1761 = vmatprep.subr.mxu0 0.0
    %1762 = vmatpush1.msra.mxu0 0.0
    %1763 = vmatprep.subr.mxu0 0.0
    %1764 = vmatpush1.msra.mxu0 0.0
    %1765 = vmatprep.subr.mxu0 0.0
    %1766 = vmatpush1.msra.mxu0 0.0
    %1767 = vmatprep.subr.mxu0 0.0
    %1768 = vmatpush1.msra.mxu0 0.0
    %1769 = vmatprep.subr.mxu0 0.0
    %1770 = vmatpush1.msra.mxu0 0.0
    %1771 = vmatprep.subr.mxu0 0.0
    %1772 = vmatpush1.msra.mxu0 0.0
    %1773 = vmatprep.subr.mxu0 0.0
    %1774 = vmatpush1.msra.mxu0 0.0
    %1775 = vmatprep.subr.mxu0 0.0
    %1776 = vmatpush1.msra.mxu0 0.0
    %1777 = vmatprep.subr.mxu0 0.0
    %1778 = vmatpush1.msra.mxu0 0.0
    %1779 = vmatprep.subr.mxu0 0.0
    %1780 = vmatpush1.msra.mxu0 0.0
    %1781 = vmatprep.subr.mxu0 0.0
    %1782 = vmatpush1.msra.mxu0 0.0
    %1783 = vmatprep.subr.mxu0 0.0
    %1784 = vmatpush1.msra.mxu0 0.0
    %1785 = vmatprep.subr.mxu0 0.0
    %1786 = vmatpush1.msra.mxu0 0.0
    %1787 = vmatprep.mubr.f32.mxu0 0.0
    %1788 = vmatmul.mubr.f32.gmra.mrb[0].mxu0 %v1620
    %v1789 = vpop.f32.mrb[0].mxu0
    %v1790 = vadd.f32 0.0, %v1789
    %v1791 = vpop.f32.mrb[0].mxu0
    %1792 = vdwg.mxu0
    %v1793 = vadd.f32 %v1722, %v1790
    %v1794 = vmul.f32 %v1793, 0.5
    %v1795 = vtanh.pop %v1794
    %v1796 = vadd.f32 %v1795, 1.0
    %v1797 = vmul.f32 %v1796, 0.5
    %v1798 = vtanh.pop %v1793
    %v1799 = vmul.f32 %v1797, %v1538
    %1801 = vrot.lane.b32.xlu0 %v1798, 64
    %v1802 = vpop.permute.xlu0 %1801
    %v1804 = vmul.f32 %v1797, %v1802
    %1806 = vrot.lane.b32.xlu0 %v1804, 32
    %v1807 = vpop.permute.xlu0 %1806
    %v1809 = vadd.f32 %v1799, %v1807
    %v1810 = vtanh.pop %v1809
    %1812 = vrot.lane.b32.xlu0 %v1810, 64
    %v1813 = vpop.permute.xlu0 %1812
    %v1815 = vmul.f32 %v1797, %v1813
    %v1816 = vsel %vm96, %v1717, 0
    %1818 = vmatprep.subr.mxu0 0.0
    %1819 = vmatpush1.msra.mxu0 %v84
    %1820 = vmatprep.subr.mxu0 0.0
    %1821 = vmatpush1.msra.mxu0 %v85
    %1822 = vmatprep.subr.mxu0 0.0
    %1823 = vmatpush1.msra.mxu0 %v86
    %1824 = vmatprep.subr.mxu0 0.0
    %1825 = vmatpush1.msra.mxu0 %v87
    %1826 = vmatprep.subr.mxu0 0.0
    %1827 = vmatpush1.msra.mxu0 0.0
    %1828 = vmatprep.subr.mxu0 0.0
    %1829 = vmatpush1.msra.mxu0 0.0
    %1830 = vmatprep.subr.mxu0 0.0
    %1831 = vmatpush1.msra.mxu0 0.0
    %1832 = vmatprep.subr.mxu0 0.0
    %1833 = vmatpush1.msra.mxu0 0.0
    %1834 = vmatprep.subr.mxu0 0.0
    %1835 = vmatpush1.msra.mxu0 0.0
    %1836 = vmatprep.subr.mxu0 0.0
    %1837 = vmatpush1.msra.mxu0 0.0
    %1838 = vmatprep.subr.mxu0 0.0
    %1839 = vmatpush1.msra.mxu0 0.0
    %1840 = vmatprep.subr.mxu0 0.0
    %1841 = vmatpush1.msra.mxu0 0.0
    %1842 = vmatprep.subr.mxu0 0.0
    %1843 = vmatpush1.msra.mxu0 0.0
    %1844 = vmatprep.subr.mxu0 0.0
    %1845 = vmatpush1.msra.mxu0 0.0
    %1846 = vmatprep.subr.mxu0 0.0
    %1847 = vmatpush1.msra.mxu0 0.0
    %1848 = vmatprep.subr.mxu0 0.0
    %1849 = vmatpush1.msra.mxu0 0.0
    %1850 = vmatprep.subr.mxu0 0.0
    %1851 = vmatpush1.msra.mxu0 0.0
    %1852 = vmatprep.subr.mxu0 0.0
    %1853 = vmatpush1.msra.mxu0 0.0
    %1854 = vmatprep.subr.mxu0 0.0
    %1855 = vmatpush1.msra.mxu0 0.0
    %1856 = vmatprep.subr.mxu0 0.0
    %1857 = vmatpush1.msra.mxu0 0.0
    %1858 = vmatprep.subr.mxu0 0.0
    %1859 = vmatpush1.msra.mxu0 0.0
    %1860 = vmatprep.subr.mxu0 0.0
    %1861 = vmatpush1.msra.mxu0 0.0
    %1862 = vmatprep.subr.mxu0 0.0
    %1863 = vmatpush1.msra.mxu0 0.0
    %1864 = vmatprep.subr.mxu0 0.0
    %1865 = vmatpush1.msra.mxu0 0.0
    %1866 = vmatprep.subr.mxu0 0.0
    %1867 = vmatpush1.msra.mxu0 0.0
    %1868 = vmatprep.subr.mxu0 0.0
    %1869 = vmatpush1.msra.mxu0 0.0
    %1870 = vmatprep.subr.mxu0 0.0
    %1871 = vmatpush1.msra.mxu0 0.0
    %1872 = vmatprep.subr.mxu0 0.0
    %1873 = vmatpush1.msra.mxu0 0.0
    %1874 = vmatprep.subr.mxu0 0.0
    %1875 = vmatpush1.msra.mxu0 0.0
    %1876 = vmatprep.subr.mxu0 0.0
    %1877 = vmatpush1.msra.mxu0 0.0
    %1878 = vmatprep.subr.mxu0 0.0
    %1879 = vmatpush1.msra.mxu0 0.0
    %1880 = vmatprep.subr.mxu0 0.0
    %1881 = vmatpush1.msra.mxu0 0.0
    %1882 = vmatprep.mubr.f32.mxu0 0.0
    %1883 = vmatmul.mubr.f32.gmra.mrb[0].mxu0 %v1816
    %v1884 = vpop.f32.mrb[0].mxu0
    %v1885 = vadd.f32 0.0, %v1884
    %v1886 = vpop.f32.mrb[0].mxu0
    %1887 = vdwg.mxu0
    %1889 = vrot.lane.b32.xlu0 %v1815, 32
    %v1890 = vpop.permute.xlu0 %1889
    %v1891 = vsel %vm96, %v1890, 0
    %1893 = vmatprep.subr.mxu0 0.0
    %1894 = vmatpush1.msra.mxu0 %v80
    %1895 = vmatprep.subr.mxu0 0.0
    %1896 = vmatpush1.msra.mxu0 %v81
    %1897 = vmatprep.subr.mxu0 0.0
    %1898 = vmatpush1.msra.mxu0 %v82
    %1899 = vmatprep.subr.mxu0 0.0
    %1900 = vmatpush1.msra.mxu0 %v83
    %1901 = vmatprep.subr.mxu0 0.0
    %1902 = vmatpush1.msra.mxu0 0.0
    %1903 = vmatprep.subr.mxu0 0.0
    %1904 = vmatpush1.msra.mxu0 0.0
    %1905 = vmatprep.subr.mxu0 0.0
    %1906 = vmatpush1.msra.mxu0 0.0
    %1907 = vmatprep.subr.mxu0 0.0
    %1908 = vmatpush1.msra.mxu0 0.0
    %1909 = vmatprep.subr.mxu0 0.0
    %1910 = vmatpush1.msra.mxu0 0.0
    %1911 = vmatprep.subr.mxu0 0.0
    %1912 = vmatpush1.msra.mxu0 0.0
    %1913 = vmatprep.subr.mxu0 0.0
    %1914 = vmatpush1.msra.mxu0 0.0
    %1915 = vmatprep.subr.mxu0 0.0
    %1916 = vmatpush1.msra.mxu0 0.0
    %1917 = vmatprep.subr.mxu0 0.0
    %1918 = vmatpush1.msra.mxu0 0.0
    %1919 = vmatprep.subr.mxu0 0.0
    %1920 = vmatpush1.msra.mxu0 0.0
    %1921 = vmatprep.subr.mxu0 0.0
    %1922 = vmatpush1.msra.mxu0 0.0
    %1923 = vmatprep.subr.mxu0 0.0
    %1924 = vmatpush1.msra.mxu0 0.0
    %1925 = vmatprep.subr.mxu0 0.0
    %1926 = vmatpush1.msra.mxu0 0.0
    %1927 = vmatprep.subr.mxu0 0.0
    %1928 = vmatpush1.msra.mxu0 0.0
    %1929 = vmatprep.subr.mxu0 0.0
    %1930 = vmatpush1.msra.mxu0 0.0
    %1931 = vmatprep.subr.mxu0 0.0
    %1932 = vmatpush1.msra.mxu0 0.0
    %1933 = vmatprep.subr.mxu0 0.0
    %1934 = vmatpush1.msra.mxu0 0.0
    %1935 = vmatprep.subr.mxu0 0.0
    %1936 = vmatpush1.msra.mxu0 0.0
    %1937 = vmatprep.subr.mxu0 0.0
    %1938 = vmatpush1.msra.mxu0 0.0
    %1939 = vmatprep.subr.mxu0 0.0
    %1940 = vmatpush1.msra.mxu0 0.0
    %1941 = vmatprep.subr.mxu0 0.0
    %1942 = vmatpush1.msra.mxu0 0.0
    %1943 = vmatprep.subr.mxu0 0.0
    %1944 = vmatpush1.msra.mxu0 0.0
    %1945 = vmatprep.subr.mxu0 0.0
    %1946 = vmatpush1.msra.mxu0 0.0
    %1947 = vmatprep.subr.mxu0 0.0
    %1948 = vmatpush1.msra.mxu0 0.0
    %1949 = vmatprep.subr.mxu0 0.0
    %1950 = vmatpush1.msra.mxu0 0.0
    %1951 = vmatprep.subr.mxu0 0.0
    %1952 = vmatpush1.msra.mxu0 0.0
    %1953 = vmatprep.subr.mxu0 0.0
    %1954 = vmatpush1.msra.mxu0 0.0
    %1955 = vmatprep.subr.mxu0 0.0
    %1956 = vmatpush1.msra.mxu0 0.0
    %1957 = vmatprep.mubr.f32.mxu0 0.0
    %1958 = vmatmul.mubr.f32.gmra.mrb[0].mxu0 %v1891
    %v1959 = vpop.f32.mrb[0].mxu0
    %v1960 = vadd.f32 %v1885, %v1959
    %v1961 = vpop.f32.mrb[0].mxu0
    %1962 = vdwg.mxu0
    %v1963 = vadd.f32 %v1960, %v93
    %v1964 = vmul.f32 %v1963, 0.5
    %v1965 = vtanh.pop %v1964
    %v1966 = vadd.f32 %v1965, 1.0
    %v1967 = vmul.f32 %v1966, 0.5
    %v1968 = vtanh.pop %v1963
    %v1969 = vmul.f32 %v1967, %v1708
    %1971 = vrot.lane.b32.xlu0 %v1968, 64
    %v1972 = vpop.permute.xlu0 %1971
    %v1974 = vmul.f32 %v1967, %v1972
    %1976 = vrot.lane.b32.xlu0 %v1974, 32
    %v1977 = vpop.permute.xlu0 %1976
    %v1979 = vadd.f32 %v1969, %v1977
    %v1980 = vtanh.pop %v1979
    %1982 = vrot.lane.b32.xlu0 %v1980, 64
    %v1983 = vpop.permute.xlu0 %1982
    %v1985 = vmul.f32 %v1967, %v1983
    %1987 = vrot.lane.b32.xlu0 %v1985, 32
    %v1988 = vpop.permute.xlu0 %1987
    %s1990 = scalar_lea.vmem [#allocation10], 48
    %1991 = vst.msk [vmem:[%s1990] sm:$0xff] %vm96, %v1988
    %s1992 = scalar_lea.vmem [#allocation2], 56
    %v1993 = vld [vmem:[%s1992] sm:$0xff]
    %1994 = vmatprep.subr.mxu0 0.0
    %1995 = vmatpush1.msra.mxu0 %v76
    %1996 = vmatprep.subr.mxu0 0.0
    %1997 = vmatpush1.msra.mxu0 %v77
    %1998 = vmatprep.subr.mxu0 0.0
    %1999 = vmatpush1.msra.mxu0 %v78
    %2000 = vmatprep.subr.mxu0 0.0
    %2001 = vmatpush1.msra.mxu0 %v79
    %2002 = vmatprep.subr.mxu0 0.0
    %2003 = vmatpush1.msra.mxu0 0.0
    %2004 = vmatprep.subr.mxu0 0.0
    %2005 = vmatpush1.msra.mxu0 0.0
    %2006 = vmatprep.subr.mxu0 0.0
    %2007 = vmatpush1.msra.mxu0 0.0
    %2008 = vmatprep.subr.mxu0 0.0
    %2009 = vmatpush1.msra.mxu0 0.0
    %2010 = vmatprep.subr.mxu0 0.0
    %2011 = vmatpush1.msra.mxu0 0.0
    %2012 = vmatprep.subr.mxu0 0.0
    %2013 = vmatpush1.msra.mxu0 0.0
    %2014 = vmatprep.subr.mxu0 0.0
    %2015 = vmatpush1.msra.mxu0 0.0
    %2016 = vmatprep.subr.mxu0 0.0
    %2017 = vmatpush1.msra.mxu0 0.0
    %2018 = vmatprep.subr.mxu0 0.0
    %2019 = vmatpush1.msra.mxu0 0.0
    %2020 = vmatprep.subr.mxu0 0.0
    %2021 = vmatpush1.msra.mxu0 0.0
    %2022 = vmatprep.subr.mxu0 0.0
    %2023 = vmatpush1.msra.mxu0 0.0
    %2024 = vmatprep.subr.mxu0 0.0
    %2025 = vmatpush1.msra.mxu0 0.0
    %2026 = vmatprep.subr.mxu0 0.0
    %2027 = vmatpush1.msra.mxu0 0.0
    %2028 = vmatprep.subr.mxu0 0.0
    %2029 = vmatpush1.msra.mxu0 0.0
    %2030 = vmatprep.subr.mxu0 0.0
    %2031 = vmatpush1.msra.mxu0 0.0
    %2032 = vmatprep.subr.mxu0 0.0
    %2033 = vmatpush1.msra.mxu0 0.0
    %2034 = vmatprep.subr.mxu0 0.0
    %2035 = vmatpush1.msra.mxu0 0.0
    %2036 = vmatprep.subr.mxu0 0.0
    %2037 = vmatpush1.msra.mxu0 0.0
    %2038 = vmatprep.subr.mxu0 0.0
    %2039 = vmatpush1.msra.mxu0 0.0
    %2040 = vmatprep.subr.mxu0 0.0
    %2041 = vmatpush1.msra.mxu0 0.0
    %2042 = vmatprep.subr.mxu0 0.0
    %2043 = vmatpush1.msra.mxu0 0.0
    %2044 = vmatprep.subr.mxu0 0.0
    %2045 = vmatpush1.msra.mxu0 0.0
    %2046 = vmatprep.subr.mxu0 0.0
    %2047 = vmatpush1.msra.mxu0 0.0
    %2048 = vmatprep.subr.mxu0 0.0
    %2049 = vmatpush1.msra.mxu0 0.0
    %2050 = vmatprep.subr.mxu0 0.0
    %2051 = vmatpush1.msra.mxu0 0.0
    %2052 = vmatprep.subr.mxu0 0.0
    %2053 = vmatpush1.msra.mxu0 0.0
    %2054 = vmatprep.subr.mxu0 0.0
    %2055 = vmatpush1.msra.mxu0 0.0
    %2056 = vmatprep.subr.mxu0 0.0
    %2057 = vmatpush1.msra.mxu0 0.0
    %2058 = vmatprep.mubr.f32.mxu0 0.0
    %2059 = vmatmul.mubr.f32.gmra.mrb[0].mxu0 %v1891
    %v2060 = vpop.f32.mrb[0].mxu0
    %v2061 = vadd.f32 0.0, %v2060
    %v2062 = vpop.f32.mrb[0].mxu0
    %2063 = vdwg.mxu0
    %v2064 = vadd.f32 %v1993, %v2061
    %v2065 = vmul.f32 %v2064, 0.5
    %v2066 = vtanh.pop %v2065
    %v2067 = vadd.f32 %v2066, 1.0
    %v2068 = vmul.f32 %v2067, 0.5
    %v2069 = vtanh.pop %v2064
    %v2070 = vmul.f32 %v2068, %v1809
    %2072 = vrot.lane.b32.xlu0 %v2069, 64
    %v2073 = vpop.permute.xlu0 %2072
    %v2075 = vmul.f32 %v2068, %v2073
    %2077 = vrot.lane.b32.xlu0 %v2075, 32
    %v2078 = vpop.permute.xlu0 %2077
    %v2080 = vadd.f32 %v2070, %v2078
    %v2081 = vtanh.pop %v2080
    %2083 = vrot.lane.b32.xlu0 %v2081, 64
    %v2084 = vpop.permute.xlu0 %2083
    %v2086 = vmul.f32 %v2068, %v2084
    %v2087 = vsel %vm96, %v1988, 0
    %2089 = vmatprep.subr.mxu0 0.0
    %2090 = vmatpush1.msra.mxu0 %v84
    %2091 = vmatprep.subr.mxu0 0.0
    %2092 = vmatpush1.msra.mxu0 %v85
    %2093 = vmatprep.subr.mxu0 0.0
    %2094 = vmatpush1.msra.mxu0 %v86
    %2095 = vmatprep.subr.mxu0 0.0
    %2096 = vmatpush1.msra.mxu0 %v87
    %2097 = vmatprep.subr.mxu0 0.0
    %2098 = vmatpush1.msra.mxu0 0.0
    %2099 = vmatprep.subr.mxu0 0.0
    %2100 = vmatpush1.msra.mxu0 0.0
    %2101 = vmatprep.subr.mxu0 0.0
    %2102 = vmatpush1.msra.mxu0 0.0
    %2103 = vmatprep.subr.mxu0 0.0
    %2104 = vmatpush1.msra.mxu0 0.0
    %2105 = vmatprep.subr.mxu0 0.0
    %2106 = vmatpush1.msra.mxu0 0.0
    %2107 = vmatprep.subr.mxu0 0.0
    %2108 = vmatpush1.msra.mxu0 0.0
    %2109 = vmatprep.subr.mxu0 0.0
    %2110 = vmatpush1.msra.mxu0 0.0
    %2111 = vmatprep.subr.mxu0 0.0
    %2112 = vmatpush1.msra.mxu0 0.0
    %2113 = vmatprep.subr.mxu0 0.0
    %2114 = vmatpush1.msra.mxu0 0.0
    %2115 = vmatprep.subr.mxu0 0.0
    %2116 = vmatpush1.msra.mxu0 0.0
    %2117 = vmatprep.subr.mxu0 0.0
    %2118 = vmatpush1.msra.mxu0 0.0
    %2119 = vmatprep.subr.mxu0 0.0
    %2120 = vmatpush1.msra.mxu0 0.0
    %2121 = vmatprep.subr.mxu0 0.0
    %2122 = vmatpush1.msra.mxu0 0.0
    %2123 = vmatprep.subr.mxu0 0.0
    %2124 = vmatpush1.msra.mxu0 0.0
    %2125 = vmatprep.subr.mxu0 0.0
    %2126 = vmatpush1.msra.mxu0 0.0
    %2127 = vmatprep.subr.mxu0 0.0
    %2128 = vmatpush1.msra.mxu0 0.0
    %2129 = vmatprep.subr.mxu0 0.0
    %2130 = vmatpush1.msra.mxu0 0.0
    %2131 = vmatprep.subr.mxu0 0.0
    %2132 = vmatpush1.msra.mxu0 0.0
    %2133 = vmatprep.subr.mxu0 0.0
    %2134 = vmatpush1.msra.mxu0 0.0
    %2135 = vmatprep.subr.mxu0 0.0
    %2136 = vmatpush1.msra.mxu0 0.0
    %2137 = vmatprep.subr.mxu0 0.0
    %2138 = vmatpush1.msra.mxu0 0.0
    %2139 = vmatprep.subr.mxu0 0.0
    %2140 = vmatpush1.msra.mxu0 0.0
    %2141 = vmatprep.subr.mxu0 0.0
    %2142 = vmatpush1.msra.mxu0 0.0
    %2143 = vmatprep.subr.mxu0 0.0
    %2144 = vmatpush1.msra.mxu0 0.0
    %2145 = vmatprep.subr.mxu0 0.0
    %2146 = vmatpush1.msra.mxu0 0.0
    %2147 = vmatprep.subr.mxu0 0.0
    %2148 = vmatpush1.msra.mxu0 0.0
    %2149 = vmatprep.subr.mxu0 0.0
    %2150 = vmatpush1.msra.mxu0 0.0
    %2151 = vmatprep.subr.mxu0 0.0
    %2152 = vmatpush1.msra.mxu0 0.0
    %2153 = vmatprep.mubr.f32.mxu0 0.0
    %2154 = vmatmul.mubr.f32.gmra.mrb[0].mxu0 %v2087
    %v2155 = vpop.f32.mrb[0].mxu0
    %v2156 = vadd.f32 0.0, %v2155
    %v2157 = vpop.f32.mrb[0].mxu0
    %2158 = vdwg.mxu0
    %2160 = vrot.lane.b32.xlu0 %v2086, 32
    %v2161 = vpop.permute.xlu0 %2160
    %v2162 = vsel %vm96, %v2161, 0
    %2164 = vmatprep.subr.mxu0 0.0
    %2165 = vmatpush1.msra.mxu0 %v80
    %2166 = vmatprep.subr.mxu0 0.0
    %2167 = vmatpush1.msra.mxu0 %v81
    %2168 = vmatprep.subr.mxu0 0.0
    %2169 = vmatpush1.msra.mxu0 %v82
    %2170 = vmatprep.subr.mxu0 0.0
    %2171 = vmatpush1.msra.mxu0 %v83
    %2172 = vmatprep.subr.mxu0 0.0
    %2173 = vmatpush1.msra.mxu0 0.0
    %2174 = vmatprep.subr.mxu0 0.0
    %2175 = vmatpush1.msra.mxu0 0.0
    %2176 = vmatprep.subr.mxu0 0.0
    %2177 = vmatpush1.msra.mxu0 0.0
    %2178 = vmatprep.subr.mxu0 0.0
    %2179 = vmatpush1.msra.mxu0 0.0
    %2180 = vmatprep.subr.mxu0 0.0
    %2181 = vmatpush1.msra.mxu0 0.0
    %2182 = vmatprep.subr.mxu0 0.0
    %2183 = vmatpush1.msra.mxu0 0.0
    %2184 = vmatprep.subr.mxu0 0.0
    %2185 = vmatpush1.msra.mxu0 0.0
    %2186 = vmatprep.subr.mxu0 0.0
    %2187 = vmatpush1.msra.mxu0 0.0
    %2188 = vmatprep.subr.mxu0 0.0
    %2189 = vmatpush1.msra.mxu0 0.0
    %2190 = vmatprep.subr.mxu0 0.0
    %2191 = vmatpush1.msra.mxu0 0.0
    %2192 = vmatprep.subr.mxu0 0.0
    %2193 = vmatpush1.msra.mxu0 0.0
    %2194 = vmatprep.subr.mxu0 0.0
    %2195 = vmatpush1.msra.mxu0 0.0
    %2196 = vmatprep.subr.mxu0 0.0
    %2197 = vmatpush1.msra.mxu0 0.0
    %2198 = vmatprep.subr.mxu0 0.0
    %2199 = vmatpush1.msra.mxu0 0.0
    %2200 = vmatprep.subr.mxu0 0.0
    %2201 = vmatpush1.msra.mxu0 0.0
    %2202 = vmatprep.subr.mxu0 0.0
    %2203 = vmatpush1.msra.mxu0 0.0
    %2204 = vmatprep.subr.mxu0 0.0
    %2205 = vmatpush1.msra.mxu0 0.0
    %2206 = vmatprep.subr.mxu0 0.0
    %2207 = vmatpush1.msra.mxu0 0.0
    %2208 = vmatprep.subr.mxu0 0.0
    %2209 = vmatpush1.msra.mxu0 0.0
    %2210 = vmatprep.subr.mxu0 0.0
    %2211 = vmatpush1.msra.mxu0 0.0
    %2212 = vmatprep.subr.mxu0 0.0
    %2213 = vmatpush1.msra.mxu0 0.0
    %2214 = vmatprep.subr.mxu0 0.0
    %2215 = vmatpush1.msra.mxu0 0.0
    %2216 = vmatprep.subr.mxu0 0.0
    %2217 = vmatpush1.msra.mxu0 0.0
    %2218 = vmatprep.subr.mxu0 0.0
    %2219 = vmatpush1.msra.mxu0 0.0
    %2220 = vmatprep.subr.mxu0 0.0
    %2221 = vmatpush1.msra.mxu0 0.0
    %2222 = vmatprep.subr.mxu0 0.0
    %2223 = vmatpush1.msra.mxu0 0.0
    %2224 = vmatprep.subr.mxu0 0.0
    %2225 = vmatpush1.msra.mxu0 0.0
    %2226 = vmatprep.subr.mxu0 0.0
    %2227 = vmatpush1.msra.mxu0 0.0
    %2228 = vmatprep.mubr.f32.mxu0 0.0
    %2229 = vmatmul.mubr.f32.gmra.mrb[0].mxu0 %v2162
    %v2230 = vpop.f32.mrb[0].mxu0
    %v2231 = vadd.f32 %v2156, %v2230
    %v2232 = vpop.f32.mrb[0].mxu0
    %2233 = vdwg.mxu0
    %v2234 = vadd.f32 %v2231, %v93
    %v2235 = vmul.f32 %v2234, 0.5
    %v2236 = vtanh.pop %v2235
    %v2237 = vadd.f32 %v2236, 1.0
    %v2238 = vmul.f32 %v2237, 0.5
    %v2239 = vtanh.pop %v2234
    %v2240 = vmul.f32 %v2238, %v1979
    %2242 = vrot.lane.b32.xlu0 %v2239, 64
    %v2243 = vpop.permute.xlu0 %2242
    %v2245 = vmul.f32 %v2238, %v2243
    %2247 = vrot.lane.b32.xlu0 %v2245, 32
    %v2248 = vpop.permute.xlu0 %2247
    %v2250 = vadd.f32 %v2240, %v2248
    %v2251 = vtanh.pop %v2250
    %2253 = vrot.lane.b32.xlu0 %v2251, 64
    %v2254 = vpop.permute.xlu0 %2253
    %v2256 = vmul.f32 %v2238, %v2254
    %2258 = vrot.lane.b32.xlu0 %v2256, 32
    %v2259 = vpop.permute.xlu0 %2258
    %s2261 = scalar_lea.vmem [#allocation10], 56
    %2262 = vst.msk [vmem:[%s2261] sm:$0xff] %vm96, %v2259
    %s2263 = scalar_lea.vmem [#allocation2], 64
    %v2264 = vld [vmem:[%s2263] sm:$0xff]
    %2265 = vmatprep.subr.mxu0 0.0
    %2266 = vmatpush1.msra.mxu0 %v76
    %2267 = vmatprep.subr.mxu0 0.0
    %2268 = vmatpush1.msra.mxu0 %v77
    %2269 = vmatprep.subr.mxu0 0.0
    %2270 = vmatpush1.msra.mxu0 %v78
    %2271 = vmatprep.subr.mxu0 0.0
    %2272 = vmatpush1.msra.mxu0 %v79
    %2273 = vmatprep.subr.mxu0 0.0
    %2274 = vmatpush1.msra.mxu0 0.0
    %2275 = vmatprep.subr.mxu0 0.0
    %2276 = vmatpush1.msra.mxu0 0.0
    %2277 = vmatprep.subr.mxu0 0.0
    %2278 = vmatpush1.msra.mxu0 0.0
    %2279 = vmatprep.subr.mxu0 0.0
    %2280 = vmatpush1.msra.mxu0 0.0
    %2281 = vmatprep.subr.mxu0 0.0
    %2282 = vmatpush1.msra.mxu0 0.0
    %2283 = vmatprep.subr.mxu0 0.0
    %2284 = vmatpush1.msra.mxu0 0.0
    %2285 = vmatprep.subr.mxu0 0.0
    %2286 = vmatpush1.msra.mxu0 0.0
    %2287 = vmatprep.subr.mxu0 0.0
    %2288 = vmatpush1.msra.mxu0 0.0
    %2289 = vmatprep.subr.mxu0 0.0
    %2290 = vmatpush1.msra.mxu0 0.0
    %2291 = vmatprep.subr.mxu0 0.0
    %2292 = vmatpush1.msra.mxu0 0.0
    %2293 = vmatprep.subr.mxu0 0.0
    %2294 = vmatpush1.msra.mxu0 0.0
    %2295 = vmatprep.subr.mxu0 0.0
    %2296 = vmatpush1.msra.mxu0 0.0
    %2297 = vmatprep.subr.mxu0 0.0
    %2298 = vmatpush1.msra.mxu0 0.0
    %2299 = vmatprep.subr.mxu0 0.0
    %2300 = vmatpush1.msra.mxu0 0.0
    %2301 = vmatprep.subr.mxu0 0.0
    %2302 = vmatpush1.msra.mxu0 0.0
    %2303 = vmatprep.subr.mxu0 0.0
    %2304 = vmatpush1.msra.mxu0 0.0
    %2305 = vmatprep.subr.mxu0 0.0
    %2306 = vmatpush1.msra.mxu0 0.0
    %2307 = vmatprep.subr.mxu0 0.0
    %2308 = vmatpush1.msra.mxu0 0.0
    %2309 = vmatprep.subr.mxu0 0.0
    %2310 = vmatpush1.msra.mxu0 0.0
    %2311 = vmatprep.subr.mxu0 0.0
    %2312 = vmatpush1.msra.mxu0 0.0
    %2313 = vmatprep.subr.mxu0 0.0
    %2314 = vmatpush1.msra.mxu0 0.0
    %2315 = vmatprep.subr.mxu0 0.0
    %2316 = vmatpush1.msra.mxu0 0.0
    %2317 = vmatprep.subr.mxu0 0.0
    %2318 = vmatpush1.msra.mxu0 0.0
    %2319 = vmatprep.subr.mxu0 0.0
    %2320 = vmatpush1.msra.mxu0 0.0
    %2321 = vmatprep.subr.mxu0 0.0
    %2322 = vmatpush1.msra.mxu0 0.0
    %2323 = vmatprep.subr.mxu0 0.0
    %2324 = vmatpush1.msra.mxu0 0.0
    %2325 = vmatprep.subr.mxu0 0.0
    %2326 = vmatpush1.msra.mxu0 0.0
    %2327 = vmatprep.subr.mxu0 0.0
    %2328 = vmatpush1.msra.mxu0 0.0
    %2329 = vmatprep.mubr.f32.mxu0 0.0
    %2330 = vmatmul.mubr.f32.gmra.mrb[0].mxu0 %v2162
    %v2331 = vpop.f32.mrb[0].mxu0
    %v2332 = vadd.f32 0.0, %v2331
    %v2333 = vpop.f32.mrb[0].mxu0
    %2334 = vdwg.mxu0
    %v2335 = vadd.f32 %v2264, %v2332
    %v2336 = vmul.f32 %v2335, 0.5
    %v2337 = vtanh.pop %v2336
    %v2338 = vadd.f32 %v2337, 1.0
    %v2339 = vmul.f32 %v2338, 0.5
    %v2340 = vtanh.pop %v2335
    %v2341 = vmul.f32 %v2339, %v2080
    %2343 = vrot.lane.b32.xlu0 %v2340, 64
    %v2344 = vpop.permute.xlu0 %2343
    %v2346 = vmul.f32 %v2339, %v2344
    %2348 = vrot.lane.b32.xlu0 %v2346, 32
    %v2349 = vpop.permute.xlu0 %2348
    %v2351 = vadd.f32 %v2341, %v2349
    %v2352 = vtanh.pop %v2351
    %2354 = vrot.lane.b32.xlu0 %v2352, 64
    %v2355 = vpop.permute.xlu0 %2354
    %v2357 = vmul.f32 %v2339, %v2355
    %v2358 = vsel %vm96, %v2259, 0
    %2360 = vmatprep.subr.mxu0 0.0
    %2361 = vmatpush1.msra.mxu0 %v84
    %2362 = vmatprep.subr.mxu0 0.0
    %2363 = vmatpush1.msra.mxu0 %v85
    %2364 = vmatprep.subr.mxu0 0.0
    %2365 = vmatpush1.msra.mxu0 %v86
    %2366 = vmatprep.subr.mxu0 0.0
    %2367 = vmatpush1.msra.mxu0 %v87
    %2368 = vmatprep.subr.mxu0 0.0
    %2369 = vmatpush1.msra.mxu0 0.0
    %2370 = vmatprep.subr.mxu0 0.0
    %2371 = vmatpush1.msra.mxu0 0.0
    %2372 = vmatprep.subr.mxu0 0.0
    %2373 = vmatpush1.msra.mxu0 0.0
    %2374 = vmatprep.subr.mxu0 0.0
    %2375 = vmatpush1.msra.mxu0 0.0
    %2376 = vmatprep.subr.mxu0 0.0
    %2377 = vmatpush1.msra.mxu0 0.0
    %2378 = vmatprep.subr.mxu0 0.0
    %2379 = vmatpush1.msra.mxu0 0.0
    %2380 = vmatprep.subr.mxu0 0.0
    %2381 = vmatpush1.msra.mxu0 0.0
    %2382 = vmatprep.subr.mxu0 0.0
    %2383 = vmatpush1.msra.mxu0 0.0
    %2384 = vmatprep.subr.mxu0 0.0
    %2385 = vmatpush1.msra.mxu0 0.0
    %2386 = vmatprep.subr.mxu0 0.0
    %2387 = vmatpush1.msra.mxu0 0.0
    %2388 = vmatprep.subr.mxu0 0.0
    %2389 = vmatpush1.msra.mxu0 0.0
    %2390 = vmatprep.subr.mxu0 0.0
    %2391 = vmatpush1.msra.mxu0 0.0
    %2392 = vmatprep.subr.mxu0 0.0
    %2393 = vmatpush1.msra.mxu0 0.0
    %2394 = vmatprep.subr.mxu0 0.0
    %2395 = vmatpush1.msra.mxu0 0.0
    %2396 = vmatprep.subr.mxu0 0.0
    %2397 = vmatpush1.msra.mxu0 0.0
    %2398 = vmatprep.subr.mxu0 0.0
    %2399 = vmatpush1.msra.mxu0 0.0
    %2400 = vmatprep.subr.mxu0 0.0
    %2401 = vmatpush1.msra.mxu0 0.0
    %2402 = vmatprep.subr.mxu0 0.0
    %2403 = vmatpush1.msra.mxu0 0.0
    %2404 = vmatprep.subr.mxu0 0.0
    %2405 = vmatpush1.msra.mxu0 0.0
    %2406 = vmatprep.subr.mxu0 0.0
    %2407 = vmatpush1.msra.mxu0 0.0
    %2408 = vmatprep.subr.mxu0 0.0
    %2409 = vmatpush1.msra.mxu0 0.0
    %2410 = vmatprep.subr.mxu0 0.0
    %2411 = vmatpush1.msra.mxu0 0.0
    %2412 = vmatprep.subr.mxu0 0.0
    %2413 = vmatpush1.msra.mxu0 0.0
    %2414 = vmatprep.subr.mxu0 0.0
    %2415 = vmatpush1.msra.mxu0 0.0
    %2416 = vmatprep.subr.mxu0 0.0
    %2417 = vmatpush1.msra.mxu0 0.0
    %2418 = vmatprep.subr.mxu0 0.0
    %2419 = vmatpush1.msra.mxu0 0.0
    %2420 = vmatprep.subr.mxu0 0.0
    %2421 = vmatpush1.msra.mxu0 0.0
    %2422 = vmatprep.subr.mxu0 0.0
    %2423 = vmatpush1.msra.mxu0 0.0
    %2424 = vmatprep.mubr.f32.mxu0 0.0
    %2425 = vmatmul.mubr.f32.gmra.mrb[0].mxu0 %v2358
    %v2426 = vpop.f32.mrb[0].mxu0
    %v2427 = vadd.f32 0.0, %v2426
    %v2428 = vpop.f32.mrb[0].mxu0
    %2429 = vdwg.mxu0
    %2431 = vrot.lane.b32.xlu0 %v2357, 32
    %v2432 = vpop.permute.xlu0 %2431
    %v2433 = vsel %vm96, %v2432, 0
    %2435 = vmatprep.subr.mxu0 0.0
    %2436 = vmatpush1.msra.mxu0 %v80
    %2437 = vmatprep.subr.mxu0 0.0
    %2438 = vmatpush1.msra.mxu0 %v81
    %2439 = vmatprep.subr.mxu0 0.0
    %2440 = vmatpush1.msra.mxu0 %v82
    %2441 = vmatprep.subr.mxu0 0.0
    %2442 = vmatpush1.msra.mxu0 %v83
    %2443 = vmatprep.subr.mxu0 0.0
    %2444 = vmatpush1.msra.mxu0 0.0
    %2445 = vmatprep.subr.mxu0 0.0
    %2446 = vmatpush1.msra.mxu0 0.0
    %2447 = vmatprep.subr.mxu0 0.0
    %2448 = vmatpush1.msra.mxu0 0.0
    %2449 = vmatprep.subr.mxu0 0.0
    %2450 = vmatpush1.msra.mxu0 0.0
    %2451 = vmatprep.subr.mxu0 0.0
    %2452 = vmatpush1.msra.mxu0 0.0
    %2453 = vmatprep.subr.mxu0 0.0
    %2454 = vmatpush1.msra.mxu0 0.0
    %2455 = vmatprep.subr.mxu0 0.0
    %2456 = vmatpush1.msra.mxu0 0.0
    %2457 = vmatprep.subr.mxu0 0.0
    %2458 = vmatpush1.msra.mxu0 0.0
    %2459 = vmatprep.subr.mxu0 0.0
    %2460 = vmatpush1.msra.mxu0 0.0
    %2461 = vmatprep.subr.mxu0 0.0
    %2462 = vmatpush1.msra.mxu0 0.0
    %2463 = vmatprep.subr.mxu0 0.0
    %2464 = vmatpush1.msra.mxu0 0.0
    %2465 = vmatprep.subr.mxu0 0.0
    %2466 = vmatpush1.msra.mxu0 0.0
    %2467 = vmatprep.subr.mxu0 0.0
    %2468 = vmatpush1.msra.mxu0 0.0
    %2469 = vmatprep.subr.mxu0 0.0
    %2470 = vmatpush1.msra.mxu0 0.0
    %2471 = vmatprep.subr.mxu0 0.0
    %2472 = vmatpush1.msra.mxu0 0.0
    %2473 = vmatprep.subr.mxu0 0.0
    %2474 = vmatpush1.msra.mxu0 0.0
    %2475 = vmatprep.subr.mxu0 0.0
    %2476 = vmatpush1.msra.mxu0 0.0
    %2477 = vmatprep.subr.mxu0 0.0
    %2478 = vmatpush1.msra.mxu0 0.0
    %2479 = vmatprep.subr.mxu0 0.0
    %2480 = vmatpush1.msra.mxu0 0.0
    %2481 = vmatprep.subr.mxu0 0.0
    %2482 = vmatpush1.msra.mxu0 0.0
    %2483 = vmatprep.subr.mxu0 0.0
    %2484 = vmatpush1.msra.mxu0 0.0
    %2485 = vmatprep.subr.mxu0 0.0
    %2486 = vmatpush1.msra.mxu0 0.0
    %2487 = vmatprep.subr.mxu0 0.0
    %2488 = vmatpush1.msra.mxu0 0.0
    %2489 = vmatprep.subr.mxu0 0.0
    %2490 = vmatpush1.msra.mxu0 0.0
    %2491 = vmatprep.subr.mxu0 0.0
    %2492 = vmatpush1.msra.mxu0 0.0
    %2493 = vmatprep.subr.mxu0 0.0
    %2494 = vmatpush1.msra.mxu0 0.0
    %2495 = vmatprep.subr.mxu0 0.0
    %2496 = vmatpush1.msra.mxu0 0.0
    %2497 = vmatprep.subr.mxu0 0.0
    %2498 = vmatpush1.msra.mxu0 0.0
    %2499 = vmatprep.mubr.f32.mxu0 0.0
    %2500 = vmatmul.mubr.f32.gmra.mrb[0].mxu0 %v2433
    %v2501 = vpop.f32.mrb[0].mxu0
    %v2502 = vadd.f32 %v2427, %v2501
    %v2503 = vpop.f32.mrb[0].mxu0
    %2504 = vdwg.mxu0
    %v2505 = vadd.f32 %v2502, %v93
    %v2506 = vmul.f32 %v2505, 0.5
    %v2507 = vtanh.pop %v2506
    %v2508 = vadd.f32 %v2507, 1.0
    %v2509 = vmul.f32 %v2508, 0.5
    %v2510 = vtanh.pop %v2505
    %v2511 = vmul.f32 %v2509, %v2250
    %2513 = vrot.lane.b32.xlu0 %v2510, 64
    %v2514 = vpop.permute.xlu0 %2513
    %v2516 = vmul.f32 %v2509, %v2514
    %2518 = vrot.lane.b32.xlu0 %v2516, 32
    %v2519 = vpop.permute.xlu0 %2518
    %v2521 = vadd.f32 %v2511, %v2519
    %v2522 = vtanh.pop %v2521
    %2524 = vrot.lane.b32.xlu0 %v2522, 64
    %v2525 = vpop.permute.xlu0 %2524
    %v2527 = vmul.f32 %v2509, %v2525
    %2529 = vrot.lane.b32.xlu0 %v2527, 32
    %v2530 = vpop.permute.xlu0 %2529
    %s2532 = scalar_lea.vmem [#allocation10], 64
    %2533 = vst.msk [vmem:[%s2532] sm:$0xff] %vm96, %v2530
    %s2534 = scalar_lea.vmem [#allocation2], 72
    %v2535 = vld [vmem:[%s2534] sm:$0xff]
    %2536 = vmatprep.subr.mxu0 0.0
    %2537 = vmatpush1.msra.mxu0 %v76
    %2538 = vmatprep.subr.mxu0 0.0
    %2539 = vmatpush1.msra.mxu0 %v77
    %2540 = vmatprep.subr.mxu0 0.0
    %2541 = vmatpush1.msra.mxu0 %v78
    %2542 = vmatprep.subr.mxu0 0.0
    %2543 = vmatpush1.msra.mxu0 %v79
    %2544 = vmatprep.subr.mxu0 0.0
    %2545 = vmatpush1.msra.mxu0 0.0
    %2546 = vmatprep.subr.mxu0 0.0
    %2547 = vmatpush1.msra.mxu0 0.0
    %2548 = vmatprep.subr.mxu0 0.0
    %2549 = vmatpush1.msra.mxu0 0.0
    %2550 = vmatprep.subr.mxu0 0.0
    %2551 = vmatpush1.msra.mxu0 0.0
    %2552 = vmatprep.subr.mxu0 0.0
    %2553 = vmatpush1.msra.mxu0 0.0
    %2554 = vmatprep.subr.mxu0 0.0
    %2555 = vmatpush1.msra.mxu0 0.0
    %2556 = vmatprep.subr.mxu0 0.0
    %2557 = vmatpush1.msra.mxu0 0.0
    %2558 = vmatprep.subr.mxu0 0.0
    %2559 = vmatpush1.msra.mxu0 0.0
    %2560 = vmatprep.subr.mxu0 0.0
    %2561 = vmatpush1.msra.mxu0 0.0
    %2562 = vmatprep.subr.mxu0 0.0
    %2563 = vmatpush1.msra.mxu0 0.0
    %2564 = vmatprep.subr.mxu0 0.0
    %2565 = vmatpush1.msra.mxu0 0.0
    %2566 = vmatprep.subr.mxu0 0.0
    %2567 = vmatpush1.msra.mxu0 0.0
    %2568 = vmatprep.subr.mxu0 0.0
    %2569 = vmatpush1.msra.mxu0 0.0
    %2570 = vmatprep.subr.mxu0 0.0
    %2571 = vmatpush1.msra.mxu0 0.0
    %2572 = vmatprep.subr.mxu0 0.0
    %2573 = vmatpush1.msra.mxu0 0.0
    %2574 = vmatprep.subr.mxu0 0.0
    %2575 = vmatpush1.msra.mxu0 0.0
    %2576 = vmatprep.subr.mxu0 0.0
    %2577 = vmatpush1.msra.mxu0 0.0
    %2578 = vmatprep.subr.mxu0 0.0
    %2579 = vmatpush1.msra.mxu0 0.0
    %2580 = vmatprep.subr.mxu0 0.0
    %2581 = vmatpush1.msra.mxu0 0.0
    %2582 = vmatprep.subr.mxu0 0.0
    %2583 = vmatpush1.msra.mxu0 0.0
    %2584 = vmatprep.subr.mxu0 0.0
    %2585 = vmatpush1.msra.mxu0 0.0
    %2586 = vmatprep.subr.mxu0 0.0
    %2587 = vmatpush1.msra.mxu0 0.0
    %2588 = vmatprep.subr.mxu0 0.0
    %2589 = vmatpush1.msra.mxu0 0.0
    %2590 = vmatprep.subr.mxu0 0.0
    %2591 = vmatpush1.msra.mxu0 0.0
    %2592 = vmatprep.subr.mxu0 0.0
    %2593 = vmatpush1.msra.mxu0 0.0
    %2594 = vmatprep.subr.mxu0 0.0
    %2595 = vmatpush1.msra.mxu0 0.0
    %2596 = vmatprep.subr.mxu0 0.0
    %2597 = vmatpush1.msra.mxu0 0.0
    %2598 = vmatprep.subr.mxu0 0.0
    %2599 = vmatpush1.msra.mxu0 0.0
    %2600 = vmatprep.mubr.f32.mxu0 0.0
    %2601 = vmatmul.mubr.f32.gmra.mrb[0].mxu0 %v2433
    %v2602 = vpop.f32.mrb[0].mxu0
    %v2603 = vadd.f32 0.0, %v2602
    %v2604 = vpop.f32.mrb[0].mxu0
    %2605 = vdwg.mxu0
    %v2606 = vadd.f32 %v2535, %v2603
    %v2607 = vmul.f32 %v2606, 0.5
    %v2608 = vtanh.pop %v2607
    %v2609 = vadd.f32 %v2608, 1.0
    %v2610 = vmul.f32 %v2609, 0.5
    %v2611 = vtanh.pop %v2606
    %v2612 = vmul.f32 %v2610, %v2351
    %2614 = vrot.lane.b32.xlu0 %v2611, 64
    %v2615 = vpop.permute.xlu0 %2614
    %v2617 = vmul.f32 %v2610, %v2615
    %2619 = vrot.lane.b32.xlu0 %v2617, 32
    %v2620 = vpop.permute.xlu0 %2619
    %v2622 = vadd.f32 %v2612, %v2620
    %v2623 = vtanh.pop %v2622
    %2625 = vrot.lane.b32.xlu0 %v2623, 64
    %v2626 = vpop.permute.xlu0 %2625
    %v2628 = vmul.f32 %v2610, %v2626
    %v2629 = vsel %vm96, %v2530, 0
    %2631 = vmatprep.subr.mxu0 0.0
    %2632 = vmatpush1.msra.mxu0 %v84
    %2633 = vmatprep.subr.mxu0 0.0
    %2634 = vmatpush1.msra.mxu0 %v85
    %2635 = vmatprep.subr.mxu0 0.0
    %2636 = vmatpush1.msra.mxu0 %v86
    %2637 = vmatprep.subr.mxu0 0.0
    %2638 = vmatpush1.msra.mxu0 %v87
    %2639 = vmatprep.subr.mxu0 0.0
    %2640 = vmatpush1.msra.mxu0 0.0
    %2641 = vmatprep.subr.mxu0 0.0
    %2642 = vmatpush1.msra.mxu0 0.0
    %2643 = vmatprep.subr.mxu0 0.0
    %2644 = vmatpush1.msra.mxu0 0.0
    %2645 = vmatprep.subr.mxu0 0.0
    %2646 = vmatpush1.msra.mxu0 0.0
    %2647 = vmatprep.subr.mxu0 0.0
    %2648 = vmatpush1.msra.mxu0 0.0
    %2649 = vmatprep.subr.mxu0 0.0
    %2650 = vmatpush1.msra.mxu0 0.0
    %2651 = vmatprep.subr.mxu0 0.0
    %2652 = vmatpush1.msra.mxu0 0.0
    %2653 = vmatprep.subr.mxu0 0.0
    %2654 = vmatpush1.msra.mxu0 0.0
    %2655 = vmatprep.subr.mxu0 0.0
    %2656 = vmatpush1.msra.mxu0 0.0
    %2657 = vmatprep.subr.mxu0 0.0
    %2658 = vmatpush1.msra.mxu0 0.0
    %2659 = vmatprep.subr.mxu0 0.0
    %2660 = vmatpush1.msra.mxu0 0.0
    %2661 = vmatprep.subr.mxu0 0.0
    %2662 = vmatpush1.msra.mxu0 0.0
    %2663 = vmatprep.subr.mxu0 0.0
    %2664 = vmatpush1.msra.mxu0 0.0
    %2665 = vmatprep.subr.mxu0 0.0
    %2666 = vmatpush1.msra.mxu0 0.0
    %2667 = vmatprep.subr.mxu0 0.0
    %2668 = vmatpush1.msra.mxu0 0.0
    %2669 = vmatprep.subr.mxu0 0.0
    %2670 = vmatpush1.msra.mxu0 0.0
    %2671 = vmatprep.subr.mxu0 0.0
    %2672 = vmatpush1.msra.mxu0 0.0
    %2673 = vmatprep.subr.mxu0 0.0
    %2674 = vmatpush1.msra.mxu0 0.0
    %2675 = vmatprep.subr.mxu0 0.0
    %2676 = vmatpush1.msra.mxu0 0.0
    %2677 = vmatprep.subr.mxu0 0.0
    %2678 = vmatpush1.msra.mxu0 0.0
    %2679 = vmatprep.subr.mxu0 0.0
    %2680 = vmatpush1.msra.mxu0 0.0
    %2681 = vmatprep.subr.mxu0 0.0
    %2682 = vmatpush1.msra.mxu0 0.0
    %2683 = vmatprep.subr.mxu0 0.0
    %2684 = vmatpush1.msra.mxu0 0.0
    %2685 = vmatprep.subr.mxu0 0.0
    %2686 = vmatpush1.msra.mxu0 0.0
    %2687 = vmatprep.subr.mxu0 0.0
    %2688 = vmatpush1.msra.mxu0 0.0
    %2689 = vmatprep.subr.mxu0 0.0
    %2690 = vmatpush1.msra.mxu0 0.0
    %2691 = vmatprep.subr.mxu0 0.0
    %2692 = vmatpush1.msra.mxu0 0.0
    %2693 = vmatprep.subr.mxu0 0.0
    %2694 = vmatpush1.msra.mxu0 0.0
    %2695 = vmatprep.mubr.f32.mxu0 0.0
    %2696 = vmatmul.mubr.f32.gmra.mrb[0].mxu0 %v2629
    %v2697 = vpop.f32.mrb[0].mxu0
    %v2698 = vadd.f32 0.0, %v2697
    %v2699 = vpop.f32.mrb[0].mxu0
    %2700 = vdwg.mxu0
    %2702 = vrot.lane.b32.xlu0 %v2628, 32
    %v2703 = vpop.permute.xlu0 %2702
    %v2704 = vsel %vm96, %v2703, 0
    %2706 = vmatprep.subr.mxu0 0.0
    %2707 = vmatpush1.msra.mxu0 %v80
    %2708 = vmatprep.subr.mxu0 0.0
    %2709 = vmatpush1.msra.mxu0 %v81
    %2710 = vmatprep.subr.mxu0 0.0
    %2711 = vmatpush1.msra.mxu0 %v82
    %2712 = vmatprep.subr.mxu0 0.0
    %2713 = vmatpush1.msra.mxu0 %v83
    %2714 = vmatprep.subr.mxu0 0.0
    %2715 = vmatpush1.msra.mxu0 0.0
    %2716 = vmatprep.subr.mxu0 0.0
    %2717 = vmatpush1.msra.mxu0 0.0
    %2718 = vmatprep.subr.mxu0 0.0
    %2719 = vmatpush1.msra.mxu0 0.0
    %2720 = vmatprep.subr.mxu0 0.0
    %2721 = vmatpush1.msra.mxu0 0.0
    %2722 = vmatprep.subr.mxu0 0.0
    %2723 = vmatpush1.msra.mxu0 0.0
    %2724 = vmatprep.subr.mxu0 0.0
    %2725 = vmatpush1.msra.mxu0 0.0
    %2726 = vmatprep.subr.mxu0 0.0
    %2727 = vmatpush1.msra.mxu0 0.0
    %2728 = vmatprep.subr.mxu0 0.0
    %2729 = vmatpush1.msra.mxu0 0.0
    %2730 = vmatprep.subr.mxu0 0.0
    %2731 = vmatpush1.msra.mxu0 0.0
    %2732 = vmatprep.subr.mxu0 0.0
    %2733 = vmatpush1.msra.mxu0 0.0
    %2734 = vmatprep.subr.mxu0 0.0
    %2735 = vmatpush1.msra.mxu0 0.0
    %2736 = vmatprep.subr.mxu0 0.0
    %2737 = vmatpush1.msra.mxu0 0.0
    %2738 = vmatprep.subr.mxu0 0.0
    %2739 = vmatpush1.msra.mxu0 0.0
    %2740 = vmatprep.subr.mxu0 0.0
    %2741 = vmatpush1.msra.mxu0 0.0
    %2742 = vmatprep.subr.mxu0 0.0
    %2743 = vmatpush1.msra.mxu0 0.0
    %2744 = vmatprep.subr.mxu0 0.0
    %2745 = vmatpush1.msra.mxu0 0.0
    %2746 = vmatprep.subr.mxu0 0.0
    %2747 = vmatpush1.msra.mxu0 0.0
    %2748 = vmatprep.subr.mxu0 0.0
    %2749 = vmatpush1.msra.mxu0 0.0
    %2750 = vmatprep.subr.mxu0 0.0
    %2751 = vmatpush1.msra.mxu0 0.0
    %2752 = vmatprep.subr.mxu0 0.0
    %2753 = vmatpush1.msra.mxu0 0.0
    %2754 = vmatprep.subr.mxu0 0.0
    %2755 = vmatpush1.msra.mxu0 0.0
    %2756 = vmatprep.subr.mxu0 0.0
    %2757 = vmatpush1.msra.mxu0 0.0
    %2758 = vmatprep.subr.mxu0 0.0
    %2759 = vmatpush1.msra.mxu0 0.0
    %2760 = vmatprep.subr.mxu0 0.0
    %2761 = vmatpush1.msra.mxu0 0.0
    %2762 = vmatprep.subr.mxu0 0.0
    %2763 = vmatpush1.msra.mxu0 0.0
    %2764 = vmatprep.subr.mxu0 0.0
    %2765 = vmatpush1.msra.mxu0 0.0
    %2766 = vmatprep.subr.mxu0 0.0
    %2767 = vmatpush1.msra.mxu0 0.0
    %2768 = vmatprep.subr.mxu0 0.0
    %2769 = vmatpush1.msra.mxu0 0.0
    %2770 = vmatprep.mubr.f32.mxu0 0.0
    %2771 = vmatmul.mubr.f32.gmra.mrb[0].mxu0 %v2704
    %v2772 = vpop.f32.mrb[0].mxu0
    %v2773 = vadd.f32 %v2698, %v2772
    %v2774 = vpop.f32.mrb[0].mxu0
    %2775 = vdwg.mxu0
    %v2776 = vadd.f32 %v2773, %v93
    %v2777 = vmul.f32 %v2776, 0.5
    %v2778 = vtanh.pop %v2777
    %v2779 = vadd.f32 %v2778, 1.0
    %v2780 = vmul.f32 %v2779, 0.5
    %v2781 = vtanh.pop %v2776
    %v2782 = vmul.f32 %v2780, %v2521
    %2784 = vrot.lane.b32.xlu0 %v2781, 64
    %v2785 = vpop.permute.xlu0 %2784
    %v2787 = vmul.f32 %v2780, %v2785
    %2789 = vrot.lane.b32.xlu0 %v2787, 32
    %v2790 = vpop.permute.xlu0 %2789
    %v2792 = vadd.f32 %v2782, %v2790
    %v2793 = vtanh.pop %v2792
    %2795 = vrot.lane.b32.xlu0 %v2793, 64
    %v2796 = vpop.permute.xlu0 %2795
    %v2798 = vmul.f32 %v2780, %v2796
    %2800 = vrot.lane.b32.xlu0 %v2798, 32
    %v2801 = vpop.permute.xlu0 %2800
    %s2803 = scalar_lea.vmem [#allocation10], 72
    %2804 = vst.msk [vmem:[%s2803] sm:$0xff] %vm96, %v2801
    %s2805 = scalar_lea.vmem [#allocation2], 80
    %v2806 = vld [vmem:[%s2805] sm:$0xff]
    %2807 = vmatprep.subr.mxu0 0.0
    %2808 = vmatpush1.msra.mxu0 %v76
    %2809 = vmatprep.subr.mxu0 0.0
    %2810 = vmatpush1.msra.mxu0 %v77
    %2811 = vmatprep.subr.mxu0 0.0
    %2812 = vmatpush1.msra.mxu0 %v78
    %2813 = vmatprep.subr.mxu0 0.0
    %2814 = vmatpush1.msra.mxu0 %v79
    %2815 = vmatprep.subr.mxu0 0.0
    %2816 = vmatpush1.msra.mxu0 0.0
    %2817 = vmatprep.subr.mxu0 0.0
    %2818 = vmatpush1.msra.mxu0 0.0
    %2819 = vmatprep.subr.mxu0 0.0
    %2820 = vmatpush1.msra.mxu0 0.0
    %2821 = vmatprep.subr.mxu0 0.0
    %2822 = vmatpush1.msra.mxu0 0.0
    %2823 = vmatprep.subr.mxu0 0.0
    %2824 = vmatpush1.msra.mxu0 0.0
    %2825 = vmatprep.subr.mxu0 0.0
    %2826 = vmatpush1.msra.mxu0 0.0
    %2827 = vmatprep.subr.mxu0 0.0
    %2828 = vmatpush1.msra.mxu0 0.0
    %2829 = vmatprep.subr.mxu0 0.0
    %2830 = vmatpush1.msra.mxu0 0.0
    %2831 = vmatprep.subr.mxu0 0.0
    %2832 = vmatpush1.msra.mxu0 0.0
    %2833 = vmatprep.subr.mxu0 0.0
    %2834 = vmatpush1.msra.mxu0 0.0
    %2835 = vmatprep.subr.mxu0 0.0
    %2836 = vmatpush1.msra.mxu0 0.0
    %2837 = vmatprep.subr.mxu0 0.0
    %2838 = vmatpush1.msra.mxu0 0.0
    %2839 = vmatprep.subr.mxu0 0.0
    %2840 = vmatpush1.msra.mxu0 0.0
    %2841 = vmatprep.subr.mxu0 0.0
    %2842 = vmatpush1.msra.mxu0 0.0
    %2843 = vmatprep.subr.mxu0 0.0
    %2844 = vmatpush1.msra.mxu0 0.0
    %2845 = vmatprep.subr.mxu0 0.0
    %2846 = vmatpush1.msra.mxu0 0.0
    %2847 = vmatprep.subr.mxu0 0.0
    %2848 = vmatpush1.msra.mxu0 0.0
    %2849 = vmatprep.subr.mxu0 0.0
    %2850 = vmatpush1.msra.mxu0 0.0
    %2851 = vmatprep.subr.mxu0 0.0
    %2852 = vmatpush1.msra.mxu0 0.0
    %2853 = vmatprep.subr.mxu0 0.0
    %2854 = vmatpush1.msra.mxu0 0.0
    %2855 = vmatprep.subr.mxu0 0.0
    %2856 = vmatpush1.msra.mxu0 0.0
    %2857 = vmatprep.subr.mxu0 0.0
    %2858 = vmatpush1.msra.mxu0 0.0
    %2859 = vmatprep.subr.mxu0 0.0
    %2860 = vmatpush1.msra.mxu0 0.0
    %2861 = vmatprep.subr.mxu0 0.0
    %2862 = vmatpush1.msra.mxu0 0.0
    %2863 = vmatprep.subr.mxu0 0.0
    %2864 = vmatpush1.msra.mxu0 0.0
    %2865 = vmatprep.subr.mxu0 0.0
    %2866 = vmatpush1.msra.mxu0 0.0
    %2867 = vmatprep.subr.mxu0 0.0
    %2868 = vmatpush1.msra.mxu0 0.0
    %2869 = vmatprep.subr.mxu0 0.0
    %2870 = vmatpush1.msra.mxu0 0.0
    %2871 = vmatprep.mubr.f32.mxu0 0.0
    %2872 = vmatmul.mubr.f32.gmra.mrb[0].mxu0 %v2704
    %v2873 = vpop.f32.mrb[0].mxu0
    %v2874 = vadd.f32 0.0, %v2873
    %v2875 = vpop.f32.mrb[0].mxu0
    %2876 = vdwg.mxu0
    %v2877 = vadd.f32 %v2806, %v2874
    %v2878 = vmul.f32 %v2877, 0.5
    %v2879 = vtanh.pop %v2878
    %v2880 = vadd.f32 %v2879, 1.0
    %v2881 = vmul.f32 %v2880, 0.5
    %v2882 = vtanh.pop %v2877
    %v2883 = vmul.f32 %v2881, %v2622
    %2885 = vrot.lane.b32.xlu0 %v2882, 64
    %v2886 = vpop.permute.xlu0 %2885
    %v2888 = vmul.f32 %v2881, %v2886
    %2890 = vrot.lane.b32.xlu0 %v2888, 32
    %v2891 = vpop.permute.xlu0 %2890
    %v2893 = vadd.f32 %v2883, %v2891
    %v2894 = vtanh.pop %v2893
    %2896 = vrot.lane.b32.xlu0 %v2894, 64
    %v2897 = vpop.permute.xlu0 %2896
    %v2899 = vmul.f32 %v2881, %v2897
    %v2900 = vsel %vm96, %v2801, 0
    %2902 = vmatprep.subr.mxu0 0.0
    %2903 = vmatpush1.msra.mxu0 %v84
    %2904 = vmatprep.subr.mxu0 0.0
    %2905 = vmatpush1.msra.mxu0 %v85
    %2906 = vmatprep.subr.mxu0 0.0
    %2907 = vmatpush1.msra.mxu0 %v86
    %2908 = vmatprep.subr.mxu0 0.0
    %2909 = vmatpush1.msra.mxu0 %v87
    %2910 = vmatprep.subr.mxu0 0.0
    %2911 = vmatpush1.msra.mxu0 0.0
    %2912 = vmatprep.subr.mxu0 0.0
    %2913 = vmatpush1.msra.mxu0 0.0
    %2914 = vmatprep.subr.mxu0 0.0
    %2915 = vmatpush1.msra.mxu0 0.0
    %2916 = vmatprep.subr.mxu0 0.0
    %2917 = vmatpush1.msra.mxu0 0.0
    %2918 = vmatprep.subr.mxu0 0.0
    %2919 = vmatpush1.msra.mxu0 0.0
    %2920 = vmatprep.subr.mxu0 0.0
    %2921 = vmatpush1.msra.mxu0 0.0
    %2922 = vmatprep.subr.mxu0 0.0
    %2923 = vmatpush1.msra.mxu0 0.0
    %2924 = vmatprep.subr.mxu0 0.0
    %2925 = vmatpush1.msra.mxu0 0.0
    %2926 = vmatprep.subr.mxu0 0.0
    %2927 = vmatpush1.msra.mxu0 0.0
    %2928 = vmatprep.subr.mxu0 0.0
    %2929 = vmatpush1.msra.mxu0 0.0
    %2930 = vmatprep.subr.mxu0 0.0
    %2931 = vmatpush1.msra.mxu0 0.0
    %2932 = vmatprep.subr.mxu0 0.0
    %2933 = vmatpush1.msra.mxu0 0.0
    %2934 = vmatprep.subr.mxu0 0.0
    %2935 = vmatpush1.msra.mxu0 0.0
    %2936 = vmatprep.subr.mxu0 0.0
    %2937 = vmatpush1.msra.mxu0 0.0
    %2938 = vmatprep.subr.mxu0 0.0
    %2939 = vmatpush1.msra.mxu0 0.0
    %2940 = vmatprep.subr.mxu0 0.0
    %2941 = vmatpush1.msra.mxu0 0.0
    %2942 = vmatprep.subr.mxu0 0.0
    %2943 = vmatpush1.msra.mxu0 0.0
    %2944 = vmatprep.subr.mxu0 0.0
    %2945 = vmatpush1.msra.mxu0 0.0
    %2946 = vmatprep.subr.mxu0 0.0
    %2947 = vmatpush1.msra.mxu0 0.0
    %2948 = vmatprep.subr.mxu0 0.0
    %2949 = vmatpush1.msra.mxu0 0.0
    %2950 = vmatprep.subr.mxu0 0.0
    %2951 = vmatpush1.msra.mxu0 0.0
    %2952 = vmatprep.subr.mxu0 0.0
    %2953 = vmatpush1.msra.mxu0 0.0
    %2954 = vmatprep.subr.mxu0 0.0
    %2955 = vmatpush1.msra.mxu0 0.0
    %2956 = vmatprep.subr.mxu0 0.0
    %2957 = vmatpush1.msra.mxu0 0.0
    %2958 = vmatprep.subr.mxu0 0.0
    %2959 = vmatpush1.msra.mxu0 0.0
    %2960 = vmatprep.subr.mxu0 0.0
    %2961 = vmatpush1.msra.mxu0 0.0
    %2962 = vmatprep.subr.mxu0 0.0
    %2963 = vmatpush1.msra.mxu0 0.0
    %2964 = vmatprep.subr.mxu0 0.0
    %2965 = vmatpush1.msra.mxu0 0.0
    %2966 = vmatprep.mubr.f32.mxu0 0.0
    %2967 = vmatmul.mubr.f32.gmra.mrb[0].mxu0 %v2900
    %v2968 = vpop.f32.mrb[0].mxu0
    %v2969 = vadd.f32 0.0, %v2968
    %v2970 = vpop.f32.mrb[0].mxu0
    %2971 = vdwg.mxu0
    %2973 = vrot.lane.b32.xlu0 %v2899, 32
    %v2974 = vpop.permute.xlu0 %2973
    %v2975 = vsel %vm96, %v2974, 0
    %2977 = vmatprep.subr.mxu0 0.0
    %2978 = vmatpush1.msra.mxu0 %v80
    %2979 = vmatprep.subr.mxu0 0.0
    %2980 = vmatpush1.msra.mxu0 %v81
    %2981 = vmatprep.subr.mxu0 0.0
    %2982 = vmatpush1.msra.mxu0 %v82
    %2983 = vmatprep.subr.mxu0 0.0
    %2984 = vmatpush1.msra.mxu0 %v83
    %2985 = vmatprep.subr.mxu0 0.0
    %2986 = vmatpush1.msra.mxu0 0.0
    %2987 = vmatprep.subr.mxu0 0.0
    %2988 = vmatpush1.msra.mxu0 0.0
    %2989 = vmatprep.subr.mxu0 0.0
    %2990 = vmatpush1.msra.mxu0 0.0
    %2991 = vmatprep.subr.mxu0 0.0
    %2992 = vmatpush1.msra.mxu0 0.0
    %2993 = vmatprep.subr.mxu0 0.0
    %2994 = vmatpush1.msra.mxu0 0.0
    %2995 = vmatprep.subr.mxu0 0.0
    %2996 = vmatpush1.msra.mxu0 0.0
    %2997 = vmatprep.subr.mxu0 0.0
    %2998 = vmatpush1.msra.mxu0 0.0
    %2999 = vmatprep.subr.mxu0 0.0
    %3000 = vmatpush1.msra.mxu0 0.0
    %3001 = vmatprep.subr.mxu0 0.0
    %3002 = vmatpush1.msra.mxu0 0.0
    %3003 = vmatprep.subr.mxu0 0.0
    %3004 = vmatpush1.msra.mxu0 0.0
    %3005 = vmatprep.subr.mxu0 0.0
    %3006 = vmatpush1.msra.mxu0 0.0
    %3007 = vmatprep.subr.mxu0 0.0
    %3008 = vmatpush1.msra.mxu0 0.0
    %3009 = vmatprep.subr.mxu0 0.0
    %3010 = vmatpush1.msra.mxu0 0.0
    %3011 = vmatprep.subr.mxu0 0.0
    %3012 = vmatpush1.msra.mxu0 0.0
    %3013 = vmatprep.subr.mxu0 0.0
    %3014 = vmatpush1.msra.mxu0 0.0
    %3015 = vmatprep.subr.mxu0 0.0
    %3016 = vmatpush1.msra.mxu0 0.0
    %3017 = vmatprep.subr.mxu0 0.0
    %3018 = vmatpush1.msra.mxu0 0.0
    %3019 = vmatprep.subr.mxu0 0.0
    %3020 = vmatpush1.msra.mxu0 0.0
    %3021 = vmatprep.subr.mxu0 0.0
    %3022 = vmatpush1.msra.mxu0 0.0
    %3023 = vmatprep.subr.mxu0 0.0
    %3024 = vmatpush1.msra.mxu0 0.0
    %3025 = vmatprep.subr.mxu0 0.0
    %3026 = vmatpush1.msra.mxu0 0.0
    %3027 = vmatprep.subr.mxu0 0.0
    %3028 = vmatpush1.msra.mxu0 0.0
    %3029 = vmatprep.subr.mxu0 0.0
    %3030 = vmatpush1.msra.mxu0 0.0
    %3031 = vmatprep.subr.mxu0 0.0
    %3032 = vmatpush1.msra.mxu0 0.0
    %3033 = vmatprep.subr.mxu0 0.0
    %3034 = vmatpush1.msra.mxu0 0.0
    %3035 = vmatprep.subr.mxu0 0.0
    %3036 = vmatpush1.msra.mxu0 0.0
    %3037 = vmatprep.subr.mxu0 0.0
    %3038 = vmatpush1.msra.mxu0 0.0
    %3039 = vmatprep.subr.mxu0 0.0
    %3040 = vmatpush1.msra.mxu0 0.0
    %3041 = vmatprep.mubr.f32.mxu0 0.0
    %3042 = vmatmul.mubr.f32.gmra.mrb[0].mxu0 %v2975
    %v3043 = vpop.f32.mrb[0].mxu0
    %v3044 = vadd.f32 %v2969, %v3043
    %v3045 = vpop.f32.mrb[0].mxu0
    %3046 = vdwg.mxu0
    %v3047 = vadd.f32 %v3044, %v93
    %v3048 = vmul.f32 %v3047, 0.5
    %v3049 = vtanh.pop %v3048
    %v3050 = vadd.f32 %v3049, 1.0
    %v3051 = vmul.f32 %v3050, 0.5
    %v3052 = vtanh.pop %v3047
    %v3053 = vmul.f32 %v3051, %v2792
    %3055 = vrot.lane.b32.xlu0 %v3052, 64
    %v3056 = vpop.permute.xlu0 %3055
    %v3058 = vmul.f32 %v3051, %v3056
    %3060 = vrot.lane.b32.xlu0 %v3058, 32
    %v3061 = vpop.permute.xlu0 %3060
    %v3063 = vadd.f32 %v3053, %v3061
    %v3064 = vtanh.pop %v3063
    %3066 = vrot.lane.b32.xlu0 %v3064, 64
    %v3067 = vpop.permute.xlu0 %3066
    %v3069 = vmul.f32 %v3051, %v3067
    %3071 = vrot.lane.b32.xlu0 %v3069, 32
    %v3072 = vpop.permute.xlu0 %3071
    %s3074 = scalar_lea.vmem [#allocation10], 80
    %3075 = vst.msk [vmem:[%s3074] sm:$0xff] %vm96, %v3072
    %s3076 = scalar_lea.vmem [#allocation2], 88
    %v3077 = vld [vmem:[%s3076] sm:$0xff]
    %3078 = vmatprep.subr.mxu0 0.0
    %3079 = vmatpush1.msra.mxu0 %v76
    %3080 = vmatprep.subr.mxu0 0.0
    %3081 = vmatpush1.msra.mxu0 %v77
    %3082 = vmatprep.subr.mxu0 0.0
    %3083 = vmatpush1.msra.mxu0 %v78
    %3084 = vmatprep.subr.mxu0 0.0
    %3085 = vmatpush1.msra.mxu0 %v79
    %3086 = vmatprep.subr.mxu0 0.0
    %3087 = vmatpush1.msra.mxu0 0.0
    %3088 = vmatprep.subr.mxu0 0.0
    %3089 = vmatpush1.msra.mxu0 0.0
    %3090 = vmatprep.subr.mxu0 0.0
    %3091 = vmatpush1.msra.mxu0 0.0
    %3092 = vmatprep.subr.mxu0 0.0
    %3093 = vmatpush1.msra.mxu0 0.0
    %3094 = vmatprep.subr.mxu0 0.0
    %3095 = vmatpush1.msra.mxu0 0.0
    %3096 = vmatprep.subr.mxu0 0.0
    %3097 = vmatpush1.msra.mxu0 0.0
    %3098 = vmatprep.subr.mxu0 0.0
    %3099 = vmatpush1.msra.mxu0 0.0
    %3100 = vmatprep.subr.mxu0 0.0
    %3101 = vmatpush1.msra.mxu0 0.0
    %3102 = vmatprep.subr.mxu0 0.0
    %3103 = vmatpush1.msra.mxu0 0.0
    %3104 = vmatprep.subr.mxu0 0.0
    %3105 = vmatpush1.msra.mxu0 0.0
    %3106 = vmatprep.subr.mxu0 0.0
    %3107 = vmatpush1.msra.mxu0 0.0
    %3108 = vmatprep.subr.mxu0 0.0
    %3109 = vmatpush1.msra.mxu0 0.0
    %3110 = vmatprep.subr.mxu0 0.0
    %3111 = vmatpush1.msra.mxu0 0.0
    %3112 = vmatprep.subr.mxu0 0.0
    %3113 = vmatpush1.msra.mxu0 0.0
    %3114 = vmatprep.subr.mxu0 0.0
    %3115 = vmatpush1.msra.mxu0 0.0
    %3116 = vmatprep.subr.mxu0 0.0
    %3117 = vmatpush1.msra.mxu0 0.0
    %3118 = vmatprep.subr.mxu0 0.0
    %3119 = vmatpush1.msra.mxu0 0.0
    %3120 = vmatprep.subr.mxu0 0.0
    %3121 = vmatpush1.msra.mxu0 0.0
    %3122 = vmatprep.subr.mxu0 0.0
    %3123 = vmatpush1.msra.mxu0 0.0
    %3124 = vmatprep.subr.mxu0 0.0
    %3125 = vmatpush1.msra.mxu0 0.0
    %3126 = vmatprep.subr.mxu0 0.0
    %3127 = vmatpush1.msra.mxu0 0.0
    %3128 = vmatprep.subr.mxu0 0.0
    %3129 = vmatpush1.msra.mxu0 0.0
    %3130 = vmatprep.subr.mxu0 0.0
    %3131 = vmatpush1.msra.mxu0 0.0
    %3132 = vmatprep.subr.mxu0 0.0
    %3133 = vmatpush1.msra.mxu0 0.0
    %3134 = vmatprep.subr.mxu0 0.0
    %3135 = vmatpush1.msra.mxu0 0.0
    %3136 = vmatprep.subr.mxu0 0.0
    %3137 = vmatpush1.msra.mxu0 0.0
    %3138 = vmatprep.subr.mxu0 0.0
    %3139 = vmatpush1.msra.mxu0 0.0
    %3140 = vmatprep.subr.mxu0 0.0
    %3141 = vmatpush1.msra.mxu0 0.0
    %3142 = vmatprep.mubr.f32.mxu0 0.0
    %3143 = vmatmul.mubr.f32.gmra.mrb[0].mxu0 %v2975
    %v3144 = vpop.f32.mrb[0].mxu0
    %v3145 = vadd.f32 0.0, %v3144
    %v3146 = vpop.f32.mrb[0].mxu0
    %3147 = vdwg.mxu0
    %v3148 = vadd.f32 %v3077, %v3145
    %v3149 = vmul.f32 %v3148, 0.5
    %v3150 = vtanh.pop %v3149
    %v3151 = vadd.f32 %v3150, 1.0
    %v3152 = vmul.f32 %v3151, 0.5
    %v3153 = vtanh.pop %v3148
    %v3154 = vmul.f32 %v3152, %v2893
    %3156 = vrot.lane.b32.xlu0 %v3153, 64
    %v3157 = vpop.permute.xlu0 %3156
    %v3159 = vmul.f32 %v3152, %v3157
    %3161 = vrot.lane.b32.xlu0 %v3159, 32
    %v3162 = vpop.permute.xlu0 %3161
    %v3164 = vadd.f32 %v3154, %v3162
    %v3165 = vtanh.pop %v3164
    %3167 = vrot.lane.b32.xlu0 %v3165, 64
    %v3168 = vpop.permute.xlu0 %3167
    %v3170 = vmul.f32 %v3152, %v3168
    %v3171 = vsel %vm96, %v3072, 0
    %3173 = vmatprep.subr.mxu0 0.0
    %3174 = vmatpush1.msra.mxu0 %v84
    %3175 = vmatprep.subr.mxu0 0.0
    %3176 = vmatpush1.msra.mxu0 %v85
    %3177 = vmatprep.subr.mxu0 0.0
    %3178 = vmatpush1.msra.mxu0 %v86
    %3179 = vmatprep.subr.mxu0 0.0
    %3180 = vmatpush1.msra.mxu0 %v87
    %3181 = vmatprep.subr.mxu0 0.0
    %3182 = vmatpush1.msra.mxu0 0.0
    %3183 = vmatprep.subr.mxu0 0.0
    %3184 = vmatpush1.msra.mxu0 0.0
    %3185 = vmatprep.subr.mxu0 0.0
    %3186 = vmatpush1.msra.mxu0 0.0
    %3187 = vmatprep.subr.mxu0 0.0
    %3188 = vmatpush1.msra.mxu0 0.0
    %3189 = vmatprep.subr.mxu0 0.0
    %3190 = vmatpush1.msra.mxu0 0.0
    %3191 = vmatprep.subr.mxu0 0.0
    %3192 = vmatpush1.msra.mxu0 0.0
    %3193 = vmatprep.subr.mxu0 0.0
    %3194 = vmatpush1.msra.mxu0 0.0
    %3195 = vmatprep.subr.mxu0 0.0
    %3196 = vmatpush1.msra.mxu0 0.0
    %3197 = vmatprep.subr.mxu0 0.0
    %3198 = vmatpush1.msra.mxu0 0.0
    %3199 = vmatprep.subr.mxu0 0.0
    %3200 = vmatpush1.msra.mxu0 0.0
    %3201 = vmatprep.subr.mxu0 0.0
    %3202 = vmatpush1.msra.mxu0 0.0
    %3203 = vmatprep.subr.mxu0 0.0
    %3204 = vmatpush1.msra.mxu0 0.0
    %3205 = vmatprep.subr.mxu0 0.0
    %3206 = vmatpush1.msra.mxu0 0.0
    %3207 = vmatprep.subr.mxu0 0.0
    %3208 = vmatpush1.msra.mxu0 0.0
    %3209 = vmatprep.subr.mxu0 0.0
    %3210 = vmatpush1.msra.mxu0 0.0
    %3211 = vmatprep.subr.mxu0 0.0
    %3212 = vmatpush1.msra.mxu0 0.0
    %3213 = vmatprep.subr.mxu0 0.0
    %3214 = vmatpush1.msra.mxu0 0.0
    %3215 = vmatprep.subr.mxu0 0.0
    %3216 = vmatpush1.msra.mxu0 0.0
    %3217 = vmatprep.subr.mxu0 0.0
    %3218 = vmatpush1.msra.mxu0 0.0
    %3219 = vmatprep.subr.mxu0 0.0
    %3220 = vmatpush1.msra.mxu0 0.0
    %3221 = vmatprep.subr.mxu0 0.0
    %3222 = vmatpush1.msra.mxu0 0.0
    %3223 = vmatprep.subr.mxu0 0.0
    %3224 = vmatpush1.msra.mxu0 0.0
    %3225 = vmatprep.subr.mxu0 0.0
    %3226 = vmatpush1.msra.mxu0 0.0
    %3227 = vmatprep.subr.mxu0 0.0
    %3228 = vmatpush1.msra.mxu0 0.0
    %3229 = vmatprep.subr.mxu0 0.0
    %3230 = vmatpush1.msra.mxu0 0.0
    %3231 = vmatprep.subr.mxu0 0.0
    %3232 = vmatpush1.msra.mxu0 0.0
    %3233 = vmatprep.subr.mxu0 0.0
    %3234 = vmatpush1.msra.mxu0 0.0
    %3235 = vmatprep.subr.mxu0 0.0
    %3236 = vmatpush1.msra.mxu0 0.0
    %3237 = vmatprep.mubr.f32.mxu0 0.0
    %3238 = vmatmul.mubr.f32.gmra.mrb[0].mxu0 %v3171
    %v3239 = vpop.f32.mrb[0].mxu0
    %v3240 = vadd.f32 0.0, %v3239
    %v3241 = vpop.f32.mrb[0].mxu0
    %3242 = vdwg.mxu0
    %3244 = vrot.lane.b32.xlu0 %v3170, 32
    %v3245 = vpop.permute.xlu0 %3244
    %v3246 = vsel %vm96, %v3245, 0
    %3248 = vmatprep.subr.mxu0 0.0
    %3249 = vmatpush1.msra.mxu0 %v80
    %3250 = vmatprep.subr.mxu0 0.0
    %3251 = vmatpush1.msra.mxu0 %v81
    %3252 = vmatprep.subr.mxu0 0.0
    %3253 = vmatpush1.msra.mxu0 %v82
    %3254 = vmatprep.subr.mxu0 0.0
    %3255 = vmatpush1.msra.mxu0 %v83
    %3256 = vmatprep.subr.mxu0 0.0
    %3257 = vmatpush1.msra.mxu0 0.0
    %3258 = vmatprep.subr.mxu0 0.0
    %3259 = vmatpush1.msra.mxu0 0.0
    %3260 = vmatprep.subr.mxu0 0.0
    %3261 = vmatpush1.msra.mxu0 0.0
    %3262 = vmatprep.subr.mxu0 0.0
    %3263 = vmatpush1.msra.mxu0 0.0
    %3264 = vmatprep.subr.mxu0 0.0
    %3265 = vmatpush1.msra.mxu0 0.0
    %3266 = vmatprep.subr.mxu0 0.0
    %3267 = vmatpush1.msra.mxu0 0.0
    %3268 = vmatprep.subr.mxu0 0.0
    %3269 = vmatpush1.msra.mxu0 0.0
    %3270 = vmatprep.subr.mxu0 0.0
    %3271 = vmatpush1.msra.mxu0 0.0
    %3272 = vmatprep.subr.mxu0 0.0
    %3273 = vmatpush1.msra.mxu0 0.0
    %3274 = vmatprep.subr.mxu0 0.0
    %3275 = vmatpush1.msra.mxu0 0.0
    %3276 = vmatprep.subr.mxu0 0.0
    %3277 = vmatpush1.msra.mxu0 0.0
    %3278 = vmatprep.subr.mxu0 0.0
    %3279 = vmatpush1.msra.mxu0 0.0
    %3280 = vmatprep.subr.mxu0 0.0
    %3281 = vmatpush1.msra.mxu0 0.0
    %3282 = vmatprep.subr.mxu0 0.0
    %3283 = vmatpush1.msra.mxu0 0.0
    %3284 = vmatprep.subr.mxu0 0.0
    %3285 = vmatpush1.msra.mxu0 0.0
    %3286 = vmatprep.subr.mxu0 0.0
    %3287 = vmatpush1.msra.mxu0 0.0
    %3288 = vmatprep.subr.mxu0 0.0
    %3289 = vmatpush1.msra.mxu0 0.0
    %3290 = vmatprep.subr.mxu0 0.0
    %3291 = vmatpush1.msra.mxu0 0.0
    %3292 = vmatprep.subr.mxu0 0.0
    %3293 = vmatpush1.msra.mxu0 0.0
    %3294 = vmatprep.subr.mxu0 0.0
    %3295 = vmatpush1.msra.mxu0 0.0
    %3296 = vmatprep.subr.mxu0 0.0
    %3297 = vmatpush1.msra.mxu0 0.0
    %3298 = vmatprep.subr.mxu0 0.0
    %3299 = vmatpush1.msra.mxu0 0.0
    %3300 = vmatprep.subr.mxu0 0.0
    %3301 = vmatpush1.msra.mxu0 0.0
    %3302 = vmatprep.subr.mxu0 0.0
    %3303 = vmatpush1.msra.mxu0 0.0
    %3304 = vmatprep.subr.mxu0 0.0
    %3305 = vmatpush1.msra.mxu0 0.0
    %3306 = vmatprep.subr.mxu0 0.0
    %3307 = vmatpush1.msra.mxu0 0.0
    %3308 = vmatprep.subr.mxu0 0.0
    %3309 = vmatpush1.msra.mxu0 0.0
    %3310 = vmatprep.subr.mxu0 0.0
    %3311 = vmatpush1.msra.mxu0 0.0
    %3312 = vmatprep.mubr.f32.mxu0 0.0
    %3313 = vmatmul.mubr.f32.gmra.mrb[0].mxu0 %v3246
    %v3314 = vpop.f32.mrb[0].mxu0
    %v3315 = vadd.f32 %v3240, %v3314
    %v3316 = vpop.f32.mrb[0].mxu0
    %3317 = vdwg.mxu0
    %v3318 = vadd.f32 %v3315, %v93
    %v3319 = vmul.f32 %v3318, 0.5
    %v3320 = vtanh.pop %v3319
    %v3321 = vadd.f32 %v3320, 1.0
    %v3322 = vmul.f32 %v3321, 0.5
    %v3323 = vtanh.pop %v3318
    %v3324 = vmul.f32 %v3322, %v3063
    %3326 = vrot.lane.b32.xlu0 %v3323, 64
    %v3327 = vpop.permute.xlu0 %3326
    %v3329 = vmul.f32 %v3322, %v3327
    %3331 = vrot.lane.b32.xlu0 %v3329, 32
    %v3332 = vpop.permute.xlu0 %3331
    %v3334 = vadd.f32 %v3324, %v3332
    %v3335 = vtanh.pop %v3334
    %3337 = vrot.lane.b32.xlu0 %v3335, 64
    %v3338 = vpop.permute.xlu0 %3337
    %v3340 = vmul.f32 %v3322, %v3338
    %3342 = vrot.lane.b32.xlu0 %v3340, 32
    %v3343 = vpop.permute.xlu0 %3342
    %s3345 = scalar_lea.vmem [#allocation10], 88
    %3346 = vst.msk [vmem:[%s3345] sm:$0xff] %vm96, %v3343
    %s3347 = scalar_lea.vmem [#allocation2], 96
    %v3348 = vld [vmem:[%s3347] sm:$0xff]
    %3349 = vmatprep.subr.mxu0 0.0
    %3350 = vmatpush1.msra.mxu0 %v76
    %3351 = vmatprep.subr.mxu0 0.0
    %3352 = vmatpush1.msra.mxu0 %v77
    %3353 = vmatprep.subr.mxu0 0.0
    %3354 = vmatpush1.msra.mxu0 %v78
    %3355 = vmatprep.subr.mxu0 0.0
    %3356 = vmatpush1.msra.mxu0 %v79
    %3357 = vmatprep.subr.mxu0 0.0
    %3358 = vmatpush1.msra.mxu0 0.0
    %3359 = vmatprep.subr.mxu0 0.0
    %3360 = vmatpush1.msra.mxu0 0.0
    %3361 = vmatprep.subr.mxu0 0.0
    %3362 = vmatpush1.msra.mxu0 0.0
    %3363 = vmatprep.subr.mxu0 0.0
    %3364 = vmatpush1.msra.mxu0 0.0
    %3365 = vmatprep.subr.mxu0 0.0
    %3366 = vmatpush1.msra.mxu0 0.0
    %3367 = vmatprep.subr.mxu0 0.0
    %3368 = vmatpush1.msra.mxu0 0.0
    %3369 = vmatprep.subr.mxu0 0.0
    %3370 = vmatpush1.msra.mxu0 0.0
    %3371 = vmatprep.subr.mxu0 0.0
    %3372 = vmatpush1.msra.mxu0 0.0
    %3373 = vmatprep.subr.mxu0 0.0
    %3374 = vmatpush1.msra.mxu0 0.0
    %3375 = vmatprep.subr.mxu0 0.0
    %3376 = vmatpush1.msra.mxu0 0.0
    %3377 = vmatprep.subr.mxu0 0.0
    %3378 = vmatpush1.msra.mxu0 0.0
    %3379 = vmatprep.subr.mxu0 0.0
    %3380 = vmatpush1.msra.mxu0 0.0
    %3381 = vmatprep.subr.mxu0 0.0
    %3382 = vmatpush1.msra.mxu0 0.0
    %3383 = vmatprep.subr.mxu0 0.0
    %3384 = vmatpush1.msra.mxu0 0.0
    %3385 = vmatprep.subr.mxu0 0.0
    %3386 = vmatpush1.msra.mxu0 0.0
    %3387 = vmatprep.subr.mxu0 0.0
    %3388 = vmatpush1.msra.mxu0 0.0
    %3389 = vmatprep.subr.mxu0 0.0
    %3390 = vmatpush1.msra.mxu0 0.0
    %3391 = vmatprep.subr.mxu0 0.0
    %3392 = vmatpush1.msra.mxu0 0.0
    %3393 = vmatprep.subr.mxu0 0.0
    %3394 = vmatpush1.msra.mxu0 0.0
    %3395 = vmatprep.subr.mxu0 0.0
    %3396 = vmatpush1.msra.mxu0 0.0
    %3397 = vmatprep.subr.mxu0 0.0
    %3398 = vmatpush1.msra.mxu0 0.0
    %3399 = vmatprep.subr.mxu0 0.0
    %3400 = vmatpush1.msra.mxu0 0.0
    %3401 = vmatprep.subr.mxu0 0.0
    %3402 = vmatpush1.msra.mxu0 0.0
    %3403 = vmatprep.subr.mxu0 0.0
    %3404 = vmatpush1.msra.mxu0 0.0
    %3405 = vmatprep.subr.mxu0 0.0
    %3406 = vmatpush1.msra.mxu0 0.0
    %3407 = vmatprep.subr.mxu0 0.0
    %3408 = vmatpush1.msra.mxu0 0.0
    %3409 = vmatprep.subr.mxu0 0.0
    %3410 = vmatpush1.msra.mxu0 0.0
    %3411 = vmatprep.subr.mxu0 0.0
    %3412 = vmatpush1.msra.mxu0 0.0
    %3413 = vmatprep.mubr.f32.mxu0 0.0
    %3414 = vmatmul.mubr.f32.gmra.mrb[0].mxu0 %v3246
    %v3415 = vpop.f32.mrb[0].mxu0
    %v3416 = vadd.f32 0.0, %v3415
    %v3417 = vpop.f32.mrb[0].mxu0
    %3418 = vdwg.mxu0
    %v3419 = vadd.f32 %v3348, %v3416
    %v3420 = vmul.f32 %v3419, 0.5
    %v3421 = vtanh.pop %v3420
    %v3422 = vadd.f32 %v3421, 1.0
    %v3423 = vmul.f32 %v3422, 0.5
    %v3424 = vtanh.pop %v3419
    %v3425 = vmul.f32 %v3423, %v3164
    %3427 = vrot.lane.b32.xlu0 %v3424, 64
    %v3428 = vpop.permute.xlu0 %3427
    %v3430 = vmul.f32 %v3423, %v3428
    %3432 = vrot.lane.b32.xlu0 %v3430, 32
    %v3433 = vpop.permute.xlu0 %3432
    %v3435 = vadd.f32 %v3425, %v3433
    %v3436 = vtanh.pop %v3435
    %3438 = vrot.lane.b32.xlu0 %v3436, 64
    %v3439 = vpop.permute.xlu0 %3438
    %v3441 = vmul.f32 %v3423, %v3439
    %v3442 = vsel %vm96, %v3343, 0
    %3444 = vmatprep.subr.mxu0 0.0
    %3445 = vmatpush1.msra.mxu0 %v84
    %3446 = vmatprep.subr.mxu0 0.0
    %3447 = vmatpush1.msra.mxu0 %v85
    %3448 = vmatprep.subr.mxu0 0.0
    %3449 = vmatpush1.msra.mxu0 %v86
    %3450 = vmatprep.subr.mxu0 0.0
    %3451 = vmatpush1.msra.mxu0 %v87
    %3452 = vmatprep.subr.mxu0 0.0
    %3453 = vmatpush1.msra.mxu0 0.0
    %3454 = vmatprep.subr.mxu0 0.0
    %3455 = vmatpush1.msra.mxu0 0.0
    %3456 = vmatprep.subr.mxu0 0.0
    %3457 = vmatpush1.msra.mxu0 0.0
    %3458 = vmatprep.subr.mxu0 0.0
    %3459 = vmatpush1.msra.mxu0 0.0
    %3460 = vmatprep.subr.mxu0 0.0
    %3461 = vmatpush1.msra.mxu0 0.0
    %3462 = vmatprep.subr.mxu0 0.0
    %3463 = vmatpush1.msra.mxu0 0.0
    %3464 = vmatprep.subr.mxu0 0.0
    %3465 = vmatpush1.msra.mxu0 0.0
    %3466 = vmatprep.subr.mxu0 0.0
    %3467 = vmatpush1.msra.mxu0 0.0
    %3468 = vmatprep.subr.mxu0 0.0
    %3469 = vmatpush1.msra.mxu0 0.0
    %3470 = vmatprep.subr.mxu0 0.0
    %3471 = vmatpush1.msra.mxu0 0.0
    %3472 = vmatprep.subr.mxu0 0.0
    %3473 = vmatpush1.msra.mxu0 0.0
    %3474 = vmatprep.subr.mxu0 0.0
    %3475 = vmatpush1.msra.mxu0 0.0
    %3476 = vmatprep.subr.mxu0 0.0
    %3477 = vmatpush1.msra.mxu0 0.0
    %3478 = vmatprep.subr.mxu0 0.0
    %3479 = vmatpush1.msra.mxu0 0.0
    %3480 = vmatprep.subr.mxu0 0.0
    %3481 = vmatpush1.msra.mxu0 0.0
    %3482 = vmatprep.subr.mxu0 0.0
    %3483 = vmatpush1.msra.mxu0 0.0
    %3484 = vmatprep.subr.mxu0 0.0
    %3485 = vmatpush1.msra.mxu0 0.0
    %3486 = vmatprep.subr.mxu0 0.0
    %3487 = vmatpush1.msra.mxu0 0.0
    %3488 = vmatprep.subr.mxu0 0.0
    %3489 = vmatpush1.msra.mxu0 0.0
    %3490 = vmatprep.subr.mxu0 0.0
    %3491 = vmatpush1.msra.mxu0 0.0
    %3492 = vmatprep.subr.mxu0 0.0
    %3493 = vmatpush1.msra.mxu0 0.0
    %3494 = vmatprep.subr.mxu0 0.0
    %3495 = vmatpush1.msra.mxu0 0.0
    %3496 = vmatprep.subr.mxu0 0.0
    %3497 = vmatpush1.msra.mxu0 0.0
    %3498 = vmatprep.subr.mxu0 0.0
    %3499 = vmatpush1.msra.mxu0 0.0
    %3500 = vmatprep.subr.mxu0 0.0
    %3501 = vmatpush1.msra.mxu0 0.0
    %3502 = vmatprep.subr.mxu0 0.0
    %3503 = vmatpush1.msra.mxu0 0.0
    %3504 = vmatprep.subr.mxu0 0.0
    %3505 = vmatpush1.msra.mxu0 0.0
    %3506 = vmatprep.subr.mxu0 0.0
    %3507 = vmatpush1.msra.mxu0 0.0
    %3508 = vmatprep.mubr.f32.mxu0 0.0
    %3509 = vmatmul.mubr.f32.gmra.mrb[0].mxu0 %v3442
    %v3510 = vpop.f32.mrb[0].mxu0
    %v3511 = vadd.f32 0.0, %v3510
    %v3512 = vpop.f32.mrb[0].mxu0
    %3513 = vdwg.mxu0
    %3515 = vrot.lane.b32.xlu0 %v3441, 32
    %v3516 = vpop.permute.xlu0 %3515
    %v3517 = vsel %vm96, %v3516, 0
    %3519 = vmatprep.subr.mxu0 0.0
    %3520 = vmatpush1.msra.mxu0 %v80
    %3521 = vmatprep.subr.mxu0 0.0
    %3522 = vmatpush1.msra.mxu0 %v81
    %3523 = vmatprep.subr.mxu0 0.0
    %3524 = vmatpush1.msra.mxu0 %v82
    %3525 = vmatprep.subr.mxu0 0.0
    %3526 = vmatpush1.msra.mxu0 %v83
    %3527 = vmatprep.subr.mxu0 0.0
    %3528 = vmatpush1.msra.mxu0 0.0
    %3529 = vmatprep.subr.mxu0 0.0
    %3530 = vmatpush1.msra.mxu0 0.0
    %3531 = vmatprep.subr.mxu0 0.0
    %3532 = vmatpush1.msra.mxu0 0.0
    %3533 = vmatprep.subr.mxu0 0.0
    %3534 = vmatpush1.msra.mxu0 0.0
    %3535 = vmatprep.subr.mxu0 0.0
    %3536 = vmatpush1.msra.mxu0 0.0
    %3537 = vmatprep.subr.mxu0 0.0
    %3538 = vmatpush1.msra.mxu0 0.0
    %3539 = vmatprep.subr.mxu0 0.0
    %3540 = vmatpush1.msra.mxu0 0.0
    %3541 = vmatprep.subr.mxu0 0.0
    %3542 = vmatpush1.msra.mxu0 0.0
    %3543 = vmatprep.subr.mxu0 0.0
    %3544 = vmatpush1.msra.mxu0 0.0
    %3545 = vmatprep.subr.mxu0 0.0
    %3546 = vmatpush1.msra.mxu0 0.0
    %3547 = vmatprep.subr.mxu0 0.0
    %3548 = vmatpush1.msra.mxu0 0.0
    %3549 = vmatprep.subr.mxu0 0.0
    %3550 = vmatpush1.msra.mxu0 0.0
    %3551 = vmatprep.subr.mxu0 0.0
    %3552 = vmatpush1.msra.mxu0 0.0
    %3553 = vmatprep.subr.mxu0 0.0
    %3554 = vmatpush1.msra.mxu0 0.0
    %3555 = vmatprep.subr.mxu0 0.0
    %3556 = vmatpush1.msra.mxu0 0.0
    %3557 = vmatprep.subr.mxu0 0.0
    %3558 = vmatpush1.msra.mxu0 0.0
    %3559 = vmatprep.subr.mxu0 0.0
    %3560 = vmatpush1.msra.mxu0 0.0
    %3561 = vmatprep.subr.mxu0 0.0
    %3562 = vmatpush1.msra.mxu0 0.0
    %3563 = vmatprep.subr.mxu0 0.0
    %3564 = vmatpush1.msra.mxu0 0.0
    %3565 = vmatprep.subr.mxu0 0.0
    %3566 = vmatpush1.msra.mxu0 0.0
    %3567 = vmatprep.subr.mxu0 0.0
    %3568 = vmatpush1.msra.mxu0 0.0
    %3569 = vmatprep.subr.mxu0 0.0
    %3570 = vmatpush1.msra.mxu0 0.0
    %3571 = vmatprep.subr.mxu0 0.0
    %3572 = vmatpush1.msra.mxu0 0.0
    %3573 = vmatprep.subr.mxu0 0.0
    %3574 = vmatpush1.msra.mxu0 0.0
    %3575 = vmatprep.subr.mxu0 0.0
    %3576 = vmatpush1.msra.mxu0 0.0
    %3577 = vmatprep.subr.mxu0 0.0
    %3578 = vmatpush1.msra.mxu0 0.0
    %3579 = vmatprep.subr.mxu0 0.0
    %3580 = vmatpush1.msra.mxu0 0.0
    %3581 = vmatprep.subr.mxu0 0.0
    %3582 = vmatpush1.msra.mxu0 0.0
    %3583 = vmatprep.mubr.f32.mxu0 0.0
    %3584 = vmatmul.mubr.f32.gmra.mrb[0].mxu0 %v3517
    %v3585 = vpop.f32.mrb[0].mxu0
    %v3586 = vadd.f32 %v3511, %v3585
    %v3587 = vpop.f32.mrb[0].mxu0
    %3588 = vdwg.mxu0
    %v3589 = vadd.f32 %v3586, %v93
    %v3590 = vmul.f32 %v3589, 0.5
    %v3591 = vtanh.pop %v3590
    %v3592 = vadd.f32 %v3591, 1.0
    %v3593 = vmul.f32 %v3592, 0.5
    %v3594 = vtanh.pop %v3589
    %v3595 = vmul.f32 %v3593, %v3334
    %3597 = vrot.lane.b32.xlu0 %v3594, 64
    %v3598 = vpop.permute.xlu0 %3597
    %v3600 = vmul.f32 %v3593, %v3598
    %3602 = vrot.lane.b32.xlu0 %v3600, 32
    %v3603 = vpop.permute.xlu0 %3602
    %v3605 = vadd.f32 %v3595, %v3603
    %v3606 = vtanh.pop %v3605
    %3608 = vrot.lane.b32.xlu0 %v3606, 64
    %v3609 = vpop.permute.xlu0 %3608
    %v3611 = vmul.f32 %v3593, %v3609
    %3613 = vrot.lane.b32.xlu0 %v3611, 32
    %v3614 = vpop.permute.xlu0 %3613
    %s3616 = scalar_lea.vmem [#allocation10], 96
    %3617 = vst.msk [vmem:[%s3616] sm:$0xff] %vm96, %v3614
    %s3618 = scalar_lea.vmem [#allocation2], 104
    %v3619 = vld [vmem:[%s3618] sm:$0xff]
    %3620 = vmatprep.subr.mxu0 0.0
    %3621 = vmatpush1.msra.mxu0 %v76
    %3622 = vmatprep.subr.mxu0 0.0
    %3623 = vmatpush1.msra.mxu0 %v77
    %3624 = vmatprep.subr.mxu0 0.0
    %3625 = vmatpush1.msra.mxu0 %v78
    %3626 = vmatprep.subr.mxu0 0.0
    %3627 = vmatpush1.msra.mxu0 %v79
    %3628 = vmatprep.subr.mxu0 0.0
    %3629 = vmatpush1.msra.mxu0 0.0
    %3630 = vmatprep.subr.mxu0 0.0
    %3631 = vmatpush1.msra.mxu0 0.0
    %3632 = vmatprep.subr.mxu0 0.0
    %3633 = vmatpush1.msra.mxu0 0.0
    %3634 = vmatprep.subr.mxu0 0.0
    %3635 = vmatpush1.msra.mxu0 0.0
    %3636 = vmatprep.subr.mxu0 0.0
    %3637 = vmatpush1.msra.mxu0 0.0
    %3638 = vmatprep.subr.mxu0 0.0
    %3639 = vmatpush1.msra.mxu0 0.0
    %3640 = vmatprep.subr.mxu0 0.0
    %3641 = vmatpush1.msra.mxu0 0.0
    %3642 = vmatprep.subr.mxu0 0.0
    %3643 = vmatpush1.msra.mxu0 0.0
    %3644 = vmatprep.subr.mxu0 0.0
    %3645 = vmatpush1.msra.mxu0 0.0
    %3646 = vmatprep.subr.mxu0 0.0
    %3647 = vmatpush1.msra.mxu0 0.0
    %3648 = vmatprep.subr.mxu0 0.0
    %3649 = vmatpush1.msra.mxu0 0.0
    %3650 = vmatprep.subr.mxu0 0.0
    %3651 = vmatpush1.msra.mxu0 0.0
    %3652 = vmatprep.subr.mxu0 0.0
    %3653 = vmatpush1.msra.mxu0 0.0
    %3654 = vmatprep.subr.mxu0 0.0
    %3655 = vmatpush1.msra.mxu0 0.0
    %3656 = vmatprep.subr.mxu0 0.0
    %3657 = vmatpush1.msra.mxu0 0.0
    %3658 = vmatprep.subr.mxu0 0.0
    %3659 = vmatpush1.msra.mxu0 0.0
    %3660 = vmatprep.subr.mxu0 0.0
    %3661 = vmatpush1.msra.mxu0 0.0
    %3662 = vmatprep.subr.mxu0 0.0
    %3663 = vmatpush1.msra.mxu0 0.0
    %3664 = vmatprep.subr.mxu0 0.0
    %3665 = vmatpush1.msra.mxu0 0.0
    %3666 = vmatprep.subr.mxu0 0.0
    %3667 = vmatpush1.msra.mxu0 0.0
    %3668 = vmatprep.subr.mxu0 0.0
    %3669 = vmatpush1.msra.mxu0 0.0
    %3670 = vmatprep.subr.mxu0 0.0
    %3671 = vmatpush1.msra.mxu0 0.0
    %3672 = vmatprep.subr.mxu0 0.0
    %3673 = vmatpush1.msra.mxu0 0.0
    %3674 = vmatprep.subr.mxu0 0.0
    %3675 = vmatpush1.msra.mxu0 0.0
    %3676 = vmatprep.subr.mxu0 0.0
    %3677 = vmatpush1.msra.mxu0 0.0
    %3678 = vmatprep.subr.mxu0 0.0
    %3679 = vmatpush1.msra.mxu0 0.0
    %3680 = vmatprep.subr.mxu0 0.0
    %3681 = vmatpush1.msra.mxu0 0.0
    %3682 = vmatprep.subr.mxu0 0.0
    %3683 = vmatpush1.msra.mxu0 0.0
    %3684 = vmatprep.mubr.f32.mxu0 0.0
    %3685 = vmatmul.mubr.f32.gmra.mrb[0].mxu0 %v3517
    %v3686 = vpop.f32.mrb[0].mxu0
    %v3687 = vadd.f32 0.0, %v3686
    %v3688 = vpop.f32.mrb[0].mxu0
    %3689 = vdwg.mxu0
    %v3690 = vadd.f32 %v3619, %v3687
    %v3691 = vmul.f32 %v3690, 0.5
    %v3692 = vtanh.pop %v3691
    %v3693 = vadd.f32 %v3692, 1.0
    %v3694 = vmul.f32 %v3693, 0.5
    %v3695 = vtanh.pop %v3690
    %v3696 = vmul.f32 %v3694, %v3435
    %3698 = vrot.lane.b32.xlu0 %v3695, 64
    %v3699 = vpop.permute.xlu0 %3698
    %v3701 = vmul.f32 %v3694, %v3699
    %3703 = vrot.lane.b32.xlu0 %v3701, 32
    %v3704 = vpop.permute.xlu0 %3703
    %v3706 = vadd.f32 %v3696, %v3704
    %v3707 = vtanh.pop %v3706
    %3709 = vrot.lane.b32.xlu0 %v3707, 64
    %v3710 = vpop.permute.xlu0 %3709
    %v3712 = vmul.f32 %v3694, %v3710
    %v3713 = vsel %vm96, %v3614, 0
    %3715 = vmatprep.subr.mxu0 0.0
    %3716 = vmatpush1.msra.mxu0 %v84
    %3717 = vmatprep.subr.mxu0 0.0
    %3718 = vmatpush1.msra.mxu0 %v85
    %3719 = vmatprep.subr.mxu0 0.0
    %3720 = vmatpush1.msra.mxu0 %v86
    %3721 = vmatprep.subr.mxu0 0.0
    %3722 = vmatpush1.msra.mxu0 %v87
    %3723 = vmatprep.subr.mxu0 0.0
    %3724 = vmatpush1.msra.mxu0 0.0
    %3725 = vmatprep.subr.mxu0 0.0
    %3726 = vmatpush1.msra.mxu0 0.0
    %3727 = vmatprep.subr.mxu0 0.0
    %3728 = vmatpush1.msra.mxu0 0.0
    %3729 = vmatprep.subr.mxu0 0.0
    %3730 = vmatpush1.msra.mxu0 0.0
    %3731 = vmatprep.subr.mxu0 0.0
    %3732 = vmatpush1.msra.mxu0 0.0
    %3733 = vmatprep.subr.mxu0 0.0
    %3734 = vmatpush1.msra.mxu0 0.0
    %3735 = vmatprep.subr.mxu0 0.0
    %3736 = vmatpush1.msra.mxu0 0.0
    %3737 = vmatprep.subr.mxu0 0.0
    %3738 = vmatpush1.msra.mxu0 0.0
    %3739 = vmatprep.subr.mxu0 0.0
    %3740 = vmatpush1.msra.mxu0 0.0
    %3741 = vmatprep.subr.mxu0 0.0
    %3742 = vmatpush1.msra.mxu0 0.0
    %3743 = vmatprep.subr.mxu0 0.0
    %3744 = vmatpush1.msra.mxu0 0.0
    %3745 = vmatprep.subr.mxu0 0.0
    %3746 = vmatpush1.msra.mxu0 0.0
    %3747 = vmatprep.subr.mxu0 0.0
    %3748 = vmatpush1.msra.mxu0 0.0
    %3749 = vmatprep.subr.mxu0 0.0
    %3750 = vmatpush1.msra.mxu0 0.0
    %3751 = vmatprep.subr.mxu0 0.0
    %3752 = vmatpush1.msra.mxu0 0.0
    %3753 = vmatprep.subr.mxu0 0.0
    %3754 = vmatpush1.msra.mxu0 0.0
    %3755 = vmatprep.subr.mxu0 0.0
    %3756 = vmatpush1.msra.mxu0 0.0
    %3757 = vmatprep.subr.mxu0 0.0
    %3758 = vmatpush1.msra.mxu0 0.0
    %3759 = vmatprep.subr.mxu0 0.0
    %3760 = vmatpush1.msra.mxu0 0.0
    %3761 = vmatprep.subr.mxu0 0.0
    %3762 = vmatpush1.msra.mxu0 0.0
    %3763 = vmatprep.subr.mxu0 0.0
    %3764 = vmatpush1.msra.mxu0 0.0
    %3765 = vmatprep.subr.mxu0 0.0
    %3766 = vmatpush1.msra.mxu0 0.0
    %3767 = vmatprep.subr.mxu0 0.0
    %3768 = vmatpush1.msra.mxu0 0.0
    %3769 = vmatprep.subr.mxu0 0.0
    %3770 = vmatpush1.msra.mxu0 0.0
    %3771 = vmatprep.subr.mxu0 0.0
    %3772 = vmatpush1.msra.mxu0 0.0
    %3773 = vmatprep.subr.mxu0 0.0
    %3774 = vmatpush1.msra.mxu0 0.0
    %3775 = vmatprep.subr.mxu0 0.0
    %3776 = vmatpush1.msra.mxu0 0.0
    %3777 = vmatprep.subr.mxu0 0.0
    %3778 = vmatpush1.msra.mxu0 0.0
    %3779 = vmatprep.mubr.f32.mxu0 0.0
    %3780 = vmatmul.mubr.f32.gmra.mrb[0].mxu0 %v3713
    %v3781 = vpop.f32.mrb[0].mxu0
    %v3782 = vadd.f32 0.0, %v3781
    %v3783 = vpop.f32.mrb[0].mxu0
    %3784 = vdwg.mxu0
    %3786 = vrot.lane.b32.xlu0 %v3712, 32
    %v3787 = vpop.permute.xlu0 %3786
    %v3788 = vsel %vm96, %v3787, 0
    %3790 = vmatprep.subr.mxu0 0.0
    %3791 = vmatpush1.msra.mxu0 %v80
    %3792 = vmatprep.subr.mxu0 0.0
    %3793 = vmatpush1.msra.mxu0 %v81
    %3794 = vmatprep.subr.mxu0 0.0
    %3795 = vmatpush1.msra.mxu0 %v82
    %3796 = vmatprep.subr.mxu0 0.0
    %3797 = vmatpush1.msra.mxu0 %v83
    %3798 = vmatprep.subr.mxu0 0.0
    %3799 = vmatpush1.msra.mxu0 0.0
    %3800 = vmatprep.subr.mxu0 0.0
    %3801 = vmatpush1.msra.mxu0 0.0
    %3802 = vmatprep.subr.mxu0 0.0
    %3803 = vmatpush1.msra.mxu0 0.0
    %3804 = vmatprep.subr.mxu0 0.0
    %3805 = vmatpush1.msra.mxu0 0.0
    %3806 = vmatprep.subr.mxu0 0.0
    %3807 = vmatpush1.msra.mxu0 0.0
    %3808 = vmatprep.subr.mxu0 0.0
    %3809 = vmatpush1.msra.mxu0 0.0
    %3810 = vmatprep.subr.mxu0 0.0
    %3811 = vmatpush1.msra.mxu0 0.0
    %3812 = vmatprep.subr.mxu0 0.0
    %3813 = vmatpush1.msra.mxu0 0.0
    %3814 = vmatprep.subr.mxu0 0.0
    %3815 = vmatpush1.msra.mxu0 0.0
    %3816 = vmatprep.subr.mxu0 0.0
    %3817 = vmatpush1.msra.mxu0 0.0
    %3818 = vmatprep.subr.mxu0 0.0
    %3819 = vmatpush1.msra.mxu0 0.0
    %3820 = vmatprep.subr.mxu0 0.0
    %3821 = vmatpush1.msra.mxu0 0.0
    %3822 = vmatprep.subr.mxu0 0.0
    %3823 = vmatpush1.msra.mxu0 0.0
    %3824 = vmatprep.subr.mxu0 0.0
    %3825 = vmatpush1.msra.mxu0 0.0
    %3826 = vmatprep.subr.mxu0 0.0
    %3827 = vmatpush1.msra.mxu0 0.0
    %3828 = vmatprep.subr.mxu0 0.0
    %3829 = vmatpush1.msra.mxu0 0.0
    %3830 = vmatprep.subr.mxu0 0.0
    %3831 = vmatpush1.msra.mxu0 0.0
    %3832 = vmatprep.subr.mxu0 0.0
    %3833 = vmatpush1.msra.mxu0 0.0
    %3834 = vmatprep.subr.mxu0 0.0
    %3835 = vmatpush1.msra.mxu0 0.0
    %3836 = vmatprep.subr.mxu0 0.0
    %3837 = vmatpush1.msra.mxu0 0.0
    %3838 = vmatprep.subr.mxu0 0.0
    %3839 = vmatpush1.msra.mxu0 0.0
    %3840 = vmatprep.subr.mxu0 0.0
    %3841 = vmatpush1.msra.mxu0 0.0
    %3842 = vmatprep.subr.mxu0 0.0
    %3843 = vmatpush1.msra.mxu0 0.0
    %3844 = vmatprep.subr.mxu0 0.0
    %3845 = vmatpush1.msra.mxu0 0.0
    %3846 = vmatprep.subr.mxu0 0.0
    %3847 = vmatpush1.msra.mxu0 0.0
    %3848 = vmatprep.subr.mxu0 0.0
    %3849 = vmatpush1.msra.mxu0 0.0
    %3850 = vmatprep.subr.mxu0 0.0
    %3851 = vmatpush1.msra.mxu0 0.0
    %3852 = vmatprep.subr.mxu0 0.0
    %3853 = vmatpush1.msra.mxu0 0.0
    %3854 = vmatprep.mubr.f32.mxu0 0.0
    %3855 = vmatmul.mubr.f32.gmra.mrb[0].mxu0 %v3788
    %v3856 = vpop.f32.mrb[0].mxu0
    %v3857 = vadd.f32 %v3782, %v3856
    %v3858 = vpop.f32.mrb[0].mxu0
    %3859 = vdwg.mxu0
    %v3860 = vadd.f32 %v3857, %v93
    %v3861 = vmul.f32 %v3860, 0.5
    %v3862 = vtanh.pop %v3861
    %v3863 = vadd.f32 %v3862, 1.0
    %v3864 = vmul.f32 %v3863, 0.5
    %v3865 = vtanh.pop %v3860
    %v3866 = vmul.f32 %v3864, %v3605
    %3868 = vrot.lane.b32.xlu0 %v3865, 64
    %v3869 = vpop.permute.xlu0 %3868
    %v3871 = vmul.f32 %v3864, %v3869
    %3873 = vrot.lane.b32.xlu0 %v3871, 32
    %v3874 = vpop.permute.xlu0 %3873
    %v3876 = vadd.f32 %v3866, %v3874
    %v3877 = vtanh.pop %v3876
    %3879 = vrot.lane.b32.xlu0 %v3877, 64
    %v3880 = vpop.permute.xlu0 %3879
    %v3882 = vmul.f32 %v3864, %v3880
    %3884 = vrot.lane.b32.xlu0 %v3882, 32
    %v3885 = vpop.permute.xlu0 %3884
    %s3887 = scalar_lea.vmem [#allocation10], 104
    %3888 = vst.msk [vmem:[%s3887] sm:$0xff] %vm96, %v3885
    %s3889 = scalar_lea.vmem [#allocation2], 112
    %v3890 = vld [vmem:[%s3889] sm:$0xff]
    %3891 = vmatprep.subr.mxu0 0.0
    %3892 = vmatpush1.msra.mxu0 %v76
    %3893 = vmatprep.subr.mxu0 0.0
    %3894 = vmatpush1.msra.mxu0 %v77
    %3895 = vmatprep.subr.mxu0 0.0
    %3896 = vmatpush1.msra.mxu0 %v78
    %3897 = vmatprep.subr.mxu0 0.0
    %3898 = vmatpush1.msra.mxu0 %v79
    %3899 = vmatprep.subr.mxu0 0.0
    %3900 = vmatpush1.msra.mxu0 0.0
    %3901 = vmatprep.subr.mxu0 0.0
    %3902 = vmatpush1.msra.mxu0 0.0
    %3903 = vmatprep.subr.mxu0 0.0
    %3904 = vmatpush1.msra.mxu0 0.0
    %3905 = vmatprep.subr.mxu0 0.0
    %3906 = vmatpush1.msra.mxu0 0.0
    %3907 = vmatprep.subr.mxu0 0.0
    %3908 = vmatpush1.msra.mxu0 0.0
    %3909 = vmatprep.subr.mxu0 0.0
    %3910 = vmatpush1.msra.mxu0 0.0
    %3911 = vmatprep.subr.mxu0 0.0
    %3912 = vmatpush1.msra.mxu0 0.0
    %3913 = vmatprep.subr.mxu0 0.0
    %3914 = vmatpush1.msra.mxu0 0.0
    %3915 = vmatprep.subr.mxu0 0.0
    %3916 = vmatpush1.msra.mxu0 0.0
    %3917 = vmatprep.subr.mxu0 0.0
    %3918 = vmatpush1.msra.mxu0 0.0
    %3919 = vmatprep.subr.mxu0 0.0
    %3920 = vmatpush1.msra.mxu0 0.0
    %3921 = vmatprep.subr.mxu0 0.0
    %3922 = vmatpush1.msra.mxu0 0.0
    %3923 = vmatprep.subr.mxu0 0.0
    %3924 = vmatpush1.msra.mxu0 0.0
    %3925 = vmatprep.subr.mxu0 0.0
    %3926 = vmatpush1.msra.mxu0 0.0
    %3927 = vmatprep.subr.mxu0 0.0
    %3928 = vmatpush1.msra.mxu0 0.0
    %3929 = vmatprep.subr.mxu0 0.0
    %3930 = vmatpush1.msra.mxu0 0.0
    %3931 = vmatprep.subr.mxu0 0.0
    %3932 = vmatpush1.msra.mxu0 0.0
    %3933 = vmatprep.subr.mxu0 0.0
    %3934 = vmatpush1.msra.mxu0 0.0
    %3935 = vmatprep.subr.mxu0 0.0
    %3936 = vmatpush1.msra.mxu0 0.0
    %3937 = vmatprep.subr.mxu0 0.0
    %3938 = vmatpush1.msra.mxu0 0.0
    %3939 = vmatprep.subr.mxu0 0.0
    %3940 = vmatpush1.msra.mxu0 0.0
    %3941 = vmatprep.subr.mxu0 0.0
    %3942 = vmatpush1.msra.mxu0 0.0
    %3943 = vmatprep.subr.mxu0 0.0
    %3944 = vmatpush1.msra.mxu0 0.0
    %3945 = vmatprep.subr.mxu0 0.0
    %3946 = vmatpush1.msra.mxu0 0.0
    %3947 = vmatprep.subr.mxu0 0.0
    %3948 = vmatpush1.msra.mxu0 0.0
    %3949 = vmatprep.subr.mxu0 0.0
    %3950 = vmatpush1.msra.mxu0 0.0
    %3951 = vmatprep.subr.mxu0 0.0
    %3952 = vmatpush1.msra.mxu0 0.0
    %3953 = vmatprep.subr.mxu0 0.0
    %3954 = vmatpush1.msra.mxu0 0.0
    %3955 = vmatprep.mubr.f32.mxu0 0.0
    %3956 = vmatmul.mubr.f32.gmra.mrb[0].mxu0 %v3788
    %v3957 = vpop.f32.mrb[0].mxu0
    %v3958 = vadd.f32 0.0, %v3957
    %v3959 = vpop.f32.mrb[0].mxu0
    %3960 = vdwg.mxu0
    %v3961 = vadd.f32 %v3890, %v3958
    %v3962 = vmul.f32 %v3961, 0.5
    %v3963 = vtanh.pop %v3962
    %v3964 = vadd.f32 %v3963, 1.0
    %v3965 = vmul.f32 %v3964, 0.5
    %v3966 = vtanh.pop %v3961
    %v3967 = vmul.f32 %v3965, %v3706
    %3969 = vrot.lane.b32.xlu0 %v3966, 64
    %v3970 = vpop.permute.xlu0 %3969
    %v3972 = vmul.f32 %v3965, %v3970
    %3974 = vrot.lane.b32.xlu0 %v3972, 32
    %v3975 = vpop.permute.xlu0 %3974
    %v3977 = vadd.f32 %v3967, %v3975
    %v3978 = vtanh.pop %v3977
    %3980 = vrot.lane.b32.xlu0 %v3978, 64
    %v3981 = vpop.permute.xlu0 %3980
    %v3983 = vmul.f32 %v3965, %v3981
    %v3984 = vsel %vm96, %v3885, 0
    %3986 = vmatprep.subr.mxu0 0.0
    %3987 = vmatpush1.msra.mxu0 %v84
    %3988 = vmatprep.subr.mxu0 0.0
    %3989 = vmatpush1.msra.mxu0 %v85
    %3990 = vmatprep.subr.mxu0 0.0
    %3991 = vmatpush1.msra.mxu0 %v86
    %3992 = vmatprep.subr.mxu0 0.0
    %3993 = vmatpush1.msra.mxu0 %v87
    %3994 = vmatprep.subr.mxu0 0.0
    %3995 = vmatpush1.msra.mxu0 0.0
    %3996 = vmatprep.subr.mxu0 0.0
    %3997 = vmatpush1.msra.mxu0 0.0
    %3998 = vmatprep.subr.mxu0 0.0
    %3999 = vmatpush1.msra.mxu0 0.0
    %4000 = vmatprep.subr.mxu0 0.0
    %4001 = vmatpush1.msra.mxu0 0.0
    %4002 = vmatprep.subr.mxu0 0.0
    %4003 = vmatpush1.msra.mxu0 0.0
    %4004 = vmatprep.subr.mxu0 0.0
    %4005 = vmatpush1.msra.mxu0 0.0
    %4006 = vmatprep.subr.mxu0 0.0
    %4007 = vmatpush1.msra.mxu0 0.0
    %4008 = vmatprep.subr.mxu0 0.0
    %4009 = vmatpush1.msra.mxu0 0.0
    %4010 = vmatprep.subr.mxu0 0.0
    %4011 = vmatpush1.msra.mxu0 0.0
    %4012 = vmatprep.subr.mxu0 0.0
    %4013 = vmatpush1.msra.mxu0 0.0
    %4014 = vmatprep.subr.mxu0 0.0
    %4015 = vmatpush1.msra.mxu0 0.0
    %4016 = vmatprep.subr.mxu0 0.0
    %4017 = vmatpush1.msra.mxu0 0.0
    %4018 = vmatprep.subr.mxu0 0.0
    %4019 = vmatpush1.msra.mxu0 0.0
    %4020 = vmatprep.subr.mxu0 0.0
    %4021 = vmatpush1.msra.mxu0 0.0
    %4022 = vmatprep.subr.mxu0 0.0
    %4023 = vmatpush1.msra.mxu0 0.0
    %4024 = vmatprep.subr.mxu0 0.0
    %4025 = vmatpush1.msra.mxu0 0.0
    %4026 = vmatprep.subr.mxu0 0.0
    %4027 = vmatpush1.msra.mxu0 0.0
    %4028 = vmatprep.subr.mxu0 0.0
    %4029 = vmatpush1.msra.mxu0 0.0
    %4030 = vmatprep.subr.mxu0 0.0
    %4031 = vmatpush1.msra.mxu0 0.0
    %4032 = vmatprep.subr.mxu0 0.0
    %4033 = vmatpush1.msra.mxu0 0.0
    %4034 = vmatprep.subr.mxu0 0.0
    %4035 = vmatpush1.msra.mxu0 0.0
    %4036 = vmatprep.subr.mxu0 0.0
    %4037 = vmatpush1.msra.mxu0 0.0
    %4038 = vmatprep.subr.mxu0 0.0
    %4039 = vmatpush1.msra.mxu0 0.0
    %4040 = vmatprep.subr.mxu0 0.0
    %4041 = vmatpush1.msra.mxu0 0.0
    %4042 = vmatprep.subr.mxu0 0.0
    %4043 = vmatpush1.msra.mxu0 0.0
    %4044 = vmatprep.subr.mxu0 0.0
    %4045 = vmatpush1.msra.mxu0 0.0
    %4046 = vmatprep.subr.mxu0 0.0
    %4047 = vmatpush1.msra.mxu0 0.0
    %4048 = vmatprep.subr.mxu0 0.0
    %4049 = vmatpush1.msra.mxu0 0.0
    %4050 = vmatprep.mubr.f32.mxu0 0.0
    %4051 = vmatmul.mubr.f32.gmra.mrb[0].mxu0 %v3984
    %v4052 = vpop.f32.mrb[0].mxu0
    %v4053 = vadd.f32 0.0, %v4052
    %v4054 = vpop.f32.mrb[0].mxu0
    %4055 = vdwg.mxu0
    %4057 = vrot.lane.b32.xlu0 %v3983, 32
    %v4058 = vpop.permute.xlu0 %4057
    %v4059 = vsel %vm96, %v4058, 0
    %4061 = vmatprep.subr.mxu0 0.0
    %4062 = vmatpush1.msra.mxu0 %v80
    %4063 = vmatprep.subr.mxu0 0.0
    %4064 = vmatpush1.msra.mxu0 %v81
    %4065 = vmatprep.subr.mxu0 0.0
    %4066 = vmatpush1.msra.mxu0 %v82
    %4067 = vmatprep.subr.mxu0 0.0
    %4068 = vmatpush1.msra.mxu0 %v83
    %4069 = vmatprep.subr.mxu0 0.0
    %4070 = vmatpush1.msra.mxu0 0.0
    %4071 = vmatprep.subr.mxu0 0.0
    %4072 = vmatpush1.msra.mxu0 0.0
    %4073 = vmatprep.subr.mxu0 0.0
    %4074 = vmatpush1.msra.mxu0 0.0
    %4075 = vmatprep.subr.mxu0 0.0
    %4076 = vmatpush1.msra.mxu0 0.0
    %4077 = vmatprep.subr.mxu0 0.0
    %4078 = vmatpush1.msra.mxu0 0.0
    %4079 = vmatprep.subr.mxu0 0.0
    %4080 = vmatpush1.msra.mxu0 0.0
    %4081 = vmatprep.subr.mxu0 0.0
    %4082 = vmatpush1.msra.mxu0 0.0
    %4083 = vmatprep.subr.mxu0 0.0
    %4084 = vmatpush1.msra.mxu0 0.0
    %4085 = vmatprep.subr.mxu0 0.0
    %4086 = vmatpush1.msra.mxu0 0.0
    %4087 = vmatprep.subr.mxu0 0.0
    %4088 = vmatpush1.msra.mxu0 0.0
    %4089 = vmatprep.subr.mxu0 0.0
    %4090 = vmatpush1.msra.mxu0 0.0
    %4091 = vmatprep.subr.mxu0 0.0
    %4092 = vmatpush1.msra.mxu0 0.0
    %4093 = vmatprep.subr.mxu0 0.0
    %4094 = vmatpush1.msra.mxu0 0.0
    %4095 = vmatprep.subr.mxu0 0.0
    %4096 = vmatpush1.msra.mxu0 0.0
    %4097 = vmatprep.subr.mxu0 0.0
    %4098 = vmatpush1.msra.mxu0 0.0
    %4099 = vmatprep.subr.mxu0 0.0
    %4100 = vmatpush1.msra.mxu0 0.0
    %4101 = vmatprep.subr.mxu0 0.0
    %4102 = vmatpush1.msra.mxu0 0.0
    %4103 = vmatprep.subr.mxu0 0.0
    %4104 = vmatpush1.msra.mxu0 0.0
    %4105 = vmatprep.subr.mxu0 0.0
    %4106 = vmatpush1.msra.mxu0 0.0
    %4107 = vmatprep.subr.mxu0 0.0
    %4108 = vmatpush1.msra.mxu0 0.0
    %4109 = vmatprep.subr.mxu0 0.0
    %4110 = vmatpush1.msra.mxu0 0.0
    %4111 = vmatprep.subr.mxu0 0.0
    %4112 = vmatpush1.msra.mxu0 0.0
    %4113 = vmatprep.subr.mxu0 0.0
    %4114 = vmatpush1.msra.mxu0 0.0
    %4115 = vmatprep.subr.mxu0 0.0
    %4116 = vmatpush1.msra.mxu0 0.0
    %4117 = vmatprep.subr.mxu0 0.0
    %4118 = vmatpush1.msra.mxu0 0.0
    %4119 = vmatprep.subr.mxu0 0.0
    %4120 = vmatpush1.msra.mxu0 0.0
    %4121 = vmatprep.subr.mxu0 0.0
    %4122 = vmatpush1.msra.mxu0 0.0
    %4123 = vmatprep.subr.mxu0 0.0
    %4124 = vmatpush1.msra.mxu0 0.0
    %4125 = vmatprep.mubr.f32.mxu0 0.0
    %4126 = vmatmul.mubr.f32.gmra.mrb[0].mxu0 %v4059
    %v4127 = vpop.f32.mrb[0].mxu0
    %v4128 = vadd.f32 %v4053, %v4127
    %v4129 = vpop.f32.mrb[0].mxu0
    %4130 = vdwg.mxu0
    %v4131 = vadd.f32 %v4128, %v93
    %v4132 = vmul.f32 %v4131, 0.5
    %v4133 = vtanh.pop %v4132
    %v4134 = vadd.f32 %v4133, 1.0
    %v4135 = vmul.f32 %v4134, 0.5
    %v4136 = vtanh.pop %v4131
    %v4137 = vmul.f32 %v4135, %v3876
    %4139 = vrot.lane.b32.xlu0 %v4136, 64
    %v4140 = vpop.permute.xlu0 %4139
    %v4142 = vmul.f32 %v4135, %v4140
    %4144 = vrot.lane.b32.xlu0 %v4142, 32
    %v4145 = vpop.permute.xlu0 %4144
    %v4147 = vadd.f32 %v4137, %v4145
    %v4148 = vtanh.pop %v4147
    %4150 = vrot.lane.b32.xlu0 %v4148, 64
    %v4151 = vpop.permute.xlu0 %4150
    %v4153 = vmul.f32 %v4135, %v4151
    %4155 = vrot.lane.b32.xlu0 %v4153, 32
    %v4156 = vpop.permute.xlu0 %4155
    %s4158 = scalar_lea.vmem [#allocation10], 112
    %4159 = vst.msk [vmem:[%s4158] sm:$0xff] %vm96, %v4156
    %s4160 = scalar_lea.vmem [#allocation2], 120
    %v4161 = vld [vmem:[%s4160] sm:$0xff]
    %4162 = vmatprep.subr.mxu0 0.0
    %4163 = vmatpush1.msra.mxu0 %v76
    %4164 = vmatprep.subr.mxu0 0.0
    %4165 = vmatpush1.msra.mxu0 %v77
    %4166 = vmatprep.subr.mxu0 0.0
    %4167 = vmatpush1.msra.mxu0 %v78
    %4168 = vmatprep.subr.mxu0 0.0
    %4169 = vmatpush1.msra.mxu0 %v79
    %4170 = vmatprep.subr.mxu0 0.0
    %4171 = vmatpush1.msra.mxu0 0.0
    %4172 = vmatprep.subr.mxu0 0.0
    %4173 = vmatpush1.msra.mxu0 0.0
    %4174 = vmatprep.subr.mxu0 0.0
    %4175 = vmatpush1.msra.mxu0 0.0
    %4176 = vmatprep.subr.mxu0 0.0
    %4177 = vmatpush1.msra.mxu0 0.0
    %4178 = vmatprep.subr.mxu0 0.0
    %4179 = vmatpush1.msra.mxu0 0.0
    %4180 = vmatprep.subr.mxu0 0.0
    %4181 = vmatpush1.msra.mxu0 0.0
    %4182 = vmatprep.subr.mxu0 0.0
    %4183 = vmatpush1.msra.mxu0 0.0
    %4184 = vmatprep.subr.mxu0 0.0
    %4185 = vmatpush1.msra.mxu0 0.0
    %4186 = vmatprep.subr.mxu0 0.0
    %4187 = vmatpush1.msra.mxu0 0.0
    %4188 = vmatprep.subr.mxu0 0.0
    %4189 = vmatpush1.msra.mxu0 0.0
    %4190 = vmatprep.subr.mxu0 0.0
    %4191 = vmatpush1.msra.mxu0 0.0
    %4192 = vmatprep.subr.mxu0 0.0
    %4193 = vmatpush1.msra.mxu0 0.0
    %4194 = vmatprep.subr.mxu0 0.0
    %4195 = vmatpush1.msra.mxu0 0.0
    %4196 = vmatprep.subr.mxu0 0.0
    %4197 = vmatpush1.msra.mxu0 0.0
    %4198 = vmatprep.subr.mxu0 0.0
    %4199 = vmatpush1.msra.mxu0 0.0
    %4200 = vmatprep.subr.mxu0 0.0
    %4201 = vmatpush1.msra.mxu0 0.0
    %4202 = vmatprep.subr.mxu0 0.0
    %4203 = vmatpush1.msra.mxu0 0.0
    %4204 = vmatprep.subr.mxu0 0.0
    %4205 = vmatpush1.msra.mxu0 0.0
    %4206 = vmatprep.subr.mxu0 0.0
    %4207 = vmatpush1.msra.mxu0 0.0
    %4208 = vmatprep.subr.mxu0 0.0
    %4209 = vmatpush1.msra.mxu0 0.0
    %4210 = vmatprep.subr.mxu0 0.0
    %4211 = vmatpush1.msra.mxu0 0.0
    %4212 = vmatprep.subr.mxu0 0.0
    %4213 = vmatpush1.msra.mxu0 0.0
    %4214 = vmatprep.subr.mxu0 0.0
    %4215 = vmatpush1.msra.mxu0 0.0
    %4216 = vmatprep.subr.mxu0 0.0
    %4217 = vmatpush1.msra.mxu0 0.0
    %4218 = vmatprep.subr.mxu0 0.0
    %4219 = vmatpush1.msra.mxu0 0.0
    %4220 = vmatprep.subr.mxu0 0.0
    %4221 = vmatpush1.msra.mxu0 0.0
    %4222 = vmatprep.subr.mxu0 0.0
    %4223 = vmatpush1.msra.mxu0 0.0
    %4224 = vmatprep.subr.mxu0 0.0
    %4225 = vmatpush1.msra.mxu0 0.0
    %4226 = vmatprep.mubr.f32.mxu0 0.0
    %4227 = vmatmul.mubr.f32.gmra.mrb[0].mxu0 %v4059
    %v4228 = vpop.f32.mrb[0].mxu0
    %v4229 = vadd.f32 0.0, %v4228
    %v4230 = vpop.f32.mrb[0].mxu0
    %4231 = vdwg.mxu0
    %v4232 = vadd.f32 %v4161, %v4229
    %v4233 = vmul.f32 %v4232, 0.5
    %v4234 = vtanh.pop %v4233
    %v4235 = vadd.f32 %v4234, 1.0
    %v4236 = vmul.f32 %v4235, 0.5
    %v4237 = vtanh.pop %v4232
    %v4238 = vmul.f32 %v4236, %v3977
    %4240 = vrot.lane.b32.xlu0 %v4237, 64
    %v4241 = vpop.permute.xlu0 %4240
    %v4243 = vmul.f32 %v4236, %v4241
    %4245 = vrot.lane.b32.xlu0 %v4243, 32
    %v4246 = vpop.permute.xlu0 %4245
    %v4248 = vadd.f32 %v4238, %v4246
    %v4249 = vtanh.pop %v4248
    %4251 = vrot.lane.b32.xlu0 %v4249, 64
    %v4252 = vpop.permute.xlu0 %4251
    %v4254 = vmul.f32 %v4236, %v4252
    %v4255 = vsel %vm96, %v4156, 0
    %4257 = vmatprep.subr.mxu0 0.0
    %4258 = vmatpush1.msra.mxu0 %v84
    %4259 = vmatprep.subr.mxu0 0.0
    %4260 = vmatpush1.msra.mxu0 %v85
    %4261 = vmatprep.subr.mxu0 0.0
    %4262 = vmatpush1.msra.mxu0 %v86
    %4263 = vmatprep.subr.mxu0 0.0
    %4264 = vmatpush1.msra.mxu0 %v87
    %4265 = vmatprep.subr.mxu0 0.0
    %4266 = vmatpush1.msra.mxu0 0.0
    %4267 = vmatprep.subr.mxu0 0.0
    %4268 = vmatpush1.msra.mxu0 0.0
    %4269 = vmatprep.subr.mxu0 0.0
    %4270 = vmatpush1.msra.mxu0 0.0
    %4271 = vmatprep.subr.mxu0 0.0
    %4272 = vmatpush1.msra.mxu0 0.0
    %4273 = vmatprep.subr.mxu0 0.0
    %4274 = vmatpush1.msra.mxu0 0.0
    %4275 = vmatprep.subr.mxu0 0.0
    %4276 = vmatpush1.msra.mxu0 0.0
    %4277 = vmatprep.subr.mxu0 0.0
    %4278 = vmatpush1.msra.mxu0 0.0
    %4279 = vmatprep.subr.mxu0 0.0
    %4280 = vmatpush1.msra.mxu0 0.0
    %4281 = vmatprep.subr.mxu0 0.0
    %4282 = vmatpush1.msra.mxu0 0.0
    %4283 = vmatprep.subr.mxu0 0.0
    %4284 = vmatpush1.msra.mxu0 0.0
    %4285 = vmatprep.subr.mxu0 0.0
    %4286 = vmatpush1.msra.mxu0 0.0
    %4287 = vmatprep.subr.mxu0 0.0
    %4288 = vmatpush1.msra.mxu0 0.0
    %4289 = vmatprep.subr.mxu0 0.0
    %4290 = vmatpush1.msra.mxu0 0.0
    %4291 = vmatprep.subr.mxu0 0.0
    %4292 = vmatpush1.msra.mxu0 0.0
    %4293 = vmatprep.subr.mxu0 0.0
    %4294 = vmatpush1.msra.mxu0 0.0
    %4295 = vmatprep.subr.mxu0 0.0
    %4296 = vmatpush1.msra.mxu0 0.0
    %4297 = vmatprep.subr.mxu0 0.0
    %4298 = vmatpush1.msra.mxu0 0.0
    %4299 = vmatprep.subr.mxu0 0.0
    %4300 = vmatpush1.msra.mxu0 0.0
    %4301 = vmatprep.subr.mxu0 0.0
    %4302 = vmatpush1.msra.mxu0 0.0
    %4303 = vmatprep.subr.mxu0 0.0
    %4304 = vmatpush1.msra.mxu0 0.0
    %4305 = vmatprep.subr.mxu0 0.0
    %4306 = vmatpush1.msra.mxu0 0.0
    %4307 = vmatprep.subr.mxu0 0.0
    %4308 = vmatpush1.msra.mxu0 0.0
    %4309 = vmatprep.subr.mxu0 0.0
    %4310 = vmatpush1.msra.mxu0 0.0
    %4311 = vmatprep.subr.mxu0 0.0
    %4312 = vmatpush1.msra.mxu0 0.0
    %4313 = vmatprep.subr.mxu0 0.0
    %4314 = vmatpush1.msra.mxu0 0.0
    %4315 = vmatprep.subr.mxu0 0.0
    %4316 = vmatpush1.msra.mxu0 0.0
    %4317 = vmatprep.subr.mxu0 0.0
    %4318 = vmatpush1.msra.mxu0 0.0
    %4319 = vmatprep.subr.mxu0 0.0
    %4320 = vmatpush1.msra.mxu0 0.0
    %4321 = vmatprep.mubr.f32.mxu0 0.0
    %4322 = vmatmul.mubr.f32.gmra.mrb[0].mxu0 %v4255
    %v4323 = vpop.f32.mrb[0].mxu0
    %v4324 = vadd.f32 0.0, %v4323
    %v4325 = vpop.f32.mrb[0].mxu0
    %4326 = vdwg.mxu0
    %4328 = vrot.lane.b32.xlu0 %v4254, 32
    %v4329 = vpop.permute.xlu0 %4328
    %v4330 = vsel %vm96, %v4329, 0
    %4332 = vmatprep.subr.mxu0 0.0
    %4333 = vmatpush1.msra.mxu0 %v80
    %4334 = vmatprep.subr.mxu0 0.0
    %4335 = vmatpush1.msra.mxu0 %v81
    %4336 = vmatprep.subr.mxu0 0.0
    %4337 = vmatpush1.msra.mxu0 %v82
    %4338 = vmatprep.subr.mxu0 0.0
    %4339 = vmatpush1.msra.mxu0 %v83
    %4340 = vmatprep.subr.mxu0 0.0
    %4341 = vmatpush1.msra.mxu0 0.0
    %4342 = vmatprep.subr.mxu0 0.0
    %4343 = vmatpush1.msra.mxu0 0.0
    %4344 = vmatprep.subr.mxu0 0.0
    %4345 = vmatpush1.msra.mxu0 0.0
    %4346 = vmatprep.subr.mxu0 0.0
    %4347 = vmatpush1.msra.mxu0 0.0
    %4348 = vmatprep.subr.mxu0 0.0
    %4349 = vmatpush1.msra.mxu0 0.0
    %4350 = vmatprep.subr.mxu0 0.0
    %4351 = vmatpush1.msra.mxu0 0.0
    %4352 = vmatprep.subr.mxu0 0.0
    %4353 = vmatpush1.msra.mxu0 0.0
    %4354 = vmatprep.subr.mxu0 0.0
    %4355 = vmatpush1.msra.mxu0 0.0
    %4356 = vmatprep.subr.mxu0 0.0
    %4357 = vmatpush1.msra.mxu0 0.0
    %4358 = vmatprep.subr.mxu0 0.0
    %4359 = vmatpush1.msra.mxu0 0.0
    %4360 = vmatprep.subr.mxu0 0.0
    %4361 = vmatpush1.msra.mxu0 0.0
    %4362 = vmatprep.subr.mxu0 0.0
    %4363 = vmatpush1.msra.mxu0 0.0
    %4364 = vmatprep.subr.mxu0 0.0
    %4365 = vmatpush1.msra.mxu0 0.0
    %4366 = vmatprep.subr.mxu0 0.0
    %4367 = vmatpush1.msra.mxu0 0.0
    %4368 = vmatprep.subr.mxu0 0.0
    %4369 = vmatpush1.msra.mxu0 0.0
    %4370 = vmatprep.subr.mxu0 0.0
    %4371 = vmatpush1.msra.mxu0 0.0
    %4372 = vmatprep.subr.mxu0 0.0
    %4373 = vmatpush1.msra.mxu0 0.0
    %4374 = vmatprep.subr.mxu0 0.0
    %4375 = vmatpush1.msra.mxu0 0.0
    %4376 = vmatprep.subr.mxu0 0.0
    %4377 = vmatpush1.msra.mxu0 0.0
    %4378 = vmatprep.subr.mxu0 0.0
    %4379 = vmatpush1.msra.mxu0 0.0
    %4380 = vmatprep.subr.mxu0 0.0
    %4381 = vmatpush1.msra.mxu0 0.0
    %4382 = vmatprep.subr.mxu0 0.0
    %4383 = vmatpush1.msra.mxu0 0.0
    %4384 = vmatprep.subr.mxu0 0.0
    %4385 = vmatpush1.msra.mxu0 0.0
    %4386 = vmatprep.subr.mxu0 0.0
    %4387 = vmatpush1.msra.mxu0 0.0
    %4388 = vmatprep.subr.mxu0 0.0
    %4389 = vmatpush1.msra.mxu0 0.0
    %4390 = vmatprep.subr.mxu0 0.0
    %4391 = vmatpush1.msra.mxu0 0.0
    %4392 = vmatprep.subr.mxu0 0.0
    %4393 = vmatpush1.msra.mxu0 0.0
    %4394 = vmatprep.subr.mxu0 0.0
    %4395 = vmatpush1.msra.mxu0 0.0
    %4396 = vmatprep.mubr.f32.mxu0 0.0
    %4397 = vmatmul.mubr.f32.gmra.mrb[0].mxu0 %v4330
    %v4398 = vpop.f32.mrb[0].mxu0
    %v4399 = vadd.f32 %v4324, %v4398
    %v4400 = vpop.f32.mrb[0].mxu0
    %4401 = vdwg.mxu0
    %v4402 = vadd.f32 %v4399, %v93
    %v4403 = vmul.f32 %v4402, 0.5
    %v4404 = vtanh.pop %v4403
    %v4405 = vadd.f32 %v4404, 1.0
    %v4406 = vmul.f32 %v4405, 0.5
    %v4407 = vtanh.pop %v4402
    %v4408 = vmul.f32 %v4406, %v4147
    %4410 = vrot.lane.b32.xlu0 %v4407, 64
    %v4411 = vpop.permute.xlu0 %4410
    %v4413 = vmul.f32 %v4406, %v4411
    %4415 = vrot.lane.b32.xlu0 %v4413, 32
    %v4416 = vpop.permute.xlu0 %4415
    %v4418 = vadd.f32 %v4408, %v4416
    %v4419 = vtanh.pop %v4418
    %4421 = vrot.lane.b32.xlu0 %v4419, 64
    %v4422 = vpop.permute.xlu0 %4421
    %v4424 = vmul.f32 %v4406, %v4422
    %4426 = vrot.lane.b32.xlu0 %v4424, 32
    %v4427 = vpop.permute.xlu0 %4426
    %s4429 = scalar_lea.vmem [#allocation10], 120
    %4430 = vst.msk [vmem:[%s4429] sm:$0xff] %vm96, %v4427
    // Predicated region
    $region38: #{tpu_custom_call.1} parent=1 // pred_check
      _
    $region39: #{tpu_custom_call.1} parent=1 // pred_check_branch
      %4432 = sbr.rel (0) target = $region41
    $region40: #{tpu_custom_call.1} parent=1 // pred_region
      %s4434 = ssub.s32 2048, 2048
      %4435 = vsyncadd [#allocation4], %s4434
      %s4436 = sshll.u32 [#allocation10], 4
      %s4437 = int_to_ptr.vmem [resolvable:$true] %s4436
      %4442 = dma.vmem_to_hbm [thread:$0]  %s4437, 2048, %s5, [#allocation4], 128, 128, 8
    $region41: #{tpu_custom_call.1} parent=1 // pred_fallthru
      _
    // Predicated region
    $region42: #{tpu_custom_call.1} parent=1 // pred_check
      _
    $region43: #{tpu_custom_call.1} parent=1 // pred_check_branch
      %4444 = sbr.rel (0) target = $region45
    $region44: #{tpu_custom_call.1} parent=1 // pred_region
      %4445 = dma.done [#allocation4], 2048
    $region45: #{tpu_custom_call.1} parent=1 // pred_fallthru
      _
    %4446 = vsyncpa [#allocation3], 1
    %4447 = vsyncpa [#allocation6], 1
    %4448 = vsyncpa [#allocation9], 1
    %4449 = vsyncpa [#allocation4], 1

</llo_original>
